<compile_context>
chip_gen: v5e
topology: v5e:2x2
jax: 0.10.0
libtpu: 0.0.40
codegen_flags: <defaults>
</compile_context>

<pallas_src>
import math

import jax
import jax.numpy as jnp
from jax import lax
from jax.experimental import pallas as pl
from jax.experimental.pallas import tpu as pltpu


# -------------------------- model hyper-parameters --------------------------
HIDDEN = 32          # config.hidden_size
STATE = 16           # ssm_state_size
CONV_K = 4           # ssm_conv_size
EXPAND = 2           # ssm_expand_factor
DT_RANK = HIDDEN // 16
D_INNER = HIDDEN * EXPAND
EPS = 1e-6           # config.epsilon

BATCH = 2
SEQ = 8

# packed layout for the small per-channel vectors (one 128-lane slot each)
_SMALL_ORDER = ("b_inx", "b_ing", "conv_b", "b_dx", "b_B", "b_C", "D", "b_out")
SMALL_SLOT = 128
OFF = {name: i * SMALL_SLOT for i, name in enumerate(_SMALL_ORDER)}
SMALL_W = len(_SMALL_ORDER) * SMALL_SLOT


def _silu(v):
    return v * (1.0 / (1.0 + jnp.exp(-v)))


def _softplus(v):
    # numerically-safe softplus; identical formula in kernel and reference
    return jnp.where(v > 20.0, v, jnp.log(1.0 + jnp.exp(jnp.minimum(v, 20.0))))


# ------------------------------- Pallas kernel ------------------------------
def make_ssm_kernel(BS, H, D, N, K, eps):
    LOG_INV_CLAMP = 23.025850929940457  # ln(1e10): reproduces reference max(shifted, 1e-10)

    def kernel(x_ref, h0_ref, L_ref, sh_ref, E_ref, T_ref, ssel_ref,
               winx_ref, wing_ref, convw_ref, wdx_ref, wB_ref, wC_ref, aneg_ref,
               wout_ref, sm_ref, out_ref, hst_ref):
        f32 = jnp.float32

        def sm(name, width):                      # packed small param -> [1, width]
            o = OFF[name]
            return sm_ref[:, o:o + width]

        x0 = x_ref[...]                           # [BS, H]

        # ---- RMSNorm (weight folded into W_inx / W_ing) ----
        ms = jnp.mean(x0 * x0, axis=-1, keepdims=True)
        xh = x0 * lax.rsqrt(ms + eps)

        # ---- in_proj split into x-half and gate-half (lane-aligned, no slicing) ----
        xc = jnp.dot(xh, winx_ref[...], preferred_element_type=f32) + sm("b_inx", D)
        gate = jnp.dot(xh, wing_ref[...], preferred_element_type=f32) + sm("b_ing", D)

        # ---- depthwise causal conv1d via precomputed block-diagonal shift matrices ----
        acc = jnp.zeros((BS, D), f32)
        for k in range(K):
            acc = acc + jnp.dot(sh_ref[k], xc,
                                preferred_element_type=f32) * convw_ref[k:k + 1, :]
        xs = _silu(acc + sm("conv_b", D))         # [BS, D]

        # ---- x_proj split; dt_proj folded into W_dx ----
        delta = _softplus(jnp.dot(xs, wdx_ref[...], preferred_element_type=f32)
                          + sm("b_dx", D))                                        # [BS, D]
        Bm = jnp.dot(xs, wB_ref[...], preferred_element_type=f32) + sm("b_B", N)  # [BS, N]
        Cm = jnp.dot(xs, wC_ref[...], preferred_element_type=f32) + sm("b_C", N)  # [BS, N]

        # ---- selective scan over the [BS, D*N] stage (d-major, n-minor) ----
        # ordering keeps at most ~4 [BS, D*N] temporaries live at any point
        dBx = jnp.dot(xs, E_ref[...], preferred_element_type=f32) \
            * jnp.dot(Bm, T_ref[...], preferred_element_type=f32)                 # x_e * B_e
        d_e = jnp.dot(delta, E_ref[...], preferred_element_type=f32)
        dBx = dBx * d_e                                                            # delta*B*x
        log_dA = d_e * aneg_ref[...]                                               # log(deltaA)
        logcum = jnp.dot(L_ref[...], log_dA, preferred_element_type=f32)           # causal cumsum
        diff = log_dA - logcum                                                     # = -log(shifted)
        # reference: dBx / max(shifted, 1e-10)  ==  dBx * exp(min(diff, ln 1e10))
        dBx = dBx * jnp.exp(jnp.minimum(diff, LOG_INV_CLAMP))
        hin = jnp.dot(L_ref[...], dBx, preferred_element_type=f32)                 # causal cumsum
        h = hin * jnp.exp(-diff) + h0_ref[...] * jnp.exp(logcum)                   # [BS, DN]

        # new SSM state = h at the last timestep of every sequence
        hst_ref[...] = jnp.dot(ssel_ref[...], h, preferred_element_type=f32)

        # ---- y = sum_n(h * C_e) + x * D_param ; gate ; out_proj ; residual ----
        # contract DN back to D by reusing E with a transposed-RHS contraction
        hC = h * jnp.dot(Cm, T_ref[...], preferred_element_type=f32)               # [BS, DN]
        y = lax.dot_general(hC, E_ref[...], (((1,), (1,)), ((), ())),
                            preferred_element_type=f32)                            # [BS, D]
        y = (y + xs * sm("D", D)) * _silu(gate)
        out_ref[...] = x0 + jnp.dot(y, wout_ref[...],
                                    preferred_element_type=f32) + sm("b_out", H)

    return kernel


# ------------------------- parameter folding / constants ---------------------
def fold_params(params):
    """Fold / split / pack parameters and build the static selector constants."""
    D, N, R, H = D_INNER, STATE, DT_RANK, HIDDEN
    DN = D * N

    rms = params["rms_w"].reshape(H, 1)
    W_inx = rms * params["W_in"][:, :D]
    W_ing = rms * params["W_in"][:, D:]
    W_dx = params["W_x"][:, :R] @ params["W_dt"]                      # [D, D]
    b_dx = params["b_x"][:, :R] @ params["W_dt"] + params["b_dt"]     # [1, D]
    W_B = params["W_x"][:, R:R + N]
    W_C = params["W_x"][:, R + N:R + 2 * N]
    A_neg = -jnp.exp(params["A_log"])                                 # [1, DN]

    def slot(v):
        v = v.reshape(1, -1).astype(jnp.float32)
        return jnp.pad(v, ((0, 0), (0, SMALL_SLOT - v.shape[1])))

    small_parts = {
        "b_inx": params["b_in"][:, :D],
        "b_ing": params["b_in"][:, D:],
        "conv_b": params["conv_b"],
        "b_dx": b_dx,
        "b_B": params["b_x"][:, R:R + N],
        "b_C": params["b_x"][:, R + N:R + 2 * N],
        "D": params["D"],
        "b_out": params["b_out"],
    }
    small = jnp.concatenate([slot(small_parts[n]) for n in _SMALL_ORDER], axis=1)

    # static (d,n) expansion selectors (0/1); E is also reused (transposed) for
    # the n-summation inside the kernel, so no separate reduction matrix is needed.
    dn = jnp.arange(DN)
    E = (jnp.arange(D)[:, None] == (dn // N)[None, :]).astype(jnp.float32)   # [D, DN]
    T = (jnp.arange(N)[:, None] == (dn % N)[None, :]).astype(jnp.float32)    # [N, DN]

    return {
        "W_inx": W_inx, "W_ing": W_ing, "conv_w": params["conv_w"],
        "W_dx": W_dx, "W_B": W_B, "W_C": W_C, "A_neg": A_neg,
        "W_out": params["W_out"], "small": small,
        "E": E, "T": T,
    }


# ------------------------------ forward wrapper ------------------------------
def ssm_block_forward(folded, inputs, current_state=None):
    B, S, H = inputs.shape
    D, N, K = D_INNER, STATE, CONV_K
    DN = D * N
    BS = B * S

    if current_state is None:
        current_state = jnp.zeros((B, D, N), jnp.float32)
    h0_rows = jnp.repeat(current_state.reshape(B, DN).astype(jnp.float32), S, axis=0)

    x2d = inputs.reshape(BS, H).astype(jnp.float32)

    # batch-fused (block-diagonal) causal mask, conv shift matrices, state selector
    t = jnp.arange(BS)
    row, col = t[:, None], t[None, :]
    same = (row // S) == (col // S)
    L = jnp.where(same & (row >= col), 1.0, 0.0).astype(jnp.float32)          # [BS, BS]
    shifts = jnp.stack(
        [jnp.where(same & (col == row - (K - 1 - k)), 1.0, 0.0) for k in range(K)]
    ).astype(jnp.float32)                                                      # [K, BS, BS]
    state_sel = jnp.zeros((B, BS), jnp.float32).at[
        jnp.arange(B), jnp.arange(B) * S + S - 1].set(1.0)                     # [B, BS]

    kernel = make_ssm_kernel(BS, H, D, N, K, EPS)

    operands = [
        x2d, h0_rows, L, shifts,
        folded["E"], folded["T"], state_sel,
        folded["W_inx"], folded["W_ing"], folded["conv_w"], folded["W_dx"],
        folded["W_B"], folded["W_C"], folded["A_neg"], folded["W_out"], folded["small"],
    ]

    def full_spec(a):
        return pl.BlockSpec(a.shape, lambda i, nd=a.ndim: (0,) * nd)

    out2d, new_state = pl.pallas_call(
        kernel,
        out_shape=(
            jax.ShapeDtypeStruct((BS, H), jnp.float32),
            jax.ShapeDtypeStruct((B, DN), jnp.float32),
        ),
        grid=(1,),
        in_specs=[full_spec(a) for a in operands],
        out_specs=(
            pl.BlockSpec((BS, H), lambda i: (0, 0)),
            pl.BlockSpec((B, DN), lambda i: (0, 0)),
        ),
        compiler_params=pltpu.CompilerParams(dimension_semantics=("arbitrary",)),
    )(*operands)

    out = out2d.reshape(B, S, H).astype(inputs.dtype)
    return out, None, new_state.reshape(B, D, N), jnp.float32(0.0)


# ------------------------------ pure-JAX reference ---------------------------
def ref_forward(params, inputs, current_state=None):
    B, S, H = inputs.shape
    D, N, R, K = D_INNER, STATE, DT_RANK, CONV_K
    if current_state is None:
        current_state = jnp.zeros((B, D, N), inputs.dtype)

    x = inputs
    ms = jnp.mean(x * x, axis=-1, keepdims=True)
    xn = x * lax.rsqrt(ms + EPS) * params["rms_w"][0]
    xg = xn @ params["W_in"] + params["b_in"][0]
    xc, gate = xg[..., :D], xg[..., D:]

    xpad = jnp.pad(xc, ((0, 0), (K - 1, 0), (0, 0)))
    conv = jnp.zeros_like(xc)
    for k in range(K):
        conv = conv + xpad[:, k:k + S, :] * params["conv_w"][k]
    conv = conv + params["conv_b"][0]
    xs = _silu(conv)

    xp = xs @ params["W_x"] + params["b_x"][0]
    dr, Bm, Cm = xp[..., :R], xp[..., R:R + N], xp[..., R + N:R + 2 * N]
    delta = _softplus(dr @ params["W_dt"] + params["b_dt"][0])

    A = -jnp.exp(params["A_log"].reshape(D, N))
    log_dA = delta[..., None] * A                                   # [B,S,D,N]
    dBx = delta[..., None] * Bm[:, :, None, :] * xs[..., None]
    logcum = jnp.cumsum(log_dA, axis=1)
    cum = jnp.exp(logcum)
    shifted = jnp.exp(logcum - log_dA)
    h = current_state[:, None] * cum + \
        jnp.cumsum(dBx / jnp.maximum(shifted, 1e-10), axis=1) * shifted
    new_state = h[:, -1]
    y = (h * Cm[:, :, None, :]).sum(-1) + xs * params["D"][0]
    y = y * _silu(gate)
    out = y @ params["W_out"] + params["b_out"][0]
    return inputs + out, None, new_state, jnp.float32(0.0)


# ------------------------------ parameter init -------------------------------
def init_params(key):
    D, N, R, K, H = D_INNER, STATE, DT_RANK, CONV_K, HIDDEN
    ks = jax.random.split(key, 10)

    def linear(k, fan_in, fan_out):
        kw, kb = jax.random.split(k)
        bound = 1.0 / math.sqrt(fan_in)
        W = jax.random.uniform(kw, (fan_in, fan_out), jnp.float32, -bound, bound)
        b = jax.random.uniform(kb, (1, fan_out), jnp.float32, -bound, bound)
        return W, b

    W_in, b_in = linear(ks[0], H, 2 * D)
    W_x, b_x = linear(ks[1], D, R + 2 * N)
    W_dt, b_dt = linear(ks[2], R, D)
    W_out, b_out = linear(ks[3], D, H)

    cb = 1.0 / math.sqrt(K)
    conv_w = jax.random.uniform(ks[4], (K, D), jnp.float32, -cb, cb)   # tap-major depthwise
    conv_b = jax.random.uniform(ks[5], (1, D), jnp.float32, -cb, cb)

    a_row = jnp.log(jnp.arange(1, N + 1, dtype=jnp.float32))           # A_log[d, n] = log(n+1)
    A_log = jnp.tile(a_row, (D,)).reshape(1, D * N)                    # flattened d-major

    return {
        "rms_w": jnp.ones((1, H), jnp.float32),
        "W_in": W_in, "b_in": b_in,
        "conv_w": conv_w, "conv_b": conv_b,
        "W_x": W_x, "b_x": b_x, "W_dt": W_dt, "b_dt": b_dt,
        "A_log": A_log,
        "D": jnp.ones((1, D), jnp.float32),
        "W_out": W_out, "b_out": b_out,
    }


# ------------------------------------ main ------------------------------------
if __name__ == "__main__":
    key = jax.random.PRNGKey(0)
    pkey, xkey, skey = jax.random.split(key, 3)
    params = init_params(pkey)
    inputs = jax.random.normal(xkey, (BATCH, SEQ, HIDDEN), jnp.float32)
    state0 = 0.05 * jax.random.normal(skey, (BATCH, D_INNER, STATE), jnp.float32)

    folded = fold_params(params)
    out, _, new_state, aux = ssm_block_forward(folded, inputs, state0)
    out = jax.block_until_ready(out)
    new_state = jax.block_until_ready(new_state)

    out_ref, _, state_ref, _ = ref_forward(params, inputs, state0)
    assert jnp.allclose(out, out_ref, rtol=2e-4, atol=2e-4), "output mismatch"
    assert jnp.allclose(new_state, state_ref, rtol=2e-4, atol=2e-4), "state mismatch"

    print("KERNEL_OK")
</pallas_src>

<mosaic_0001>
module attributes {stable_mosaic.version = 11 : i64} {
  func.func @kernel(%arg0: i32, %arg1: memref<16x32xf32, #tpu.memory_space<vmem>>, %arg2: memref<16x1024xf32, #tpu.memory_space<vmem>>, %arg3: memref<16x16xf32, #tpu.memory_space<vmem>>, %arg4: memref<4x16x16xf32, #tpu.memory_space<vmem>>, %arg5: memref<64x1024xf32, #tpu.memory_space<vmem>>, %arg6: memref<16x1024xf32, #tpu.memory_space<vmem>>, %arg7: memref<2x16xf32, #tpu.memory_space<vmem>>, %arg8: memref<32x64xf32, #tpu.memory_space<vmem>>, %arg9: memref<32x64xf32, #tpu.memory_space<vmem>>, %arg10: memref<4x64xf32, #tpu.memory_space<vmem>>, %arg11: memref<64x64xf32, #tpu.memory_space<vmem>>, %arg12: memref<64x16xf32, #tpu.memory_space<vmem>>, %arg13: memref<64x16xf32, #tpu.memory_space<vmem>>, %arg14: memref<1x1024xf32, #tpu.memory_space<vmem>>, %arg15: memref<64x32xf32, #tpu.memory_space<vmem>>, %arg16: memref<1x1024xf32, #tpu.memory_space<vmem>>, %arg17: memref<16x32xf32, #tpu.memory_space<vmem>>, %arg18: memref<2x1024xf32, #tpu.memory_space<vmem>>) attributes {dimension_semantics = [#tpu.dimension_semantics<arbitrary>], iteration_bounds = array<i64: 1>, scalar_prefetch = 0 : i64, scratch_operands = 0 : i64, tpu.core_type = #tpu.core_type<tc>, window_params = [{pipeline_mode = #tpu.pipeline_mode<synchronous>, transform_indices = @transform_0, window_bounds = array<i64: 16, 32>}, {pipeline_mode = #tpu.pipeline_mode<synchronous>, transform_indices = @transform_1, window_bounds = array<i64: 16, 1024>}, {pipeline_mode = #tpu.pipeline_mode<synchronous>, transform_indices = @transform_2, window_bounds = array<i64: 16, 16>}, {pipeline_mode = #tpu.pipeline_mode<synchronous>, transform_indices = @transform_3, window_bounds = array<i64: 4, 16, 16>}, {pipeline_mode = #tpu.pipeline_mode<synchronous>, transform_indices = @transform_4, window_bounds = array<i64: 64, 1024>}, {pipeline_mode = #tpu.pipeline_mode<synchronous>, transform_indices = @transform_5, window_bounds = array<i64: 16, 1024>}, {pipeline_mode = #tpu.pipeline_mode<synchronous>, transform_indices = @transform_6, window_bounds = array<i64: 2, 16>}, {pipeline_mode = #tpu.pipeline_mode<synchronous>, transform_indices = @transform_7, window_bounds = array<i64: 32, 64>}, {pipeline_mode = #tpu.pipeline_mode<synchronous>, transform_indices = @transform_8, window_bounds = array<i64: 32, 64>}, {pipeline_mode = #tpu.pipeline_mode<synchronous>, transform_indices = @transform_9, window_bounds = array<i64: 4, 64>}, {pipeline_mode = #tpu.pipeline_mode<synchronous>, transform_indices = @transform_10, window_bounds = array<i64: 64, 64>}, {pipeline_mode = #tpu.pipeline_mode<synchronous>, transform_indices = @transform_11, window_bounds = array<i64: 64, 16>}, {pipeline_mode = #tpu.pipeline_mode<synchronous>, transform_indices = @transform_12, window_bounds = array<i64: 64, 16>}, {pipeline_mode = #tpu.pipeline_mode<synchronous>, transform_indices = @transform_13, window_bounds = array<i64: 1, 1024>}, {pipeline_mode = #tpu.pipeline_mode<synchronous>, transform_indices = @transform_14, window_bounds = array<i64: 64, 32>}, {pipeline_mode = #tpu.pipeline_mode<synchronous>, transform_indices = @transform_15, window_bounds = array<i64: 1, 1024>}, {pipeline_mode = #tpu.pipeline_mode<synchronous>, transform_indices = @transform_16, window_bounds = array<i64: 16, 32>}, {pipeline_mode = #tpu.pipeline_mode<synchronous>, transform_indices = @transform_17, window_bounds = array<i64: 2, 1024>}]} {
    %c0 = arith.constant 0 : index
    %c0_0 = arith.constant 0 : index
    %0 = vector.load %arg1[%c0, %c0_0] : memref<16x32xf32, #tpu.memory_space<vmem>>, vector<16x32xf32>
    %1 = arith.mulf %0, %0 : vector<16x32xf32>
    %cst = arith.constant dense<0.000000e+00> : vector<16xf32>
    %2 = vector.multi_reduction <add>, %1, %cst [1] : vector<16x32xf32> to vector<16xf32>
    %3 = vector.shape_cast %2 : vector<16xf32> to vector<16x1xf32>
    %cst_1 = arith.constant 3.200000e+01 : f32
    %4 = vector.broadcast %cst_1 : f32 to vector<16x1xf32>
    %5 = arith.divf %3, %4 : vector<16x1xf32>
    %cst_2 = arith.constant 9.99999997E-7 : f32
    %6 = vector.broadcast %cst_2 : f32 to vector<16x1xf32>
    %7 = arith.addf %5, %6 : vector<16x1xf32>
    %8 = math.rsqrt %7 : vector<16x1xf32>
    %9 = vector.broadcast %8 : vector<16x1xf32> to vector<16x32xf32>
    %10 = arith.mulf %0, %9 : vector<16x32xf32>
    %c0_3 = arith.constant 0 : index
    %c0_4 = arith.constant 0 : index
    %11 = vector.load %arg8[%c0_3, %c0_4] : memref<32x64xf32, #tpu.memory_space<vmem>>, vector<32x64xf32>
    %cst_5 = arith.constant dense<0.000000e+00> : vector<16x64xf32>
    %12 = tpu.matmul %10, %11, %cst_5 {dimension_numbers = #tpu.dot_dimension_numbers<[1], [0], [0], [1], [0, 0, 1, 1], [], []>} : vector<16x32xf32>, vector<32x64xf32>, vector<16x64xf32> -> vector<16x64xf32>
    %c0_6 = arith.constant 0 : index
    %c0_7 = arith.constant 0 : index
    %13 = vector.load %arg16[%c0_6, %c0_7] : memref<1x1024xf32, #tpu.memory_space<vmem>>, vector<1x64xf32>
    %14 = vector.broadcast %13 : vector<1x64xf32> to vector<16x64xf32>
    %15 = arith.addf %12, %14 : vector<16x64xf32>
    %c0_8 = arith.constant 0 : index
    %c0_9 = arith.constant 0 : index
    %16 = vector.load %arg9[%c0_8, %c0_9] : memref<32x64xf32, #tpu.memory_space<vmem>>, vector<32x64xf32>
    %cst_10 = arith.constant dense<0.000000e+00> : vector<16x64xf32>
    %17 = tpu.matmul %10, %16, %cst_10 {dimension_numbers = #tpu.dot_dimension_numbers<[1], [0], [0], [1], [0, 0, 1, 1], [], []>} : vector<16x32xf32>, vector<32x64xf32>, vector<16x64xf32> -> vector<16x64xf32>
    %c0_11 = arith.constant 0 : index
    %c128 = arith.constant 128 : index
    %18 = vector.load %arg16[%c0_11, %c128] : memref<1x1024xf32, #tpu.memory_space<vmem>>, vector<1x64xf32>
    %19 = vector.broadcast %18 : vector<1x64xf32> to vector<16x64xf32>
    %20 = arith.addf %17, %19 : vector<16x64xf32>
    %cst_12 = arith.constant 0.000000e+00 : f32
    %21 = vector.broadcast %cst_12 : f32 to vector<16x64xf32>
    %c0_13 = arith.constant 0 : index
    %c0_14 = arith.constant 0 : index
    %c0_15 = arith.constant 0 : index
    %22 = vector.load %arg4[%c0_13, %c0_14, %c0_15] : memref<4x16x16xf32, #tpu.memory_space<vmem>>, vector<1x16x16xf32>
    %23 = vector.shape_cast %22 : vector<1x16x16xf32> to vector<16x16xf32>
    %cst_16 = arith.constant dense<0.000000e+00> : vector<16x64xf32>
    %24 = tpu.matmul %23, %15, %cst_16 {dimension_numbers = #tpu.dot_dimension_numbers<[1], [0], [0], [1], [0, 0, 1, 1], [], []>} : vector<16x16xf32>, vector<16x64xf32>, vector<16x64xf32> -> vector<16x64xf32>
    %c0_17 = arith.constant 0 : index
    %c0_18 = arith.constant 0 : index
    %25 = vector.load %arg10[%c0_17, %c0_18] : memref<4x64xf32, #tpu.memory_space<vmem>>, vector<1x64xf32>
    %26 = vector.broadcast %25 : vector<1x64xf32> to vector<16x64xf32>
    %27 = arith.mulf %24, %26 : vector<16x64xf32>
    %28 = arith.addf %21, %27 : vector<16x64xf32>
    %c1 = arith.constant 1 : index
    %c0_19 = arith.constant 0 : index
    %c0_20 = arith.constant 0 : index
    %29 = vector.load %arg4[%c1, %c0_19, %c0_20] : memref<4x16x16xf32, #tpu.memory_space<vmem>>, vector<1x16x16xf32>
    %30 = vector.shape_cast %29 : vector<1x16x16xf32> to vector<16x16xf32>
    %cst_21 = arith.constant dense<0.000000e+00> : vector<16x64xf32>
    %31 = tpu.matmul %30, %15, %cst_21 {dimension_numbers = #tpu.dot_dimension_numbers<[1], [0], [0], [1], [0, 0, 1, 1], [], []>} : vector<16x16xf32>, vector<16x64xf32>, vector<16x64xf32> -> vector<16x64xf32>
    %c1_22 = arith.constant 1 : index
    %c0_23 = arith.constant 0 : index
    %32 = vector.load %arg10[%c1_22, %c0_23] : memref<4x64xf32, #tpu.memory_space<vmem>>, vector<1x64xf32>
    %33 = vector.broadcast %32 : vector<1x64xf32> to vector<16x64xf32>
    %34 = arith.mulf %31, %33 : vector<16x64xf32>
    %35 = arith.addf %28, %34 : vector<16x64xf32>
    %c2 = arith.constant 2 : index
    %c0_24 = arith.constant 0 : index
    %c0_25 = arith.constant 0 : index
    %36 = vector.load %arg4[%c2, %c0_24, %c0_25] : memref<4x16x16xf32, #tpu.memory_space<vmem>>, vector<1x16x16xf32>
    %37 = vector.shape_cast %36 : vector<1x16x16xf32> to vector<16x16xf32>
    %cst_26 = arith.constant dense<0.000000e+00> : vector<16x64xf32>
    %38 = tpu.matmul %37, %15, %cst_26 {dimension_numbers = #tpu.dot_dimension_numbers<[1], [0], [0], [1], [0, 0, 1, 1], [], []>} : vector<16x16xf32>, vector<16x64xf32>, vector<16x64xf32> -> vector<16x64xf32>
    %c2_27 = arith.constant 2 : index
    %c0_28 = arith.constant 0 : index
    %39 = vector.load %arg10[%c2_27, %c0_28] : memref<4x64xf32, #tpu.memory_space<vmem>>, vector<1x64xf32>
    %40 = vector.broadcast %39 : vector<1x64xf32> to vector<16x64xf32>
    %41 = arith.mulf %38, %40 : vector<16x64xf32>
    %42 = arith.addf %35, %41 : vector<16x64xf32>
    %c3 = arith.constant 3 : index
    %c0_29 = arith.constant 0 : index
    %c0_30 = arith.constant 0 : index
    %43 = vector.load %arg4[%c3, %c0_29, %c0_30] : memref<4x16x16xf32, #tpu.memory_space<vmem>>, vector<1x16x16xf32>
    %44 = vector.shape_cast %43 : vector<1x16x16xf32> to vector<16x16xf32>
    %cst_31 = arith.constant dense<0.000000e+00> : vector<16x64xf32>
    %45 = tpu.matmul %44, %15, %cst_31 {dimension_numbers = #tpu.dot_dimension_numbers<[1], [0], [0], [1], [0, 0, 1, 1], [], []>} : vector<16x16xf32>, vector<16x64xf32>, vector<16x64xf32> -> vector<16x64xf32>
    %c3_32 = arith.constant 3 : index
    %c0_33 = arith.constant 0 : index
    %46 = vector.load %arg10[%c3_32, %c0_33] : memref<4x64xf32, #tpu.memory_space<vmem>>, vector<1x64xf32>
    %47 = vector.broadcast %46 : vector<1x64xf32> to vector<16x64xf32>
    %48 = arith.mulf %45, %47 : vector<16x64xf32>
    %49 = arith.addf %42, %48 : vector<16x64xf32>
    %c0_34 = arith.constant 0 : index
    %c256 = arith.constant 256 : index
    %50 = vector.load %arg16[%c0_34, %c256] : memref<1x1024xf32, #tpu.memory_space<vmem>>, vector<1x64xf32>
    %51 = vector.broadcast %50 : vector<1x64xf32> to vector<16x64xf32>
    %52 = arith.addf %49, %51 : vector<16x64xf32>
    %cst_35 = arith.constant 0.000000e+00 : f32
    %53 = vector.broadcast %cst_35 : f32 to vector<16x64xf32>
    %54 = arith.subf %53, %52 : vector<16x64xf32>
    %55 = math.exp %54 : vector<16x64xf32>
    %cst_36 = arith.constant 1.000000e+00 : f32
    %56 = vector.broadcast %cst_36 : f32 to vector<16x64xf32>
    %57 = arith.addf %56, %55 : vector<16x64xf32>
    %cst_37 = arith.constant 1.000000e+00 : f32
    %58 = vector.broadcast %cst_37 : f32 to vector<16x64xf32>
    %59 = arith.divf %58, %57 : vector<16x64xf32>
    %60 = arith.mulf %52, %59 : vector<16x64xf32>
    %c0_38 = arith.constant 0 : index
    %c0_39 = arith.constant 0 : index
    %61 = vector.load %arg11[%c0_38, %c0_39] : memref<64x64xf32, #tpu.memory_space<vmem>>, vector<64x64xf32>
    %cst_40 = arith.constant dense<0.000000e+00> : vector<16x64xf32>
    %62 = tpu.matmul %60, %61, %cst_40 {dimension_numbers = #tpu.dot_dimension_numbers<[1], [0], [0], [1], [0, 0, 1, 1], [], []>} : vector<16x64xf32>, vector<64x64xf32>, vector<16x64xf32> -> vector<16x64xf32>
    %c0_41 = arith.constant 0 : index
    %c384 = arith.constant 384 : index
    %63 = vector.load %arg16[%c0_41, %c384] : memref<1x1024xf32, #tpu.memory_space<vmem>>, vector<1x64xf32>
    %64 = vector.broadcast %63 : vector<1x64xf32> to vector<16x64xf32>
    %65 = arith.addf %62, %64 : vector<16x64xf32>
    %cst_42 = arith.constant 2.000000e+01 : f32
    %66 = vector.broadcast %cst_42 : f32 to vector<16x64xf32>
    %67 = arith.cmpf ogt, %65, %66 : vector<16x64xf32>
    %cst_43 = arith.constant 2.000000e+01 : f32
    %68 = vector.broadcast %cst_43 : f32 to vector<16x64xf32>
    %69 = arith.minimumf %65, %68 : vector<16x64xf32>
    %70 = math.exp %69 : vector<16x64xf32>
    %cst_44 = arith.constant 1.000000e+00 : f32
    %71 = vector.broadcast %cst_44 : f32 to vector<16x64xf32>
    %72 = arith.addf %71, %70 : vector<16x64xf32>
    %73 = math.log %72 : vector<16x64xf32>
    %74 = arith.select %67, %65, %73 : vector<16x64xi1>, vector<16x64xf32>
    %c0_45 = arith.constant 0 : index
    %c0_46 = arith.constant 0 : index
    %75 = vector.load %arg12[%c0_45, %c0_46] : memref<64x16xf32, #tpu.memory_space<vmem>>, vector<64x16xf32>
    %cst_47 = arith.constant dense<0.000000e+00> : vector<16x16xf32>
    %76 = tpu.matmul %60, %75, %cst_47 {dimension_numbers = #tpu.dot_dimension_numbers<[1], [0], [0], [1], [0, 0, 1, 1], [], []>} : vector<16x64xf32>, vector<64x16xf32>, vector<16x16xf32> -> vector<16x16xf32>
    %c0_48 = arith.constant 0 : index
    %c512 = arith.constant 512 : index
    %77 = vector.load %arg16[%c0_48, %c512] : memref<1x1024xf32, #tpu.memory_space<vmem>>, vector<1x16xf32>
    %78 = vector.broadcast %77 : vector<1x16xf32> to vector<16x16xf32>
    %79 = arith.addf %76, %78 : vector<16x16xf32>
    %c0_49 = arith.constant 0 : index
    %c0_50 = arith.constant 0 : index
    %80 = vector.load %arg13[%c0_49, %c0_50] : memref<64x16xf32, #tpu.memory_space<vmem>>, vector<64x16xf32>
    %cst_51 = arith.constant dense<0.000000e+00> : vector<16x16xf32>
    %81 = tpu.matmul %60, %80, %cst_51 {dimension_numbers = #tpu.dot_dimension_numbers<[1], [0], [0], [1], [0, 0, 1, 1], [], []>} : vector<16x64xf32>, vector<64x16xf32>, vector<16x16xf32> -> vector<16x16xf32>
    %c0_52 = arith.constant 0 : index
    %c640 = arith.constant 640 : index
    %82 = vector.load %arg16[%c0_52, %c640] : memref<1x1024xf32, #tpu.memory_space<vmem>>, vector<1x16xf32>
    %83 = vector.broadcast %82 : vector<1x16xf32> to vector<16x16xf32>
    %84 = arith.addf %81, %83 : vector<16x16xf32>
    %c0_53 = arith.constant 0 : index
    %c0_54 = arith.constant 0 : index
    %85 = vector.load %arg5[%c0_53, %c0_54] : memref<64x1024xf32, #tpu.memory_space<vmem>>, vector<64x1024xf32>
    %cst_55 = arith.constant dense<0.000000e+00> : vector<16x1024xf32>
    %86 = tpu.matmul %60, %85, %cst_55 {dimension_numbers = #tpu.dot_dimension_numbers<[1], [0], [0], [1], [0, 0, 1, 1], [], []>} : vector<16x64xf32>, vector<64x1024xf32>, vector<16x1024xf32> -> vector<16x1024xf32>
    %c0_56 = arith.constant 0 : index
    %c0_57 = arith.constant 0 : index
    %87 = vector.load %arg6[%c0_56, %c0_57] : memref<16x1024xf32, #tpu.memory_space<vmem>>, vector<16x1024xf32>
    %cst_58 = arith.constant dense<0.000000e+00> : vector<16x1024xf32>
    %88 = tpu.matmul %79, %87, %cst_58 {dimension_numbers = #tpu.dot_dimension_numbers<[1], [0], [0], [1], [0, 0, 1, 1], [], []>} : vector<16x16xf32>, vector<16x1024xf32>, vector<16x1024xf32> -> vector<16x1024xf32>
    %89 = arith.mulf %86, %88 : vector<16x1024xf32>
    %c0_59 = arith.constant 0 : index
    %c0_60 = arith.constant 0 : index
    %90 = vector.load %arg5[%c0_59, %c0_60] : memref<64x1024xf32, #tpu.memory_space<vmem>>, vector<64x1024xf32>
    %cst_61 = arith.constant dense<0.000000e+00> : vector<16x1024xf32>
    %91 = tpu.matmul %74, %90, %cst_61 {dimension_numbers = #tpu.dot_dimension_numbers<[1], [0], [0], [1], [0, 0, 1, 1], [], []>} : vector<16x64xf32>, vector<64x1024xf32>, vector<16x1024xf32> -> vector<16x1024xf32>
    %92 = arith.mulf %89, %91 : vector<16x1024xf32>
    %c0_62 = arith.constant 0 : index
    %c0_63 = arith.constant 0 : index
    %93 = vector.load %arg14[%c0_62, %c0_63] : memref<1x1024xf32, #tpu.memory_space<vmem>>, vector<1x1024xf32>
    %94 = vector.broadcast %93 : vector<1x1024xf32> to vector<16x1024xf32>
    %95 = arith.mulf %91, %94 : vector<16x1024xf32>
    %c0_64 = arith.constant 0 : index
    %c0_65 = arith.constant 0 : index
    %96 = vector.load %arg3[%c0_64, %c0_65] : memref<16x16xf32, #tpu.memory_space<vmem>>, vector<16x16xf32>
    %cst_66 = arith.constant dense<0.000000e+00> : vector<16x1024xf32>
    %97 = tpu.matmul %96, %95, %cst_66 {dimension_numbers = #tpu.dot_dimension_numbers<[1], [0], [0], [1], [0, 0, 1, 1], [], []>} : vector<16x16xf32>, vector<16x1024xf32>, vector<16x1024xf32> -> vector<16x1024xf32>
    %98 = arith.subf %95, %97 : vector<16x1024xf32>
    %cst_67 = arith.constant 23.0258503 : f32
    %99 = vector.broadcast %cst_67 : f32 to vector<16x1024xf32>
    %100 = arith.minimumf %98, %99 : vector<16x1024xf32>
    %101 = math.exp %100 : vector<16x1024xf32>
    %102 = arith.mulf %92, %101 : vector<16x1024xf32>
    %c0_68 = arith.constant 0 : index
    %c0_69 = arith.constant 0 : index
    %103 = vector.load %arg3[%c0_68, %c0_69] : memref<16x16xf32, #tpu.memory_space<vmem>>, vector<16x16xf32>
    %cst_70 = arith.constant dense<0.000000e+00> : vector<16x1024xf32>
    %104 = tpu.matmul %103, %102, %cst_70 {dimension_numbers = #tpu.dot_dimension_numbers<[1], [0], [0], [1], [0, 0, 1, 1], [], []>} : vector<16x16xf32>, vector<16x1024xf32>, vector<16x1024xf32> -> vector<16x1024xf32>
    %cst_71 = arith.constant 0.000000e+00 : f32
    %105 = vector.broadcast %cst_71 : f32 to vector<16x1024xf32>
    %106 = arith.subf %105, %98 : vector<16x1024xf32>
    %107 = math.exp %106 : vector<16x1024xf32>
    %108 = arith.mulf %104, %107 : vector<16x1024xf32>
    %c0_72 = arith.constant 0 : index
    %c0_73 = arith.constant 0 : index
    %109 = vector.load %arg2[%c0_72, %c0_73] : memref<16x1024xf32, #tpu.memory_space<vmem>>, vector<16x1024xf32>
    %110 = math.exp %97 : vector<16x1024xf32>
    %111 = arith.mulf %109, %110 : vector<16x1024xf32>
    %112 = arith.addf %108, %111 : vector<16x1024xf32>
    %c0_74 = arith.constant 0 : index
    %c0_75 = arith.constant 0 : index
    %113 = vector.load %arg7[%c0_74, %c0_75] : memref<2x16xf32, #tpu.memory_space<vmem>>, vector<2x16xf32>
    %cst_76 = arith.constant dense<0.000000e+00> : vector<2x1024xf32>
    %114 = tpu.matmul %113, %112, %cst_76 {dimension_numbers = #tpu.dot_dimension_numbers<[1], [0], [0], [1], [0, 0, 1, 1], [], []>} : vector<2x16xf32>, vector<16x1024xf32>, vector<2x1024xf32> -> vector<2x1024xf32>
    %c0_77 = arith.constant 0 : index
    %c0_78 = arith.constant 0 : index
    %115 = vector.load %arg18[%c0_77, %c0_78] : memref<2x1024xf32, #tpu.memory_space<vmem>>, vector<2x1024xf32>
    tpu.vector_store %arg18[%c0_77, %c0_78], %114 {strides = array<i32>} : memref<2x1024xf32, #tpu.memory_space<vmem>>, vector<2x1024xf32>,
    %c0_79 = arith.constant 0 : index
    %c0_80 = arith.constant 0 : index
    %116 = vector.load %arg6[%c0_79, %c0_80] : memref<16x1024xf32, #tpu.memory_space<vmem>>, vector<16x1024xf32>
    %cst_81 = arith.constant dense<0.000000e+00> : vector<16x1024xf32>
    %117 = tpu.matmul %84, %116, %cst_81 {dimension_numbers = #tpu.dot_dimension_numbers<[1], [0], [0], [1], [0, 0, 1, 1], [], []>} : vector<16x16xf32>, vector<16x1024xf32>, vector<16x1024xf32> -> vector<16x1024xf32>
    %118 = arith.mulf %112, %117 : vector<16x1024xf32>
    %c0_82 = arith.constant 0 : index
    %c0_83 = arith.constant 0 : index
    %119 = vector.load %arg5[%c0_82, %c0_83] : memref<64x1024xf32, #tpu.memory_space<vmem>>, vector<64x1024xf32>
    %cst_84 = arith.constant dense<0.000000e+00> : vector<16x64xf32>
    %120 = tpu.matmul %118, %119, %cst_84 {dimension_numbers = #tpu.dot_dimension_numbers<[1], [1], [0], [0], [0, 0, 1, 0], [], []>} : vector<16x1024xf32>, vector<64x1024xf32>, vector<16x64xf32> -> vector<16x64xf32>
    %c0_85 = arith.constant 0 : index
    %c768 = arith.constant 768 : index
    %121 = vector.load %arg16[%c0_85, %c768] : memref<1x1024xf32, #tpu.memory_space<vmem>>, vector<1x64xf32>
    %122 = vector.broadcast %121 : vector<1x64xf32> to vector<16x64xf32>
    %123 = arith.mulf %60, %122 : vector<16x64xf32>
    %124 = arith.addf %120, %123 : vector<16x64xf32>
    %cst_86 = arith.constant 0.000000e+00 : f32
    %125 = vector.broadcast %cst_86 : f32 to vector<16x64xf32>
    %126 = arith.subf %125, %20 : vector<16x64xf32>
    %127 = math.exp %126 : vector<16x64xf32>
    %cst_87 = arith.constant 1.000000e+00 : f32
    %128 = vector.broadcast %cst_87 : f32 to vector<16x64xf32>
    %129 = arith.addf %128, %127 : vector<16x64xf32>
    %cst_88 = arith.constant 1.000000e+00 : f32
    %130 = vector.broadcast %cst_88 : f32 to vector<16x64xf32>
    %131 = arith.divf %130, %129 : vector<16x64xf32>
    %132 = arith.mulf %20, %131 : vector<16x64xf32>
    %133 = arith.mulf %124, %132 : vector<16x64xf32>
    %c0_89 = arith.constant 0 : index
    %c0_90 = arith.constant 0 : index
    %134 = vector.load %arg15[%c0_89, %c0_90] : memref<64x32xf32, #tpu.memory_space<vmem>>, vector<64x32xf32>
    %cst_91 = arith.constant dense<0.000000e+00> : vector<16x32xf32>
    %135 = tpu.matmul %133, %134, %cst_91 {dimension_numbers = #tpu.dot_dimension_numbers<[1], [0], [0], [1], [0, 0, 1, 1], [], []>} : vector<16x64xf32>, vector<64x32xf32>, vector<16x32xf32> -> vector<16x32xf32>
    %136 = arith.addf %0, %135 : vector<16x32xf32>
    %c0_92 = arith.constant 0 : index
    %c896 = arith.constant 896 : index
    %137 = vector.load %arg16[%c0_92, %c896] : memref<1x1024xf32, #tpu.memory_space<vmem>>, vector<1x32xf32>
    %138 = vector.broadcast %137 : vector<1x32xf32> to vector<16x32xf32>
    %139 = arith.addf %136, %138 : vector<16x32xf32>
    %c0_93 = arith.constant 0 : index
    %c0_94 = arith.constant 0 : index
    %140 = vector.load %arg17[%c0_93, %c0_94] : memref<16x32xf32, #tpu.memory_space<vmem>>, vector<16x32xf32>
    tpu.vector_store %arg17[%c0_93, %c0_94], %139 {strides = array<i32>} : memref<16x32xf32, #tpu.memory_space<vmem>>, vector<16x32xf32>,
    return
  }
  func.func @transform_0(%arg0: i32) -> (i32, i32) {
    %c0_i32 = arith.constant 0 : i32
    %c0_i32_0 = arith.constant 0 : i32
    %c0_i32_1 = arith.constant 0 : i32
    return %c0_i32, %c0_i32_0 : i32, i32
  }
  func.func @transform_1(%arg0: i32) -> (i32, i32) {
    %c0_i32 = arith.constant 0 : i32
    %c0_i32_0 = arith.constant 0 : i32
    %c0_i32_1 = arith.constant 0 : i32
    return %c0_i32, %c0_i32_0 : i32, i32
  }
  func.func @transform_2(%arg0: i32) -> (i32, i32) {
    %c0_i32 = arith.constant 0 : i32
    %c0_i32_0 = arith.constant 0 : i32
    %c0_i32_1 = arith.constant 0 : i32
    return %c0_i32, %c0_i32_0 : i32, i32
  }
  func.func @transform_3(%arg0: i32) -> (i32, i32, i32) {
    %c0_i32 = arith.constant 0 : i32
    %c0_i32_0 = arith.constant 0 : i32
    %c0_i32_1 = arith.constant 0 : i32
    %c0_i32_2 = arith.constant 0 : i32
    return %c0_i32, %c0_i32_0, %c0_i32_1 : i32, i32, i32
  }
  func.func @transform_4(%arg0: i32) -> (i32, i32) {
    %c0_i32 = arith.constant 0 : i32
    %c0_i32_0 = arith.constant 0 : i32
    %c0_i32_1 = arith.constant 0 : i32
    return %c0_i32, %c0_i32_0 : i32, i32
  }
  func.func @transform_5(%arg0: i32) -> (i32, i32) {
    %c0_i32 = arith.constant 0 : i32
    %c0_i32_0 = arith.constant 0 : i32
    %c0_i32_1 = arith.constant 0 : i32
    return %c0_i32, %c0_i32_0 : i32, i32
  }
  func.func @transform_6(%arg0: i32) -> (i32, i32) {
    %c0_i32 = arith.constant 0 : i32
    %c0_i32_0 = arith.constant 0 : i32
    %c0_i32_1 = arith.constant 0 : i32
    return %c0_i32, %c0_i32_0 : i32, i32
  }
  func.func @transform_7(%arg0: i32) -> (i32, i32) {
    %c0_i32 = arith.constant 0 : i32
    %c0_i32_0 = arith.constant 0 : i32
    %c0_i32_1 = arith.constant 0 : i32
    return %c0_i32, %c0_i32_0 : i32, i32
  }
  func.func @transform_8(%arg0: i32) -> (i32, i32) {
    %c0_i32 = arith.constant 0 : i32
    %c0_i32_0 = arith.constant 0 : i32
    %c0_i32_1 = arith.constant 0 : i32
    return %c0_i32, %c0_i32_0 : i32, i32
  }
  func.func @transform_9(%arg0: i32) -> (i32, i32) {
    %c0_i32 = arith.constant 0 : i32
    %c0_i32_0 = arith.constant 0 : i32
    %c0_i32_1 = arith.constant 0 : i32
    return %c0_i32, %c0_i32_0 : i32, i32
  }
  func.func @transform_10(%arg0: i32) -> (i32, i32) {
    %c0_i32 = arith.constant 0 : i32
    %c0_i32_0 = arith.constant 0 : i32
    %c0_i32_1 = arith.constant 0 : i32
    return %c0_i32, %c0_i32_0 : i32, i32
  }
  func.func @transform_11(%arg0: i32) -> (i32, i32) {
    %c0_i32 = arith.constant 0 : i32
    %c0_i32_0 = arith.constant 0 : i32
    %c0_i32_1 = arith.constant 0 : i32
    return %c0_i32, %c0_i32_0 : i32, i32
  }
  func.func @transform_12(%arg0: i32) -> (i32, i32) {
    %c0_i32 = arith.constant 0 : i32
    %c0_i32_0 = arith.constant 0 : i32
    %c0_i32_1 = arith.constant 0 : i32
    return %c0_i32, %c0_i32_0 : i32, i32
  }
  func.func @transform_13(%arg0: i32) -> (i32, i32) {
    %c0_i32 = arith.constant 0 : i32
    %c0_i32_0 = arith.constant 0 : i32
    %c0_i32_1 = arith.constant 0 : i32
    return %c0_i32, %c0_i32_0 : i32, i32
  }
  func.func @transform_14(%arg0: i32) -> (i32, i32) {
    %c0_i32 = arith.constant 0 : i32
    %c0_i32_0 = arith.constant 0 : i32
    %c0_i32_1 = arith.constant 0 : i32
    return %c0_i32, %c0_i32_0 : i32, i32
  }
  func.func @transform_15(%arg0: i32) -> (i32, i32) {
    %c0_i32 = arith.constant 0 : i32
    %c0_i32_0 = arith.constant 0 : i32
    %c0_i32_1 = arith.constant 0 : i32
    return %c0_i32, %c0_i32_0 : i32, i32
  }
  func.func @transform_16(%arg0: i32) -> (i32, i32) {
    %c0_i32 = arith.constant 0 : i32
    %c0_i32_0 = arith.constant 0 : i32
    %c0_i32_1 = arith.constant 0 : i32
    return %c0_i32, %c0_i32_0 : i32, i32
  }
  func.func @transform_17(%arg0: i32) -> (i32, i32) {
    %c0_i32 = arith.constant 0 : i32
    %c0_i32_0 = arith.constant 0 : i32
    %c0_i32_1 = arith.constant 0 : i32
    return %c0_i32, %c0_i32_0 : i32, i32
  }
}

</mosaic_0001>

<llo_original>
// kernel: tpu_custom_call.1
$region0: #{tpu_custom_call.1}
  #allocation0 [shape = 'u32[]', space=smem, size = 0x4, offset = 0x4, fixed_abs, tag = 'smem constant byte address 0x4 - core index']
  #allocation1 [shape = 'u32[72,128]{1,0:T(1,128)}', space=vmem, size = 0x9000, scoped, tag = 'internal scratch']
  %s0 = inlined_call_operand.vmem [shape: f32[16,32], index: 0, kind: input, shape index: {}]
  %s1 = inlined_call_operand.vmem [shape: f32[16,1024], index: 1, kind: input, shape index: {}]
  %s2 = inlined_call_operand.hbm [shape: f32[16,16], index: 2, kind: input, shape index: {}]
  %s3 = inlined_call_operand.vmem [shape: f32[4,16,16], index: 3, kind: input, shape index: {}]
  %s4 = inlined_call_operand.hbm [shape: f32[64,1024], index: 4, kind: input, shape index: {}]
  %s5 = inlined_call_operand.hbm [shape: f32[16,1024], index: 5, kind: input, shape index: {}]
  %s6 = inlined_call_operand.hbm [shape: f32[2,16], index: 6, kind: input, shape index: {}]
  %s7 = inlined_call_operand.hbm [shape: f32[32,64], index: 7, kind: input, shape index: {}]
  %s8 = inlined_call_operand.hbm [shape: f32[32,64], index: 8, kind: input, shape index: {}]
  %s9 = inlined_call_operand.hbm [shape: f32[4,64], index: 9, kind: input, shape index: {}]
  %s10 = inlined_call_operand.hbm [shape: f32[64,64], index: 10, kind: input, shape index: {}]
  %s11 = inlined_call_operand.vmem [shape: f32[64,16], index: 11, kind: input, shape index: {}]
  %s12 = inlined_call_operand.vmem [shape: f32[64,16], index: 12, kind: input, shape index: {}]
  %s13 = inlined_call_operand.vmem [shape: f32[1,1024], index: 13, kind: input, shape index: {}]
  %s14 = inlined_call_operand.vmem [shape: f32[64,32], index: 14, kind: input, shape index: {}]
  %s15 = inlined_call_operand.hbm [shape: f32[1,1024], index: 15, kind: input, shape index: {}]
  %s16 = inlined_call_operand.hbm [shape: f32[16,32], index: 16, kind: output, shape index: {0}]
  %s17 = inlined_call_operand.hbm [shape: f32[2,1024], index: 17, kind: output, shape index: {1}]
  %18 = xla_tuple %s16, %s17
  %s19 = sld [smem:[#allocation0]]
  $region118: #{tpu_custom_call.1} parent=0
    _
  %s21 = ssub.s32 1, %s19
  %s22 = scalar_select 0, %s21, %s19
  $region1: #{tpu_custom_call.1} parent=0
    #allocation2 [shape = 'u8[8192]{0}', space=vmem, size = 0x2000, scoped, tag = 'input window, operand 2, single buffered']
    #allocation3 [shape = 's32[1]{0}', space=sflag, size = 0x4, scoped, tag = 'scoped memory for tpu_custom_call.1']
    #allocation4 [shape = 's32[1]{0}', space=sflag, size = 0x4, scoped, tag = 'scoped memory for tpu_custom_call.1']
    #allocation5 [shape = 'u8[262144]{0}', space=vmem, size = 0x40000, scoped, tag = 'input window, operand 4, single buffered']
    #allocation6 [shape = 's32[1]{0}', space=sflag, size = 0x4, scoped, tag = 'scoped memory for tpu_custom_call.1']
    #allocation7 [shape = 'u8[65536]{0}', space=vmem, size = 0x10000, scoped, tag = 'input window, operand 5, single buffered']
    #allocation8 [shape = 'u8[1024]{0}', space=vmem, size = 0x400, scoped, tag = 'input window, operand 6, single buffered']
    #allocation9 [shape = 's32[1]{0}', space=sflag, size = 0x4, scoped, tag = 'scoped memory for tpu_custom_call.1']
    #allocation10 [shape = 'u8[16384]{0}', space=vmem, size = 0x4000, scoped, tag = 'input window, operand 7, single buffered']
    #allocation11 [shape = 'u8[16384]{0}', space=vmem, size = 0x4000, scoped, tag = 'input window, operand 8, single buffered']
    #allocation12 [shape = 's32[1]{0}', space=sflag, size = 0x4, scoped, tag = 'scoped memory for tpu_custom_call.1']
    #allocation13 [shape = 'u8[2048]{0}', space=vmem, size = 0x800, scoped, tag = 'input window, operand 9, single buffered']
    #allocation14 [shape = 'u8[32768]{0}', space=vmem, size = 0x8000, scoped, tag = 'input window, operand 10, single buffered']
    #allocation15 [shape = 's32[1]{0}', space=sflag, size = 0x4, scoped, tag = 'scoped memory for tpu_custom_call.1']
    #allocation16 [shape = 'u8[4096]{0}', space=vmem, size = 0x1000, scoped, tag = 'input window, operand 15, single buffered']
    #allocation17 [shape = 'u8[8192]{0}', space=vmem, size = 0x2000, scoped, tag = 'output window, operand 0, single buffered']
    #allocation18 [shape = 'u8[8192]{0}', space=vmem, size = 0x2000, scoped, tag = 'output window, operand 1, single buffered']
    #allocation19 [shape = 's32[1]{0}', space=sflag, size = 0x4, scoped, tag = 'scoped memory for tpu_custom_call.1']
    %23 = vsyncpa [#allocation3], 0
    %24 = vsyncpa [#allocation6], 0
    %25 = vsyncpa [#allocation9], 0
    %26 = vsyncpa [#allocation12], 0
    %27 = vsyncpa [#allocation15], 0
    %28 = vsyncpa [#allocation4], 0
    %29 = vsyncpa [#allocation19], 0
    // Predicated region
    $region2: #{tpu_custom_call.1} parent=1 // pred_check
      _
    $region3: #{tpu_custom_call.1} parent=1 // pred_check_branch
      %31 = sbr.rel (0) target = $region5
    $region4: #{tpu_custom_call.1} parent=1 // pred_region
      _
    $region5: #{tpu_custom_call.1} parent=1 // pred_fallthru
      _
    // Predicated region
    $region6: #{tpu_custom_call.1} parent=1 // pred_check
      _
    $region7: #{tpu_custom_call.1} parent=1 // pred_check_branch
      %33 = sbr.rel (0) target = $region9
    $region8: #{tpu_custom_call.1} parent=1 // pred_region
      _
    $region9: #{tpu_custom_call.1} parent=1 // pred_fallthru
      _
    // Predicated region
    $region10: #{tpu_custom_call.1} parent=1 // pred_check
      _
    $region11: #{tpu_custom_call.1} parent=1 // pred_check_branch
      %35 = sbr.rel (0) target = $region13
    $region12: #{tpu_custom_call.1} parent=1 // pred_region
      %37 = vsyncadd [#allocation3], 0
      %s38 = sshll.u32 %s2, 4
      %s39 = int_to_ptr.hbm [resolvable:$true] %s38
      %s40 = sshll.u32 [#allocation2], 4
      %s41 = int_to_ptr.vmem [resolvable:$true] %s40
      %46 = dma.hbm_to_vmem [thread:$0]  %s39, 256, %s41, [#allocation3], 128, 128, 8
    $region13: #{tpu_custom_call.1} parent=1 // pred_fallthru
      _
    // Predicated region
    $region14: #{tpu_custom_call.1} parent=1 // pred_check
      _
    $region15: #{tpu_custom_call.1} parent=1 // pred_check_branch
      %48 = sbr.rel (0) target = $region17
    $region16: #{tpu_custom_call.1} parent=1 // pred_region
      _
    $region17: #{tpu_custom_call.1} parent=1 // pred_fallthru
      _
    // Predicated region
    $region18: #{tpu_custom_call.1} parent=1 // pred_check
      _
    $region19: #{tpu_custom_call.1} parent=1 // pred_check_branch
      %50 = sbr.rel (0) target = $region21
    $region20: #{tpu_custom_call.1} parent=1 // pred_region
      %52 = vsyncadd [#allocation6], 0
      %s53 = sshll.u32 %s4, 4
      %s54 = int_to_ptr.hbm [resolvable:$true] %s53
      %s55 = sshll.u32 [#allocation5], 4
      %s56 = int_to_ptr.vmem [resolvable:$true] %s55
      %61 = dma.hbm_to_vmem [thread:$0]  %s54, 8192, %s56, [#allocation6], 1024, 1024, 64
    $region21: #{tpu_custom_call.1} parent=1 // pred_fallthru
      _
    // Predicated region
    $region22: #{tpu_custom_call.1} parent=1 // pred_check
      _
    $region23: #{tpu_custom_call.1} parent=1 // pred_check_branch
      %63 = sbr.rel (0) target = $region25
    $region24: #{tpu_custom_call.1} parent=1 // pred_region
      %65 = vsyncadd [#allocation6], 0
      %s66 = sshll.u32 %s5, 4
      %s67 = int_to_ptr.hbm [resolvable:$true] %s66
      %s68 = sshll.u32 [#allocation7], 4
      %s69 = int_to_ptr.vmem [resolvable:$true] %s68
      %74 = dma.hbm_to_vmem [thread:$0]  %s67, 2048, %s69, [#allocation6], 1024, 1024, 64
    $region25: #{tpu_custom_call.1} parent=1 // pred_fallthru
      _
    // Predicated region
    $region26: #{tpu_custom_call.1} parent=1 // pred_check
      _
    $region27: #{tpu_custom_call.1} parent=1 // pred_check_branch
      %76 = sbr.rel (0) target = $region29
    $region28: #{tpu_custom_call.1} parent=1 // pred_region
      %78 = vsyncadd [#allocation9], 0
      %s80 = sshll.u32 %s6, 4
      %s81 = int_to_ptr.hbm [resolvable:$true] %s80
      %s82 = sshll.u32 [#allocation8], 4
      %s83 = int_to_ptr.vmem [resolvable:$true] %s82
      %85 = dma.hbm_to_vmem [thread:$0]  %s81, 32, %s83, [#allocation9]
    $region29: #{tpu_custom_call.1} parent=1 // pred_fallthru
      _
    // Predicated region
    $region30: #{tpu_custom_call.1} parent=1 // pred_check
      _
    $region31: #{tpu_custom_call.1} parent=1 // pred_check_branch
      %87 = sbr.rel (0) target = $region33
    $region32: #{tpu_custom_call.1} parent=1 // pred_region
      %89 = vsyncadd [#allocation9], 0
      %s90 = sshll.u32 %s7, 4
      %s91 = int_to_ptr.hbm [resolvable:$true] %s90
      %s92 = sshll.u32 [#allocation10], 4
      %s93 = int_to_ptr.vmem [resolvable:$true] %s92
      %98 = dma.hbm_to_vmem [thread:$0]  %s91, 512, %s93, [#allocation9], 128, 128, 8
    $region33: #{tpu_custom_call.1} parent=1 // pred_fallthru
      _
    // Predicated region
    $region34: #{tpu_custom_call.1} parent=1 // pred_check
      _
    $region35: #{tpu_custom_call.1} parent=1 // pred_check_branch
      %100 = sbr.rel (0) target = $region37
    $region36: #{tpu_custom_call.1} parent=1 // pred_region
      %102 = vsyncadd [#allocation12], 0
      %s103 = sshll.u32 %s8, 4
      %s104 = int_to_ptr.hbm [resolvable:$true] %s103
      %s105 = sshll.u32 [#allocation11], 4
      %s106 = int_to_ptr.vmem [resolvable:$true] %s105
      %111 = dma.hbm_to_vmem [thread:$0]  %s104, 512, %s106, [#allocation12], 128, 128, 8
    $region37: #{tpu_custom_call.1} parent=1 // pred_fallthru
      _
    // Predicated region
    $region38: #{tpu_custom_call.1} parent=1 // pred_check
      _
    $region39: #{tpu_custom_call.1} parent=1 // pred_check_branch
      %113 = sbr.rel (0) target = $region41
    $region40: #{tpu_custom_call.1} parent=1 // pred_region
      %115 = vsyncadd [#allocation12], 0
      %s117 = sshll.u32 %s9, 4
      %s118 = int_to_ptr.hbm [resolvable:$true] %s117
      %s119 = sshll.u32 [#allocation13], 4
      %s120 = int_to_ptr.vmem [resolvable:$true] %s119
      %122 = dma.hbm_to_vmem [thread:$0]  %s118, 64, %s120, [#allocation12]
    $region41: #{tpu_custom_call.1} parent=1 // pred_fallthru
      _
    // Predicated region
    $region42: #{tpu_custom_call.1} parent=1 // pred_check
      _
    $region43: #{tpu_custom_call.1} parent=1 // pred_check_branch
      %124 = sbr.rel (0) target = $region45
    $region44: #{tpu_custom_call.1} parent=1 // pred_region
      %126 = vsyncadd [#allocation15], 0
      %s127 = sshll.u32 %s10, 4
      %s128 = int_to_ptr.hbm [resolvable:$true] %s127
      %s129 = sshll.u32 [#allocation14], 4
      %s130 = int_to_ptr.vmem [resolvable:$true] %s129
      %135 = dma.hbm_to_vmem [thread:$0]  %s128, 1024, %s130, [#allocation15], 128, 128, 8
    $region45: #{tpu_custom_call.1} parent=1 // pred_fallthru
      _
    // Predicated region
    $region46: #{tpu_custom_call.1} parent=1 // pred_check
      _
    $region47: #{tpu_custom_call.1} parent=1 // pred_check_branch
      %137 = sbr.rel (0) target = $region49
    $region48: #{tpu_custom_call.1} parent=1 // pred_region
      _
    $region49: #{tpu_custom_call.1} parent=1 // pred_fallthru
      _
    // Predicated region
    $region50: #{tpu_custom_call.1} parent=1 // pred_check
      _
    $region51: #{tpu_custom_call.1} parent=1 // pred_check_branch
      %139 = sbr.rel (0) target = $region53
    $region52: #{tpu_custom_call.1} parent=1 // pred_region
      _
    $region53: #{tpu_custom_call.1} parent=1 // pred_fallthru
      _
    // Predicated region
    $region54: #{tpu_custom_call.1} parent=1 // pred_check
      _
    $region55: #{tpu_custom_call.1} parent=1 // pred_check_branch
      %141 = sbr.rel (0) target = $region57
    $region56: #{tpu_custom_call.1} parent=1 // pred_region
      _
    $region57: #{tpu_custom_call.1} parent=1 // pred_fallthru
      _
    // Predicated region
    $region58: #{tpu_custom_call.1} parent=1 // pred_check
      _
    $region59: #{tpu_custom_call.1} parent=1 // pred_check_branch
      %143 = sbr.rel (0) target = $region61
    $region60: #{tpu_custom_call.1} parent=1 // pred_region
      _
    $region61: #{tpu_custom_call.1} parent=1 // pred_fallthru
      _
    // Predicated region
    $region62: #{tpu_custom_call.1} parent=1 // pred_check
      _
    $region63: #{tpu_custom_call.1} parent=1 // pred_check_branch
      %145 = sbr.rel (0) target = $region65
    $region64: #{tpu_custom_call.1} parent=1 // pred_region
      %147 = vsyncadd [#allocation15], 0
      %s149 = sshll.u32 %s15, 4
      %s150 = int_to_ptr.hbm [resolvable:$true] %s149
      %s151 = sshll.u32 [#allocation16], 4
      %s152 = int_to_ptr.vmem [resolvable:$true] %s151
      %154 = dma.hbm_to_vmem [thread:$0]  %s150, 128, %s152, [#allocation15]
    $region65: #{tpu_custom_call.1} parent=1 // pred_fallthru
      _
    // Predicated region
    $region66: #{tpu_custom_call.1} parent=1 // pred_check
      _
    $region67: #{tpu_custom_call.1} parent=1 // pred_check_branch
      %156 = sbr.rel (0) target = $region69
    $region68: #{tpu_custom_call.1} parent=1 // pred_region
      %158 = dma.done [#allocation3], 256
    $region69: #{tpu_custom_call.1} parent=1 // pred_fallthru
      _
    // Predicated region
    $region70: #{tpu_custom_call.1} parent=1 // pred_check
      _
    $region71: #{tpu_custom_call.1} parent=1 // pred_check_branch
      %160 = sbr.rel (0) target = $region73
    $region72: #{tpu_custom_call.1} parent=1 // pred_region
      %162 = dma.done [#allocation6], 8192
    $region73: #{tpu_custom_call.1} parent=1 // pred_fallthru
      _
    // Predicated region
    $region74: #{tpu_custom_call.1} parent=1 // pred_check
      _
    $region75: #{tpu_custom_call.1} parent=1 // pred_check_branch
      %164 = sbr.rel (0) target = $region77
    $region76: #{tpu_custom_call.1} parent=1 // pred_region
      %166 = dma.done [#allocation6], 2048
    $region77: #{tpu_custom_call.1} parent=1 // pred_fallthru
      _
    // Predicated region
    $region78: #{tpu_custom_call.1} parent=1 // pred_check
      _
    $region79: #{tpu_custom_call.1} parent=1 // pred_check_branch
      %168 = sbr.rel (0) target = $region81
    $region80: #{tpu_custom_call.1} parent=1 // pred_region
      %170 = dma.done [#allocation9], 32
    $region81: #{tpu_custom_call.1} parent=1 // pred_fallthru
      _
    // Predicated region
    $region82: #{tpu_custom_call.1} parent=1 // pred_check
      _
    $region83: #{tpu_custom_call.1} parent=1 // pred_check_branch
      %172 = sbr.rel (0) target = $region85
    $region84: #{tpu_custom_call.1} parent=1 // pred_region
      %174 = dma.done [#allocation9], 512
    $region85: #{tpu_custom_call.1} parent=1 // pred_fallthru
      _
    // Predicated region
    $region86: #{tpu_custom_call.1} parent=1 // pred_check
      _
    $region87: #{tpu_custom_call.1} parent=1 // pred_check_branch
      %176 = sbr.rel (0) target = $region89
    $region88: #{tpu_custom_call.1} parent=1 // pred_region
      %178 = dma.done [#allocation12], 512
    $region89: #{tpu_custom_call.1} parent=1 // pred_fallthru
      _
    // Predicated region
    $region90: #{tpu_custom_call.1} parent=1 // pred_check
      _
    $region91: #{tpu_custom_call.1} parent=1 // pred_check_branch
      %180 = sbr.rel (0) target = $region93
    $region92: #{tpu_custom_call.1} parent=1 // pred_region
      %182 = dma.done [#allocation12], 64
    $region93: #{tpu_custom_call.1} parent=1 // pred_fallthru
      _
    // Predicated region
    $region94: #{tpu_custom_call.1} parent=1 // pred_check
      _
    $region95: #{tpu_custom_call.1} parent=1 // pred_check_branch
      %184 = sbr.rel (0) target = $region97
    $region96: #{tpu_custom_call.1} parent=1 // pred_region
      %186 = dma.done [#allocation15], 1024
    $region97: #{tpu_custom_call.1} parent=1 // pred_fallthru
      _
    // Predicated region
    $region98: #{tpu_custom_call.1} parent=1 // pred_check
      _
    $region99: #{tpu_custom_call.1} parent=1 // pred_check_branch
      %188 = sbr.rel (0) target = $region101
    $region100: #{tpu_custom_call.1} parent=1 // pred_region
      %190 = dma.done [#allocation15], 128
    $region101: #{tpu_custom_call.1} parent=1 // pred_fallthru
      _
    %v191 = vld [vmem:[%s0] sm:$0xff]
    %v192 = vld [vmem:[%s0 + $0x8] sm:$0xff]
    %v193 = vmul.f32 %v191, %v191
    %v194 = vmul.f32 %v192, %v192
    %vm195 = vcmask 261120
    %v196 = vsel %vm195, %v193, 0.0
    %197 = vadd.xlane.f32.xlu0 %v196
    %v198 = vpop.xlane.xlu0 %197
    %v199 = vsel %vm195, %v194, 0.0
    %200 = vadd.xlane.f32.xlu0 %v199
    %v201 = vpop.xlane.xlu0 %200
    %v202 = vrcp.pop 32.0
    %v203 = vmul.f32 32.0, %v202
    %v204 = vsub.f32 1.0, %v203
    %v205 = vmul.f32 %v202, %v204
    %v206 = vadd.f32 %v202, %v205
    %vm207 = vweird.f32 %v202
    %v208 = vsel %vm207, %v202, %v206
    %v209 = vmul.f32 %v198, %v208
    %v210 = vmul.f32 %v201, %v208
    %v211 = vadd.f32 %v209, 1e-06
    %v212 = vadd.f32 %v210, 1e-06
    %v213 = vrsqrt.pop %v211
    %v214 = vmul.f32 %v213, %v211
    %v215 = vmul.f32 %v214, %v213
    %v216 = vmul.f32 0.5, %v215
    %v217 = vsub.f32 1.5, %v216
    %v218 = vmul.f32 %v213, %v217
    %vm219 = vweird.f32 %v211
    %vm220 = vweird.f32 %v213
    %vm221 = vmor %vm219, %vm220
    %v222 = vsel %vm221, %v213, %v218
    %v223 = vrsqrt.pop %v212
    %v224 = vmul.f32 %v223, %v212
    %v225 = vmul.f32 %v224, %v223
    %v226 = vmul.f32 0.5, %v225
    %v227 = vsub.f32 1.5, %v226
    %v228 = vmul.f32 %v223, %v227
    %vm229 = vweird.f32 %v212
    %vm230 = vweird.f32 %v223
    %vm231 = vmor %vm229, %vm230
    %v232 = vsel %vm231, %v223, %v228
    %v233 = vmul.f32 %v191, %v222
    %v234 = vmul.f32 %v192, %v232
    %v235 = vld [vmem:[#allocation10] sm:$0xff]
    %v236 = vld [vmem:[#allocation10 + $0x8] sm:$0xff]
    %v237 = vld [vmem:[#allocation10 + $0x10] sm:$0xff]
    %v238 = vld [vmem:[#allocation10 + $0x18] sm:$0xff]
    %v239 = vld [vmem:[#allocation16] sm:$0x1]
    %v241 = vperm.slane %v239, 0
    %v244 = vsel %vm195, %v233, 0
    %v247 = vsel %vm195, %v234, 0
    %249 = vmatpush.msra.mxu0 0.0
    %250 = vmatpush.msra.mxu0 0.0
    %251 = vmatpush.msra.mxu0 0.0
    %252 = vmatpush.msra.mxu0 0.0
    %253 = vmatpush.msra.mxu0 0.0
    %254 = vmatpush.msra.mxu0 0.0
    %255 = vmatpush.msra.mxu0 0.0
    %256 = vmatpush.msra.mxu0 0.0
    %257 = vmatpush.msra.mxu0 0.0
    %258 = vmatpush.msra.mxu0 0.0
    %259 = vmatpush.msra.mxu0 0.0
    %260 = vmatpush.msra.mxu0 0.0
    %261 = vmatpush.msra.mxu0 %v238
    %262 = vmatpush.msra.mxu0 %v237
    %263 = vmatpush.msra.mxu0 %v236
    %264 = vmatpush.msra.mxu0 %v235
    %265 = vmatmul.f32.gmra.mxu0 %v244
    %v266 = vpop.f32.mrf.mxu0
    %v267 = vadd.f32 %v241, %v266
    %268 = vmatmul.f32.gmra.mxu0 %v247
    %v269 = vpop.f32.mrf.mxu0
    %v270 = vadd.f32 %v241, %v269
    %271 = vdwg.mxu0
    %v272 = vld [vmem:[#allocation11] sm:$0xff]
    %v273 = vld [vmem:[#allocation11 + $0x8] sm:$0xff]
    %v274 = vld [vmem:[#allocation11 + $0x10] sm:$0xff]
    %v275 = vld [vmem:[#allocation11 + $0x18] sm:$0xff]
    %v276 = vld [vmem:[#allocation16 + $0x1] sm:$0x1]
    %v278 = vperm.slane %v276, 0
    %280 = vmatpush.msra.mxu0 0.0
    %281 = vmatpush.msra.mxu0 0.0
    %282 = vmatpush.msra.mxu0 0.0
    %283 = vmatpush.msra.mxu0 0.0
    %284 = vmatpush.msra.mxu0 0.0
    %285 = vmatpush.msra.mxu0 0.0
    %286 = vmatpush.msra.mxu0 0.0
    %287 = vmatpush.msra.mxu0 0.0
    %288 = vmatpush.msra.mxu0 0.0
    %289 = vmatpush.msra.mxu0 0.0
    %290 = vmatpush.msra.mxu0 0.0
    %291 = vmatpush.msra.mxu0 0.0
    %292 = vmatpush.msra.mxu0 %v275
    %293 = vmatpush.msra.mxu0 %v274
    %294 = vmatpush.msra.mxu0 %v273
    %295 = vmatpush.msra.mxu0 %v272
    %296 = vmatmul.f32.gmra.mxu0 %v244
    %v297 = vpop.f32.mrf.mxu0
    %v298 = vadd.f32 %v278, %v297
    %299 = vmatmul.f32.gmra.mxu0 %v247
    %v300 = vpop.f32.mrf.mxu0
    %v301 = vadd.f32 %v278, %v300
    %302 = vdwg.mxu0
    %v303 = vld [vmem:[%s3] sm:$0xff]
    %v304 = vld [vmem:[%s3 + $0x8] sm:$0xff]
    %vm305 = vcmask 130048
    %v307 = vsel %vm305, %v303, 0
    %v310 = vsel %vm305, %v304, 0
    %312 = vmatpush.msra.mxu0 0.0
    %313 = vmatpush.msra.mxu0 0.0
    %314 = vmatpush.msra.mxu0 0.0
    %315 = vmatpush.msra.mxu0 0.0
    %316 = vmatpush.msra.mxu0 0.0
    %317 = vmatpush.msra.mxu0 0.0
    %318 = vmatpush.msra.mxu0 0.0
    %319 = vmatpush.msra.mxu0 0.0
    %320 = vmatpush.msra.mxu0 0.0
    %321 = vmatpush.msra.mxu0 0.0
    %322 = vmatpush.msra.mxu0 0.0
    %323 = vmatpush.msra.mxu0 0.0
    %324 = vmatpush.msra.mxu0 0.0
    %325 = vmatpush.msra.mxu0 0.0
    %326 = vmatpush.msra.mxu0 %v270
    %327 = vmatpush.msra.mxu0 %v267
    %328 = vmatmul.f32.gmra.mxu0 %v307
    %v329 = vpop.f32.mrf.mxu0
    %v330 = vadd.f32 0.0, %v329
    %331 = vmatmul.f32.gmra.mxu0 %v310
    %v332 = vpop.f32.mrf.mxu0
    %v333 = vadd.f32 0.0, %v332
    %334 = vdwg.mxu0
    %v335 = vld [vmem:[#allocation13] sm:$0x1]
    %v336 = vperm.slane %v335, 0
    %v337 = vmul.f32 %v330, %v336
    %v338 = vmul.f32 %v333, %v336
    %v339 = vadd.f32 %v337, 0.0
    %v340 = vadd.f32 %v338, 0.0
    %s341 = scalar_lea.vmem %s3, 16
    %v342 = vld [vmem:[%s341] sm:$0xff]
    %v343 = vld [vmem:[%s341 + $0x8] sm:$0xff]
    %v345 = vsel %vm305, %v342, 0
    %v348 = vsel %vm305, %v343, 0
    %350 = vmatpush.msra.mxu0 0.0
    %351 = vmatpush.msra.mxu0 0.0
    %352 = vmatpush.msra.mxu0 0.0
    %353 = vmatpush.msra.mxu0 0.0
    %354 = vmatpush.msra.mxu0 0.0
    %355 = vmatpush.msra.mxu0 0.0
    %356 = vmatpush.msra.mxu0 0.0
    %357 = vmatpush.msra.mxu0 0.0
    %358 = vmatpush.msra.mxu0 0.0
    %359 = vmatpush.msra.mxu0 0.0
    %360 = vmatpush.msra.mxu0 0.0
    %361 = vmatpush.msra.mxu0 0.0
    %362 = vmatpush.msra.mxu0 0.0
    %363 = vmatpush.msra.mxu0 0.0
    %364 = vmatpush.msra.mxu0 %v270
    %365 = vmatpush.msra.mxu0 %v267
    %366 = vmatmul.f32.gmra.mxu0 %v345
    %v367 = vpop.f32.mrf.mxu0
    %v368 = vadd.f32 0.0, %v367
    %369 = vmatmul.f32.gmra.mxu0 %v348
    %v370 = vpop.f32.mrf.mxu0
    %v371 = vadd.f32 0.0, %v370
    %372 = vdwg.mxu0
    %v373 = vld [vmem:[#allocation13 + $0x1] sm:$0x1]
    %v374 = vperm.slane %v373, 0
    %v375 = vmul.f32 %v368, %v374
    %v376 = vmul.f32 %v371, %v374
    %v377 = vadd.f32 %v339, %v375
    %v378 = vadd.f32 %v340, %v376
    %s379 = scalar_lea.vmem %s3, 32
    %v380 = vld [vmem:[%s379] sm:$0xff]
    %v381 = vld [vmem:[%s379 + $0x8] sm:$0xff]
    %v383 = vsel %vm305, %v380, 0
    %v386 = vsel %vm305, %v381, 0
    %388 = vmatpush.msra.mxu0 0.0
    %389 = vmatpush.msra.mxu0 0.0
    %390 = vmatpush.msra.mxu0 0.0
    %391 = vmatpush.msra.mxu0 0.0
    %392 = vmatpush.msra.mxu0 0.0
    %393 = vmatpush.msra.mxu0 0.0
    %394 = vmatpush.msra.mxu0 0.0
    %395 = vmatpush.msra.mxu0 0.0
    %396 = vmatpush.msra.mxu0 0.0
    %397 = vmatpush.msra.mxu0 0.0
    %398 = vmatpush.msra.mxu0 0.0
    %399 = vmatpush.msra.mxu0 0.0
    %400 = vmatpush.msra.mxu0 0.0
    %401 = vmatpush.msra.mxu0 0.0
    %402 = vmatpush.msra.mxu0 %v270
    %403 = vmatpush.msra.mxu0 %v267
    %404 = vmatmul.f32.gmra.mxu0 %v383
    %v405 = vpop.f32.mrf.mxu0
    %v406 = vadd.f32 0.0, %v405
    %407 = vmatmul.f32.gmra.mxu0 %v386
    %v408 = vpop.f32.mrf.mxu0
    %v409 = vadd.f32 0.0, %v408
    %410 = vdwg.mxu0
    %v411 = vld [vmem:[#allocation13 + $0x2] sm:$0x1]
    %v412 = vperm.slane %v411, 0
    %v413 = vmul.f32 %v406, %v412
    %v414 = vmul.f32 %v409, %v412
    %v415 = vadd.f32 %v377, %v413
    %v416 = vadd.f32 %v378, %v414
    %s417 = scalar_lea.vmem %s3, 48
    %v418 = vld [vmem:[%s417] sm:$0xff]
    %v419 = vld [vmem:[%s417 + $0x8] sm:$0xff]
    %v421 = vsel %vm305, %v418, 0
    %v424 = vsel %vm305, %v419, 0
    %426 = vmatpush.msra.mxu0 0.0
    %427 = vmatpush.msra.mxu0 0.0
    %428 = vmatpush.msra.mxu0 0.0
    %429 = vmatpush.msra.mxu0 0.0
    %430 = vmatpush.msra.mxu0 0.0
    %431 = vmatpush.msra.mxu0 0.0
    %432 = vmatpush.msra.mxu0 0.0
    %433 = vmatpush.msra.mxu0 0.0
    %434 = vmatpush.msra.mxu0 0.0
    %435 = vmatpush.msra.mxu0 0.0
    %436 = vmatpush.msra.mxu0 0.0
    %437 = vmatpush.msra.mxu0 0.0
    %438 = vmatpush.msra.mxu0 0.0
    %439 = vmatpush.msra.mxu0 0.0
    %440 = vmatpush.msra.mxu0 %v270
    %441 = vmatpush.msra.mxu0 %v267
    %442 = vmatmul.f32.gmra.mxu0 %v421
    %v443 = vpop.f32.mrf.mxu0
    %v444 = vadd.f32 0.0, %v443
    %445 = vmatmul.f32.gmra.mxu0 %v424
    %v446 = vpop.f32.mrf.mxu0
    %v447 = vadd.f32 0.0, %v446
    %448 = vdwg.mxu0
    %v449 = vld [vmem:[#allocation13 + $0x3] sm:$0x1]
    %v450 = vperm.slane %v449, 0
    %v451 = vmul.f32 %v444, %v450
    %v452 = vmul.f32 %v447, %v450
    %v453 = vadd.f32 %v415, %v451
    %v454 = vadd.f32 %v416, %v452
    %v455 = vld [vmem:[#allocation16 + $0x2] sm:$0x1]
    %v457 = vperm.slane %v455, 0
    %v459 = vadd.f32 %v453, %v457
    %v460 = vadd.f32 %v454, %v457
    %v461 = vsub.f32 0.0, %v459
    %v462 = vsub.f32 0.0, %v460
    %v463 = vmul.f32 %v461, 1.442695
    %v464 = vpow.pop %v463
    %v465 = vmul.f32 %v462, 1.442695
    %v466 = vpow.pop %v465
    %v467 = vadd.f32 %v464, 1.0
    %v468 = vadd.f32 %v466, 1.0
    %v469 = vrcp.pop %v467
    %v470 = vmul.f32 %v467, %v469
    %v471 = vsub.f32 1.0, %v470
    %v472 = vmul.f32 %v469, %v471
    %v473 = vadd.f32 %v469, %v472
    %vm474 = vweird.f32 %v467
    %vm475 = vweird.f32 %v469
    %vm476 = vmor %vm474, %vm475
    %v477 = vsel %vm476, %v469, %v473
    %v478 = vand.u32 2147483647, %v467
    %vm479 = vcmp.eq.f32.partialorder %v478, 8.507059e+37
    %v480 = vand.u32 %v467, 2147483648
    %v481 = vor.u32 1.1754944e-38, %v480
    %v482 = vsel %vm479, %v481, %v477
    %v483 = vmul.f32 1.0, %v482
    %v484 = vrcp.pop %v468
    %v485 = vmul.f32 %v468, %v484
    %v486 = vsub.f32 1.0, %v485
    %v487 = vmul.f32 %v484, %v486
    %v488 = vadd.f32 %v484, %v487
    %vm489 = vweird.f32 %v468
    %vm490 = vweird.f32 %v484
    %vm491 = vmor %vm489, %vm490
    %v492 = vsel %vm491, %v484, %v488
    %v493 = vand.u32 2147483647, %v468
    %vm494 = vcmp.eq.f32.partialorder %v493, 8.507059e+37
    %v495 = vand.u32 %v468, 2147483648
    %v496 = vor.u32 1.1754944e-38, %v495
    %v497 = vsel %vm494, %v496, %v492
    %v498 = vmul.f32 1.0, %v497
    %v499 = vmul.f32 %v459, %v483
    %v500 = vmul.f32 %v460, %v498
    %v501 = vld [vmem:[#allocation14] sm:$0xff]
    %v502 = vld [vmem:[#allocation14 + $0x8] sm:$0xff]
    %v503 = vld [vmem:[#allocation14 + $0x10] sm:$0xff]
    %v504 = vld [vmem:[#allocation14 + $0x18] sm:$0xff]
    %v505 = vld [vmem:[#allocation14 + $0x20] sm:$0xff]
    %v506 = vld [vmem:[#allocation14 + $0x28] sm:$0xff]
    %v507 = vld [vmem:[#allocation14 + $0x30] sm:$0xff]
    %v508 = vld [vmem:[#allocation14 + $0x38] sm:$0xff]
    %v509 = vld [vmem:[#allocation16 + $0x3] sm:$0x1]
    %v511 = vperm.slane %v509, 0
    %vm513 = vcmask 523264
    %v515 = vsel %vm513, %v499, 0
    %v518 = vsel %vm513, %v500, 0
    %520 = vmatpush.msra.mxu0 0.0
    %521 = vmatpush.msra.mxu0 0.0
    %522 = vmatpush.msra.mxu0 0.0
    %523 = vmatpush.msra.mxu0 0.0
    %524 = vmatpush.msra.mxu0 0.0
    %525 = vmatpush.msra.mxu0 0.0
    %526 = vmatpush.msra.mxu0 0.0
    %527 = vmatpush.msra.mxu0 0.0
    %528 = vmatpush.msra.mxu0 %v508
    %529 = vmatpush.msra.mxu0 %v507
    %530 = vmatpush.msra.mxu0 %v506
    %531 = vmatpush.msra.mxu0 %v505
    %532 = vmatpush.msra.mxu0 %v504
    %533 = vmatpush.msra.mxu0 %v503
    %534 = vmatpush.msra.mxu0 %v502
    %535 = vmatpush.msra.mxu0 %v501
    %536 = vmatmul.f32.gmra.mxu0 %v515
    %v537 = vpop.f32.mrf.mxu0
    %v538 = vadd.f32 %v511, %v537
    %539 = vmatmul.f32.gmra.mxu0 %v518
    %v540 = vpop.f32.mrf.mxu0
    %v541 = vadd.f32 %v511, %v540
    %542 = vdwg.mxu0
    %vm543 = vcmp.gt.f32.partialorder %v538, 20.0
    %vm544 = vcmp.gt.f32.partialorder %v541, 20.0
    %v545 = vmin.f32 %v538, 20.0
    %v546 = vmin.f32 %v541, 20.0
    %v547 = vmul.f32 %v545, 1.442695
    %v548 = vpow.pop %v547
    %v549 = vmul.f32 %v546, 1.442695
    %v550 = vpow.pop %v549
    %v551 = vadd.f32 %v548, 1.0
    %v552 = vadd.f32 %v550, 1.0
    %v553 = vlog2.pop %v551
    %v554 = vmul.f32 %v553, 0.6931472
    %v555 = vlog2.pop %v552
    %v556 = vmul.f32 %v555, 0.6931472
    %v557 = vsel %vm543, %v538, %v554
    %v558 = vsel %vm544, %v541, %v556
    %v559 = vld [vmem:[%s11] sm:$0xff]
    %v560 = vld [vmem:[%s11 + $0x8] sm:$0xff]
    %v561 = vld [vmem:[%s11 + $0x10] sm:$0xff]
    %v562 = vld [vmem:[%s11 + $0x18] sm:$0xff]
    %v563 = vld [vmem:[%s11 + $0x20] sm:$0xff]
    %v564 = vld [vmem:[%s11 + $0x28] sm:$0xff]
    %v565 = vld [vmem:[%s11 + $0x30] sm:$0xff]
    %v566 = vld [vmem:[%s11 + $0x38] sm:$0xff]
    %v567 = vld [vmem:[#allocation16 + $0x4] sm:$0x1]
    %v569 = vperm.slane %v567, 0
    %571 = vmatpush.msra.mxu0 0.0
    %572 = vmatpush.msra.mxu0 0.0
    %573 = vmatpush.msra.mxu0 0.0
    %574 = vmatpush.msra.mxu0 0.0
    %575 = vmatpush.msra.mxu0 0.0
    %576 = vmatpush.msra.mxu0 0.0
    %577 = vmatpush.msra.mxu0 0.0
    %578 = vmatpush.msra.mxu0 0.0
    %579 = vmatpush.msra.mxu0 %v566
    %580 = vmatpush.msra.mxu0 %v565
    %581 = vmatpush.msra.mxu0 %v564
    %582 = vmatpush.msra.mxu0 %v563
    %583 = vmatpush.msra.mxu0 %v562
    %584 = vmatpush.msra.mxu0 %v561
    %585 = vmatpush.msra.mxu0 %v560
    %586 = vmatpush.msra.mxu0 %v559
    %587 = vmatmul.f32.gmra.mxu0 %v515
    %v588 = vpop.f32.mrf.mxu0
    %v589 = vadd.f32 %v569, %v588
    %590 = vmatmul.f32.gmra.mxu0 %v518
    %v591 = vpop.f32.mrf.mxu0
    %v592 = vadd.f32 %v569, %v591
    %593 = vdwg.mxu0
    %v594 = vld [vmem:[%s12] sm:$0xff]
    %v595 = vld [vmem:[%s12 + $0x8] sm:$0xff]
    %v596 = vld [vmem:[%s12 + $0x10] sm:$0xff]
    %v597 = vld [vmem:[%s12 + $0x18] sm:$0xff]
    %v598 = vld [vmem:[%s12 + $0x20] sm:$0xff]
    %v599 = vld [vmem:[%s12 + $0x28] sm:$0xff]
    %v600 = vld [vmem:[%s12 + $0x30] sm:$0xff]
    %v601 = vld [vmem:[%s12 + $0x38] sm:$0xff]
    %v602 = vld [vmem:[#allocation16 + $0x5] sm:$0x1]
    %v604 = vperm.slane %v602, 0
    %606 = vmatpush.msra.mxu0 0.0
    %607 = vmatpush.msra.mxu0 0.0
    %608 = vmatpush.msra.mxu0 0.0
    %609 = vmatpush.msra.mxu0 0.0
    %610 = vmatpush.msra.mxu0 0.0
    %611 = vmatpush.msra.mxu0 0.0
    %612 = vmatpush.msra.mxu0 0.0
    %613 = vmatpush.msra.mxu0 0.0
    %614 = vmatpush.msra.mxu0 %v601
    %615 = vmatpush.msra.mxu0 %v600
    %616 = vmatpush.msra.mxu0 %v599
    %617 = vmatpush.msra.mxu0 %v598
    %618 = vmatpush.msra.mxu0 %v597
    %619 = vmatpush.msra.mxu0 %v596
    %620 = vmatpush.msra.mxu0 %v595
    %621 = vmatpush.msra.mxu0 %v594
    %622 = vmatmul.f32.gmra.mxu0 %v515
    %v623 = vpop.f32.mrf.mxu0
    %v624 = vadd.f32 %v604, %v623
    %625 = vmatmul.f32.gmra.mxu0 %v518
    %v626 = vpop.f32.mrf.mxu0
    %v627 = vadd.f32 %v604, %v626
    %628 = vdwg.mxu0
    %v629 = vld [vmem:[#allocation5] sm:$0xff]
    %v630 = vld [vmem:[#allocation5 + $0x8] sm:$0xff]
    %v631 = vld [vmem:[#allocation5 + $0x10] sm:$0xff]
    %v632 = vld [vmem:[#allocation5 + $0x18] sm:$0xff]
    %v633 = vld [vmem:[#allocation5 + $0x20] sm:$0xff]
    %v634 = vld [vmem:[#allocation5 + $0x28] sm:$0xff]
    %v635 = vld [vmem:[#allocation5 + $0x30] sm:$0xff]
    %v636 = vld [vmem:[#allocation5 + $0x38] sm:$0xff]
    %v637 = vld [vmem:[#allocation5 + $0x40] sm:$0xff]
    %v638 = vld [vmem:[#allocation5 + $0x48] sm:$0xff]
    %v639 = vld [vmem:[#allocation5 + $0x50] sm:$0xff]
    %v640 = vld [vmem:[#allocation5 + $0x58] sm:$0xff]
    %v641 = vld [vmem:[#allocation5 + $0x60] sm:$0xff]
    %v642 = vld [vmem:[#allocation5 + $0x68] sm:$0xff]
    %v643 = vld [vmem:[#allocation5 + $0x70] sm:$0xff]
    %v644 = vld [vmem:[#allocation5 + $0x78] sm:$0xff]
    %v645 = vld [vmem:[#allocation5 + $0x80] sm:$0xff]
    %v646 = vld [vmem:[#allocation5 + $0x88] sm:$0xff]
    %v647 = vld [vmem:[#allocation5 + $0x90] sm:$0xff]
    %v648 = vld [vmem:[#allocation5 + $0x98] sm:$0xff]
    %v649 = vld [vmem:[#allocation5 + $0xa0] sm:$0xff]
    %v650 = vld [vmem:[#allocation5 + $0xa8] sm:$0xff]
    %v651 = vld [vmem:[#allocation5 + $0xb0] sm:$0xff]
    %v652 = vld [vmem:[#allocation5 + $0xb8] sm:$0xff]
    %v653 = vld [vmem:[#allocation5 + $0xc0] sm:$0xff]
    %v654 = vld [vmem:[#allocation5 + $0xc8] sm:$0xff]
    %v655 = vld [vmem:[#allocation5 + $0xd0] sm:$0xff]
    %v656 = vld [vmem:[#allocation5 + $0xd8] sm:$0xff]
    %v657 = vld [vmem:[#allocation5 + $0xe0] sm:$0xff]
    %v658 = vld [vmem:[#allocation5 + $0xe8] sm:$0xff]
    %v659 = vld [vmem:[#allocation5 + $0xf0] sm:$0xff]
    %v660 = vld [vmem:[#allocation5 + $0xf8] sm:$0xff]
    %v661 = vld [vmem:[#allocation5 + $0x100] sm:$0xff]
    %v662 = vld [vmem:[#allocation5 + $0x108] sm:$0xff]
    %v663 = vld [vmem:[#allocation5 + $0x110] sm:$0xff]
    %v664 = vld [vmem:[#allocation5 + $0x118] sm:$0xff]
    %v665 = vld [vmem:[#allocation5 + $0x120] sm:$0xff]
    %v666 = vld [vmem:[#allocation5 + $0x128] sm:$0xff]
    %v667 = vld [vmem:[#allocation5 + $0x130] sm:$0xff]
    %v668 = vld [vmem:[#allocation5 + $0x138] sm:$0xff]
    %v669 = vld [vmem:[#allocation5 + $0x140] sm:$0xff]
    %v670 = vld [vmem:[#allocation5 + $0x148] sm:$0xff]
    %v671 = vld [vmem:[#allocation5 + $0x150] sm:$0xff]
    %v672 = vld [vmem:[#allocation5 + $0x158] sm:$0xff]
    %v673 = vld [vmem:[#allocation5 + $0x160] sm:$0xff]
    %v674 = vld [vmem:[#allocation5 + $0x168] sm:$0xff]
    %v675 = vld [vmem:[#allocation5 + $0x170] sm:$0xff]
    %v676 = vld [vmem:[#allocation5 + $0x178] sm:$0xff]
    %v677 = vld [vmem:[#allocation5 + $0x180] sm:$0xff]
    %v678 = vld [vmem:[#allocation5 + $0x188] sm:$0xff]
    %v679 = vld [vmem:[#allocation5 + $0x190] sm:$0xff]
    %v680 = vld [vmem:[#allocation5 + $0x198] sm:$0xff]
    %v681 = vld [vmem:[#allocation5 + $0x1a0] sm:$0xff]
    %v682 = vld [vmem:[#allocation5 + $0x1a8] sm:$0xff]
    %v683 = vld [vmem:[#allocation5 + $0x1b0] sm:$0xff]
    %v684 = vld [vmem:[#allocation5 + $0x1b8] sm:$0xff]
    %v685 = vld [vmem:[#allocation5 + $0x1c0] sm:$0xff]
    %v686 = vld [vmem:[#allocation5 + $0x1c8] sm:$0xff]
    %v687 = vld [vmem:[#allocation5 + $0x1d0] sm:$0xff]
    %v688 = vld [vmem:[#allocation5 + $0x1d8] sm:$0xff]
    %v689 = vld [vmem:[#allocation5 + $0x1e0] sm:$0xff]
    %v690 = vld [vmem:[#allocation5 + $0x1e8] sm:$0xff]
    %v691 = vld [vmem:[#allocation5 + $0x1f0] sm:$0xff]
    %v692 = vld [vmem:[#allocation5 + $0x1f8] sm:$0xff]
    %693 = vmatpush.msra.mxu0 0.0
    %694 = vmatpush.msra.mxu0 0.0
    %695 = vmatpush.msra.mxu0 0.0
    %696 = vmatpush.msra.mxu0 0.0
    %697 = vmatpush.msra.mxu0 0.0
    %698 = vmatpush.msra.mxu0 0.0
    %699 = vmatpush.msra.mxu0 0.0
    %700 = vmatpush.msra.mxu0 0.0
    %701 = vmatpush.msra.mxu0 %v685
    %702 = vmatpush.msra.mxu0 %v677
    %703 = vmatpush.msra.mxu0 %v669
    %704 = vmatpush.msra.mxu0 %v661
    %705 = vmatpush.msra.mxu0 %v653
    %706 = vmatpush.msra.mxu0 %v645
    %707 = vmatpush.msra.mxu0 %v637
    %708 = vmatpush.msra.mxu0 %v629
    %709 = vmatmul.f32.gmra.mxu0 %v515
    %v710 = vpop.f32.mrf.mxu0
    %v711 = vadd.f32 0.0, %v710
    %712 = vmatmul.f32.gmra.mxu0 %v518
    %v713 = vpop.f32.mrf.mxu0
    %v714 = vadd.f32 0.0, %v713
    %715 = vdwg.mxu0
    %716 = vmatpush.msra.mxu0 0.0
    %717 = vmatpush.msra.mxu0 0.0
    %718 = vmatpush.msra.mxu0 0.0
    %719 = vmatpush.msra.mxu0 0.0
    %720 = vmatpush.msra.mxu0 0.0
    %721 = vmatpush.msra.mxu0 0.0
    %722 = vmatpush.msra.mxu0 0.0
    %723 = vmatpush.msra.mxu0 0.0
    %724 = vmatpush.msra.mxu0 %v686
    %725 = vmatpush.msra.mxu0 %v678
    %726 = vmatpush.msra.mxu0 %v670
    %727 = vmatpush.msra.mxu0 %v662
    %728 = vmatpush.msra.mxu0 %v654
    %729 = vmatpush.msra.mxu0 %v646
    %730 = vmatpush.msra.mxu0 %v638
    %731 = vmatpush.msra.mxu0 %v630
    %732 = vmatmul.f32.gmra.mxu0 %v515
    %v733 = vpop.f32.mrf.mxu0
    %v734 = vadd.f32 0.0, %v733
    %735 = vmatmul.f32.gmra.mxu0 %v518
    %v736 = vpop.f32.mrf.mxu0
    %v737 = vadd.f32 0.0, %v736
    %738 = vdwg.mxu0
    %739 = vmatpush.msra.mxu0 0.0
    %740 = vmatpush.msra.mxu0 0.0
    %741 = vmatpush.msra.mxu0 0.0
    %742 = vmatpush.msra.mxu0 0.0
    %743 = vmatpush.msra.mxu0 0.0
    %744 = vmatpush.msra.mxu0 0.0
    %745 = vmatpush.msra.mxu0 0.0
    %746 = vmatpush.msra.mxu0 0.0
    %747 = vmatpush.msra.mxu0 %v687
    %748 = vmatpush.msra.mxu0 %v679
    %749 = vmatpush.msra.mxu0 %v671
    %750 = vmatpush.msra.mxu0 %v663
    %751 = vmatpush.msra.mxu0 %v655
    %752 = vmatpush.msra.mxu0 %v647
    %753 = vmatpush.msra.mxu0 %v639
    %754 = vmatpush.msra.mxu0 %v631
    %755 = vmatmul.f32.gmra.mxu0 %v515
    %v756 = vpop.f32.mrf.mxu0
    %v757 = vadd.f32 0.0, %v756
    %758 = vmatmul.f32.gmra.mxu0 %v518
    %v759 = vpop.f32.mrf.mxu0
    %v760 = vadd.f32 0.0, %v759
    %761 = vdwg.mxu0
    %762 = vmatpush.msra.mxu0 0.0
    %763 = vmatpush.msra.mxu0 0.0
    %764 = vmatpush.msra.mxu0 0.0
    %765 = vmatpush.msra.mxu0 0.0
    %766 = vmatpush.msra.mxu0 0.0
    %767 = vmatpush.msra.mxu0 0.0
    %768 = vmatpush.msra.mxu0 0.0
    %769 = vmatpush.msra.mxu0 0.0
    %770 = vmatpush.msra.mxu0 %v688
    %771 = vmatpush.msra.mxu0 %v680
    %772 = vmatpush.msra.mxu0 %v672
    %773 = vmatpush.msra.mxu0 %v664
    %774 = vmatpush.msra.mxu0 %v656
    %775 = vmatpush.msra.mxu0 %v648
    %776 = vmatpush.msra.mxu0 %v640
    %777 = vmatpush.msra.mxu0 %v632
    %778 = vmatmul.f32.gmra.mxu0 %v515
    %v779 = vpop.f32.mrf.mxu0
    %v780 = vadd.f32 0.0, %v779
    %781 = vmatmul.f32.gmra.mxu0 %v518
    %v782 = vpop.f32.mrf.mxu0
    %v783 = vadd.f32 0.0, %v782
    %784 = vdwg.mxu0
    %785 = vmatpush.msra.mxu0 0.0
    %786 = vmatpush.msra.mxu0 0.0
    %787 = vmatpush.msra.mxu0 0.0
    %788 = vmatpush.msra.mxu0 0.0
    %789 = vmatpush.msra.mxu0 0.0
    %790 = vmatpush.msra.mxu0 0.0
    %791 = vmatpush.msra.mxu0 0.0
    %792 = vmatpush.msra.mxu0 0.0
    %793 = vmatpush.msra.mxu0 %v689
    %794 = vmatpush.msra.mxu0 %v681
    %795 = vmatpush.msra.mxu0 %v673
    %796 = vmatpush.msra.mxu0 %v665
    %797 = vmatpush.msra.mxu0 %v657
    %798 = vmatpush.msra.mxu0 %v649
    %799 = vmatpush.msra.mxu0 %v641
    %800 = vmatpush.msra.mxu0 %v633
    %801 = vmatmul.f32.gmra.mxu0 %v515
    %v802 = vpop.f32.mrf.mxu0
    %v803 = vadd.f32 0.0, %v802
    %804 = vmatmul.f32.gmra.mxu0 %v518
    %v805 = vpop.f32.mrf.mxu0
    %v806 = vadd.f32 0.0, %v805
    %807 = vdwg.mxu0
    %808 = vmatpush.msra.mxu0 0.0
    %809 = vmatpush.msra.mxu0 0.0
    %810 = vmatpush.msra.mxu0 0.0
    %811 = vmatpush.msra.mxu0 0.0
    %812 = vmatpush.msra.mxu0 0.0
    %813 = vmatpush.msra.mxu0 0.0
    %814 = vmatpush.msra.mxu0 0.0
    %815 = vmatpush.msra.mxu0 0.0
    %816 = vmatpush.msra.mxu0 %v690
    %817 = vmatpush.msra.mxu0 %v682
    %818 = vmatpush.msra.mxu0 %v674
    %819 = vmatpush.msra.mxu0 %v666
    %820 = vmatpush.msra.mxu0 %v658
    %821 = vmatpush.msra.mxu0 %v650
    %822 = vmatpush.msra.mxu0 %v642
    %823 = vmatpush.msra.mxu0 %v634
    %824 = vmatmul.f32.gmra.mxu0 %v515
    %v825 = vpop.f32.mrf.mxu0
    %v826 = vadd.f32 0.0, %v825
    %827 = vmatmul.f32.gmra.mxu0 %v518
    %v828 = vpop.f32.mrf.mxu0
    %v829 = vadd.f32 0.0, %v828
    %830 = vdwg.mxu0
    %831 = vmatpush.msra.mxu0 0.0
    %832 = vmatpush.msra.mxu0 0.0
    %833 = vmatpush.msra.mxu0 0.0
    %834 = vmatpush.msra.mxu0 0.0
    %835 = vmatpush.msra.mxu0 0.0
    %836 = vmatpush.msra.mxu0 0.0
    %837 = vmatpush.msra.mxu0 0.0
    %838 = vmatpush.msra.mxu0 0.0
    %839 = vmatpush.msra.mxu0 %v691
    %840 = vmatpush.msra.mxu0 %v683
    %841 = vmatpush.msra.mxu0 %v675
    %842 = vmatpush.msra.mxu0 %v667
    %843 = vmatpush.msra.mxu0 %v659
    %844 = vmatpush.msra.mxu0 %v651
    %845 = vmatpush.msra.mxu0 %v643
    %846 = vmatpush.msra.mxu0 %v635
    %847 = vmatmul.f32.gmra.mxu0 %v515
    %v848 = vpop.f32.mrf.mxu0
    %v849 = vadd.f32 0.0, %v848
    %850 = vmatmul.f32.gmra.mxu0 %v518
    %v851 = vpop.f32.mrf.mxu0
    %v852 = vadd.f32 0.0, %v851
    %853 = vdwg.mxu0
    %854 = vmatpush.msra.mxu0 0.0
    %855 = vmatpush.msra.mxu0 0.0
    %856 = vmatpush.msra.mxu0 0.0
    %857 = vmatpush.msra.mxu0 0.0
    %858 = vmatpush.msra.mxu0 0.0
    %859 = vmatpush.msra.mxu0 0.0
    %860 = vmatpush.msra.mxu0 0.0
    %861 = vmatpush.msra.mxu0 0.0
    %862 = vmatpush.msra.mxu0 %v692
    %863 = vmatpush.msra.mxu0 %v684
    %864 = vmatpush.msra.mxu0 %v676
    %865 = vmatpush.msra.mxu0 %v668
    %866 = vmatpush.msra.mxu0 %v660
    %867 = vmatpush.msra.mxu0 %v652
    %868 = vmatpush.msra.mxu0 %v644
    %869 = vmatpush.msra.mxu0 %v636
    %870 = vmatmul.f32.gmra.mxu0 %v515
    %v871 = vpop.f32.mrf.mxu0
    %v872 = vadd.f32 0.0, %v871
    %873 = vmatmul.f32.gmra.mxu0 %v518
    %v874 = vpop.f32.mrf.mxu0
    %v875 = vadd.f32 0.0, %v874
    %876 = vdwg.mxu0
    %v877 = vld [vmem:[#allocation7] sm:$0xff]
    %v878 = vld [vmem:[#allocation7 + $0x8] sm:$0xff]
    %v879 = vld [vmem:[#allocation7 + $0x10] sm:$0xff]
    %v880 = vld [vmem:[#allocation7 + $0x18] sm:$0xff]
    %v881 = vld [vmem:[#allocation7 + $0x20] sm:$0xff]
    %v882 = vld [vmem:[#allocation7 + $0x28] sm:$0xff]
    %v883 = vld [vmem:[#allocation7 + $0x30] sm:$0xff]
    %v884 = vld [vmem:[#allocation7 + $0x38] sm:$0xff]
    %v885 = vld [vmem:[#allocation7 + $0x40] sm:$0xff]
    %v886 = vld [vmem:[#allocation7 + $0x48] sm:$0xff]
    %v887 = vld [vmem:[#allocation7 + $0x50] sm:$0xff]
    %v888 = vld [vmem:[#allocation7 + $0x58] sm:$0xff]
    %v889 = vld [vmem:[#allocation7 + $0x60] sm:$0xff]
    %v890 = vld [vmem:[#allocation7 + $0x68] sm:$0xff]
    %v891 = vld [vmem:[#allocation7 + $0x70] sm:$0xff]
    %v892 = vld [vmem:[#allocation7 + $0x78] sm:$0xff]
    %v894 = vsel %vm305, %v589, 0
    %v897 = vsel %vm305, %v592, 0
    %899 = vmatpush.msra.mxu0 0.0
    %900 = vmatpush.msra.mxu0 0.0
    %901 = vmatpush.msra.mxu0 0.0
    %902 = vmatpush.msra.mxu0 0.0
    %903 = vmatpush.msra.mxu0 0.0
    %904 = vmatpush.msra.mxu0 0.0
    %905 = vmatpush.msra.mxu0 0.0
    %906 = vmatpush.msra.mxu0 0.0
    %907 = vmatpush.msra.mxu0 0.0
    %908 = vmatpush.msra.mxu0 0.0
    %909 = vmatpush.msra.mxu0 0.0
    %910 = vmatpush.msra.mxu0 0.0
    %911 = vmatpush.msra.mxu0 0.0
    %912 = vmatpush.msra.mxu0 0.0
    %913 = vmatpush.msra.mxu0 %v885
    %914 = vmatpush.msra.mxu0 %v877
    %915 = vmatmul.f32.gmra.mxu0 %v894
    %v916 = vpop.f32.mrf.mxu0
    %v917 = vadd.f32 0.0, %v916
    %918 = vmatmul.f32.gmra.mxu0 %v897
    %v919 = vpop.f32.mrf.mxu0
    %v920 = vadd.f32 0.0, %v919
    %921 = vdwg.mxu0
    %922 = vmatpush.msra.mxu0 0.0
    %923 = vmatpush.msra.mxu0 0.0
    %924 = vmatpush.msra.mxu0 0.0
    %925 = vmatpush.msra.mxu0 0.0
    %926 = vmatpush.msra.mxu0 0.0
    %927 = vmatpush.msra.mxu0 0.0
    %928 = vmatpush.msra.mxu0 0.0
    %929 = vmatpush.msra.mxu0 0.0
    %930 = vmatpush.msra.mxu0 0.0
    %931 = vmatpush.msra.mxu0 0.0
    %932 = vmatpush.msra.mxu0 0.0
    %933 = vmatpush.msra.mxu0 0.0
    %934 = vmatpush.msra.mxu0 0.0
    %935 = vmatpush.msra.mxu0 0.0
    %936 = vmatpush.msra.mxu0 %v886
    %937 = vmatpush.msra.mxu0 %v878
    %938 = vmatmul.f32.gmra.mxu0 %v894
    %v939 = vpop.f32.mrf.mxu0
    %v940 = vadd.f32 0.0, %v939
    %941 = vmatmul.f32.gmra.mxu0 %v897
    %v942 = vpop.f32.mrf.mxu0
    %v943 = vadd.f32 0.0, %v942
    %944 = vdwg.mxu0
    %945 = vmatpush.msra.mxu0 0.0
    %946 = vmatpush.msra.mxu0 0.0
    %947 = vmatpush.msra.mxu0 0.0
    %948 = vmatpush.msra.mxu0 0.0
    %949 = vmatpush.msra.mxu0 0.0
    %950 = vmatpush.msra.mxu0 0.0
    %951 = vmatpush.msra.mxu0 0.0
    %952 = vmatpush.msra.mxu0 0.0
    %953 = vmatpush.msra.mxu0 0.0
    %954 = vmatpush.msra.mxu0 0.0
    %955 = vmatpush.msra.mxu0 0.0
    %956 = vmatpush.msra.mxu0 0.0
    %957 = vmatpush.msra.mxu0 0.0
    %958 = vmatpush.msra.mxu0 0.0
    %959 = vmatpush.msra.mxu0 %v887
    %960 = vmatpush.msra.mxu0 %v879
    %961 = vmatmul.f32.gmra.mxu0 %v894
    %v962 = vpop.f32.mrf.mxu0
    %v963 = vadd.f32 0.0, %v962
    %964 = vmatmul.f32.gmra.mxu0 %v897
    %v965 = vpop.f32.mrf.mxu0
    %v966 = vadd.f32 0.0, %v965
    %967 = vdwg.mxu0
    %968 = vmatpush.msra.mxu0 0.0
    %969 = vmatpush.msra.mxu0 0.0
    %970 = vmatpush.msra.mxu0 0.0
    %971 = vmatpush.msra.mxu0 0.0
    %972 = vmatpush.msra.mxu0 0.0
    %973 = vmatpush.msra.mxu0 0.0
    %974 = vmatpush.msra.mxu0 0.0
    %975 = vmatpush.msra.mxu0 0.0
    %976 = vmatpush.msra.mxu0 0.0
    %977 = vmatpush.msra.mxu0 0.0
    %978 = vmatpush.msra.mxu0 0.0
    %979 = vmatpush.msra.mxu0 0.0
    %980 = vmatpush.msra.mxu0 0.0
    %981 = vmatpush.msra.mxu0 0.0
    %982 = vmatpush.msra.mxu0 %v888
    %983 = vmatpush.msra.mxu0 %v880
    %984 = vmatmul.f32.gmra.mxu0 %v894
    %v985 = vpop.f32.mrf.mxu0
    %v986 = vadd.f32 0.0, %v985
    %987 = vmatmul.f32.gmra.mxu0 %v897
    %v988 = vpop.f32.mrf.mxu0
    %v989 = vadd.f32 0.0, %v988
    %990 = vdwg.mxu0
    %991 = vmatpush.msra.mxu0 0.0
    %992 = vmatpush.msra.mxu0 0.0
    %993 = vmatpush.msra.mxu0 0.0
    %994 = vmatpush.msra.mxu0 0.0
    %995 = vmatpush.msra.mxu0 0.0
    %996 = vmatpush.msra.mxu0 0.0
    %997 = vmatpush.msra.mxu0 0.0
    %998 = vmatpush.msra.mxu0 0.0
    %999 = vmatpush.msra.mxu0 0.0
    %1000 = vmatpush.msra.mxu0 0.0
    %1001 = vmatpush.msra.mxu0 0.0
    %1002 = vmatpush.msra.mxu0 0.0
    %1003 = vmatpush.msra.mxu0 0.0
    %1004 = vmatpush.msra.mxu0 0.0
    %1005 = vmatpush.msra.mxu0 %v889
    %1006 = vmatpush.msra.mxu0 %v881
    %1007 = vmatmul.f32.gmra.mxu0 %v894
    %v1008 = vpop.f32.mrf.mxu0
    %v1009 = vadd.f32 0.0, %v1008
    %1010 = vmatmul.f32.gmra.mxu0 %v897
    %v1011 = vpop.f32.mrf.mxu0
    %v1012 = vadd.f32 0.0, %v1011
    %1013 = vdwg.mxu0
    %1014 = vmatpush.msra.mxu0 0.0
    %1015 = vmatpush.msra.mxu0 0.0
    %1016 = vmatpush.msra.mxu0 0.0
    %1017 = vmatpush.msra.mxu0 0.0
    %1018 = vmatpush.msra.mxu0 0.0
    %1019 = vmatpush.msra.mxu0 0.0
    %1020 = vmatpush.msra.mxu0 0.0
    %1021 = vmatpush.msra.mxu0 0.0
    %1022 = vmatpush.msra.mxu0 0.0
    %1023 = vmatpush.msra.mxu0 0.0
    %1024 = vmatpush.msra.mxu0 0.0
    %1025 = vmatpush.msra.mxu0 0.0
    %1026 = vmatpush.msra.mxu0 0.0
    %1027 = vmatpush.msra.mxu0 0.0
    %1028 = vmatpush.msra.mxu0 %v890
    %1029 = vmatpush.msra.mxu0 %v882
    %1030 = vmatmul.f32.gmra.mxu0 %v894
    %v1031 = vpop.f32.mrf.mxu0
    %v1032 = vadd.f32 0.0, %v1031
    %1033 = vmatmul.f32.gmra.mxu0 %v897
    %v1034 = vpop.f32.mrf.mxu0
    %v1035 = vadd.f32 0.0, %v1034
    %1036 = vdwg.mxu0
    %1037 = vmatpush.msra.mxu0 0.0
    %1038 = vmatpush.msra.mxu0 0.0
    %1039 = vmatpush.msra.mxu0 0.0
    %1040 = vmatpush.msra.mxu0 0.0
    %1041 = vmatpush.msra.mxu0 0.0
    %1042 = vmatpush.msra.mxu0 0.0
    %1043 = vmatpush.msra.mxu0 0.0
    %1044 = vmatpush.msra.mxu0 0.0
    %1045 = vmatpush.msra.mxu0 0.0
    %1046 = vmatpush.msra.mxu0 0.0
    %1047 = vmatpush.msra.mxu0 0.0
    %1048 = vmatpush.msra.mxu0 0.0
    %1049 = vmatpush.msra.mxu0 0.0
    %1050 = vmatpush.msra.mxu0 0.0
    %1051 = vmatpush.msra.mxu0 %v891
    %1052 = vmatpush.msra.mxu0 %v883
    %1053 = vmatmul.f32.gmra.mxu0 %v894
    %v1054 = vpop.f32.mrf.mxu0
    %v1055 = vadd.f32 0.0, %v1054
    %1056 = vmatmul.f32.gmra.mxu0 %v897
    %v1057 = vpop.f32.mrf.mxu0
    %v1058 = vadd.f32 0.0, %v1057
    %1059 = vdwg.mxu0
    %1060 = vmatpush.msra.mxu0 0.0
    %1061 = vmatpush.msra.mxu0 0.0
    %1062 = vmatpush.msra.mxu0 0.0
    %1063 = vmatpush.msra.mxu0 0.0
    %1064 = vmatpush.msra.mxu0 0.0
    %1065 = vmatpush.msra.mxu0 0.0
    %1066 = vmatpush.msra.mxu0 0.0
    %1067 = vmatpush.msra.mxu0 0.0
    %1068 = vmatpush.msra.mxu0 0.0
    %1069 = vmatpush.msra.mxu0 0.0
    %1070 = vmatpush.msra.mxu0 0.0
    %1071 = vmatpush.msra.mxu0 0.0
    %1072 = vmatpush.msra.mxu0 0.0
    %1073 = vmatpush.msra.mxu0 0.0
    %1074 = vmatpush.msra.mxu0 %v892
    %1075 = vmatpush.msra.mxu0 %v884
    %1076 = vmatmul.f32.gmra.mxu0 %v894
    %v1077 = vpop.f32.mrf.mxu0
    %v1078 = vadd.f32 0.0, %v1077
    %1079 = vmatmul.f32.gmra.mxu0 %v897
    %v1080 = vpop.f32.mrf.mxu0
    %v1081 = vadd.f32 0.0, %v1080
    %1082 = vdwg.mxu0
    %v1083 = vmul.f32 %v711, %v917
    %v1084 = vmul.f32 %v734, %v940
    %v1085 = vmul.f32 %v757, %v963
    %v1086 = vmul.f32 %v780, %v986
    %v1087 = vmul.f32 %v803, %v1009
    %v1088 = vmul.f32 %v826, %v1032
    %v1089 = vmul.f32 %v849, %v1055
    %v1090 = vmul.f32 %v872, %v1078
    %v1091 = vmul.f32 %v714, %v920
    %v1092 = vmul.f32 %v737, %v943
    %v1093 = vmul.f32 %v760, %v966
    %v1094 = vmul.f32 %v783, %v989
    %v1095 = vmul.f32 %v806, %v1012
    %v1096 = vmul.f32 %v829, %v1035
    %v1097 = vmul.f32 %v852, %v1058
    %v1098 = vmul.f32 %v875, %v1081
    %v1100 = vsel %vm513, %v557, 0
    %v1103 = vsel %vm513, %v558, 0
    %1105 = vmatpush.msra.mxu0 0.0
    %1106 = vmatpush.msra.mxu0 0.0
    %1107 = vmatpush.msra.mxu0 0.0
    %1108 = vmatpush.msra.mxu0 0.0
    %1109 = vmatpush.msra.mxu0 0.0
    %1110 = vmatpush.msra.mxu0 0.0
    %1111 = vmatpush.msra.mxu0 0.0
    %1112 = vmatpush.msra.mxu0 0.0
    %1113 = vmatpush.msra.mxu0 %v685
    %1114 = vmatpush.msra.mxu0 %v677
    %1115 = vmatpush.msra.mxu0 %v669
    %1116 = vmatpush.msra.mxu0 %v661
    %1117 = vmatpush.msra.mxu0 %v653
    %1118 = vmatpush.msra.mxu0 %v645
    %1119 = vmatpush.msra.mxu0 %v637
    %1120 = vmatpush.msra.mxu0 %v629
    %1121 = vmatmul.f32.gmra.mxu0 %v1100
    %v1122 = vpop.f32.mrf.mxu0
    %v1123 = vadd.f32 0.0, %v1122
    %1124 = vmatmul.f32.gmra.mxu0 %v1103
    %v1125 = vpop.f32.mrf.mxu0
    %v1126 = vadd.f32 0.0, %v1125
    %1127 = vdwg.mxu0
    %1128 = vmatpush.msra.mxu0 0.0
    %1129 = vmatpush.msra.mxu0 0.0
    %1130 = vmatpush.msra.mxu0 0.0
    %1131 = vmatpush.msra.mxu0 0.0
    %1132 = vmatpush.msra.mxu0 0.0
    %1133 = vmatpush.msra.mxu0 0.0
    %1134 = vmatpush.msra.mxu0 0.0
    %1135 = vmatpush.msra.mxu0 0.0
    %1136 = vmatpush.msra.mxu0 %v686
    %1137 = vmatpush.msra.mxu0 %v678
    %1138 = vmatpush.msra.mxu0 %v670
    %1139 = vmatpush.msra.mxu0 %v662
    %1140 = vmatpush.msra.mxu0 %v654
    %1141 = vmatpush.msra.mxu0 %v646
    %1142 = vmatpush.msra.mxu0 %v638
    %1143 = vmatpush.msra.mxu0 %v630
    %1144 = vmatmul.f32.gmra.mxu0 %v1100
    %v1145 = vpop.f32.mrf.mxu0
    %v1146 = vadd.f32 0.0, %v1145
    %1147 = vmatmul.f32.gmra.mxu0 %v1103
    %v1148 = vpop.f32.mrf.mxu0
    %v1149 = vadd.f32 0.0, %v1148
    %1150 = vdwg.mxu0
    %1151 = vmatpush.msra.mxu0 0.0
    %1152 = vmatpush.msra.mxu0 0.0
    %1153 = vmatpush.msra.mxu0 0.0
    %1154 = vmatpush.msra.mxu0 0.0
    %1155 = vmatpush.msra.mxu0 0.0
    %1156 = vmatpush.msra.mxu0 0.0
    %1157 = vmatpush.msra.mxu0 0.0
    %1158 = vmatpush.msra.mxu0 0.0
    %1159 = vmatpush.msra.mxu0 %v687
    %1160 = vmatpush.msra.mxu0 %v679
    %1161 = vmatpush.msra.mxu0 %v671
    %1162 = vmatpush.msra.mxu0 %v663
    %1163 = vmatpush.msra.mxu0 %v655
    %1164 = vmatpush.msra.mxu0 %v647
    %1165 = vmatpush.msra.mxu0 %v639
    %1166 = vmatpush.msra.mxu0 %v631
    %1167 = vmatmul.f32.gmra.mxu0 %v1100
    %v1168 = vpop.f32.mrf.mxu0
    %v1169 = vadd.f32 0.0, %v1168
    %1170 = vmatmul.f32.gmra.mxu0 %v1103
    %v1171 = vpop.f32.mrf.mxu0
    %v1172 = vadd.f32 0.0, %v1171
    %1173 = vdwg.mxu0
    %1174 = vmatpush.msra.mxu0 0.0
    %1175 = vmatpush.msra.mxu0 0.0
    %1176 = vmatpush.msra.mxu0 0.0
    %1177 = vmatpush.msra.mxu0 0.0
    %1178 = vmatpush.msra.mxu0 0.0
    %1179 = vmatpush.msra.mxu0 0.0
    %1180 = vmatpush.msra.mxu0 0.0
    %1181 = vmatpush.msra.mxu0 0.0
    %1182 = vmatpush.msra.mxu0 %v688
    %1183 = vmatpush.msra.mxu0 %v680
    %1184 = vmatpush.msra.mxu0 %v672
    %1185 = vmatpush.msra.mxu0 %v664
    %1186 = vmatpush.msra.mxu0 %v656
    %1187 = vmatpush.msra.mxu0 %v648
    %1188 = vmatpush.msra.mxu0 %v640
    %1189 = vmatpush.msra.mxu0 %v632
    %1190 = vmatmul.f32.gmra.mxu0 %v1100
    %v1191 = vpop.f32.mrf.mxu0
    %v1192 = vadd.f32 0.0, %v1191
    %1193 = vmatmul.f32.gmra.mxu0 %v1103
    %v1194 = vpop.f32.mrf.mxu0
    %v1195 = vadd.f32 0.0, %v1194
    %1196 = vdwg.mxu0
    %1197 = vmatpush.msra.mxu0 0.0
    %1198 = vmatpush.msra.mxu0 0.0
    %1199 = vmatpush.msra.mxu0 0.0
    %1200 = vmatpush.msra.mxu0 0.0
    %1201 = vmatpush.msra.mxu0 0.0
    %1202 = vmatpush.msra.mxu0 0.0
    %1203 = vmatpush.msra.mxu0 0.0
    %1204 = vmatpush.msra.mxu0 0.0
    %1205 = vmatpush.msra.mxu0 %v689
    %1206 = vmatpush.msra.mxu0 %v681
    %1207 = vmatpush.msra.mxu0 %v673
    %1208 = vmatpush.msra.mxu0 %v665
    %1209 = vmatpush.msra.mxu0 %v657
    %1210 = vmatpush.msra.mxu0 %v649
    %1211 = vmatpush.msra.mxu0 %v641
    %1212 = vmatpush.msra.mxu0 %v633
    %1213 = vmatmul.f32.gmra.mxu0 %v1100
    %v1214 = vpop.f32.mrf.mxu0
    %v1215 = vadd.f32 0.0, %v1214
    %1216 = vmatmul.f32.gmra.mxu0 %v1103
    %v1217 = vpop.f32.mrf.mxu0
    %v1218 = vadd.f32 0.0, %v1217
    %1219 = vdwg.mxu0
    %1220 = vmatpush.msra.mxu0 0.0
    %1221 = vmatpush.msra.mxu0 0.0
    %1222 = vmatpush.msra.mxu0 0.0
    %1223 = vmatpush.msra.mxu0 0.0
    %1224 = vmatpush.msra.mxu0 0.0
    %1225 = vmatpush.msra.mxu0 0.0
    %1226 = vmatpush.msra.mxu0 0.0
    %1227 = vmatpush.msra.mxu0 0.0
    %1228 = vmatpush.msra.mxu0 %v690
    %1229 = vmatpush.msra.mxu0 %v682
    %1230 = vmatpush.msra.mxu0 %v674
    %1231 = vmatpush.msra.mxu0 %v666
    %1232 = vmatpush.msra.mxu0 %v658
    %1233 = vmatpush.msra.mxu0 %v650
    %1234 = vmatpush.msra.mxu0 %v642
    %1235 = vmatpush.msra.mxu0 %v634
    %1236 = vmatmul.f32.gmra.mxu0 %v1100
    %v1237 = vpop.f32.mrf.mxu0
    %v1238 = vadd.f32 0.0, %v1237
    %1239 = vmatmul.f32.gmra.mxu0 %v1103
    %v1240 = vpop.f32.mrf.mxu0
    %v1241 = vadd.f32 0.0, %v1240
    %1242 = vdwg.mxu0
    %1243 = vmatpush.msra.mxu0 0.0
    %1244 = vmatpush.msra.mxu0 0.0
    %1245 = vmatpush.msra.mxu0 0.0
    %1246 = vmatpush.msra.mxu0 0.0
    %1247 = vmatpush.msra.mxu0 0.0
    %1248 = vmatpush.msra.mxu0 0.0
    %1249 = vmatpush.msra.mxu0 0.0
    %1250 = vmatpush.msra.mxu0 0.0
    %1251 = vmatpush.msra.mxu0 %v691
    %1252 = vmatpush.msra.mxu0 %v683
    %1253 = vmatpush.msra.mxu0 %v675
    %1254 = vmatpush.msra.mxu0 %v667
    %1255 = vmatpush.msra.mxu0 %v659
    %1256 = vmatpush.msra.mxu0 %v651
    %1257 = vmatpush.msra.mxu0 %v643
    %1258 = vmatpush.msra.mxu0 %v635
    %1259 = vmatmul.f32.gmra.mxu0 %v1100
    %v1260 = vpop.f32.mrf.mxu0
    %v1261 = vadd.f32 0.0, %v1260
    %1262 = vmatmul.f32.gmra.mxu0 %v1103
    %v1263 = vpop.f32.mrf.mxu0
    %v1264 = vadd.f32 0.0, %v1263
    %1265 = vdwg.mxu0
    %1266 = vmatpush.msra.mxu0 0.0
    %1267 = vmatpush.msra.mxu0 0.0
    %1268 = vmatpush.msra.mxu0 0.0
    %1269 = vmatpush.msra.mxu0 0.0
    %1270 = vmatpush.msra.mxu0 0.0
    %1271 = vmatpush.msra.mxu0 0.0
    %1272 = vmatpush.msra.mxu0 0.0
    %1273 = vmatpush.msra.mxu0 0.0
    %1274 = vmatpush.msra.mxu0 %v692
    %1275 = vmatpush.msra.mxu0 %v684
    %1276 = vmatpush.msra.mxu0 %v676
    %1277 = vmatpush.msra.mxu0 %v668
    %1278 = vmatpush.msra.mxu0 %v660
    %1279 = vmatpush.msra.mxu0 %v652
    %1280 = vmatpush.msra.mxu0 %v644
    %1281 = vmatpush.msra.mxu0 %v636
    %1282 = vmatmul.f32.gmra.mxu0 %v1100
    %v1283 = vpop.f32.mrf.mxu0
    %v1284 = vadd.f32 0.0, %v1283
    %1285 = vmatmul.f32.gmra.mxu0 %v1103
    %v1286 = vpop.f32.mrf.mxu0
    %v1287 = vadd.f32 0.0, %v1286
    %1288 = vdwg.mxu0
    %v1289 = vmul.f32 %v1083, %v1123
    %v1290 = vmul.f32 %v1084, %v1146
    %v1291 = vmul.f32 %v1085, %v1169
    %v1292 = vmul.f32 %v1086, %v1192
    %v1293 = vmul.f32 %v1087, %v1215
    %v1294 = vmul.f32 %v1088, %v1238
    %v1295 = vmul.f32 %v1089, %v1261
    %v1296 = vmul.f32 %v1090, %v1284
    %v1297 = vmul.f32 %v1091, %v1126
    %v1298 = vmul.f32 %v1092, %v1149
    %v1299 = vmul.f32 %v1093, %v1172
    %v1300 = vmul.f32 %v1094, %v1195
    %v1301 = vmul.f32 %v1095, %v1218
    %v1302 = vmul.f32 %v1096, %v1241
    %v1303 = vmul.f32 %v1097, %v1264
    %v1304 = vmul.f32 %v1098, %v1287
    %v1305 = vld [vmem:[%s13] sm:$0xff]
    %v1307 = vperm.slane %v1305, 0
    %v1308 = vperm.slane %v1305, 1
    %v1309 = vperm.slane %v1305, 2
    %v1310 = vperm.slane %v1305, 3
    %v1311 = vperm.slane %v1305, 4
    %v1312 = vperm.slane %v1305, 5
    %v1313 = vperm.slane %v1305, 6
    %v1314 = vperm.slane %v1305, 7
    %v1323 = vmul.f32 %v1123, %v1307
    %v1324 = vmul.f32 %v1146, %v1308
    %v1325 = vmul.f32 %v1169, %v1309
    %v1326 = vmul.f32 %v1192, %v1310
    %v1327 = vmul.f32 %v1215, %v1311
    %v1328 = vmul.f32 %v1238, %v1312
    %v1329 = vmul.f32 %v1261, %v1313
    %v1330 = vmul.f32 %v1284, %v1314
    %v1331 = vmul.f32 %v1126, %v1307
    %v1332 = vmul.f32 %v1149, %v1308
    %v1333 = vmul.f32 %v1172, %v1309
    %v1334 = vmul.f32 %v1195, %v1310
    %v1335 = vmul.f32 %v1218, %v1311
    %v1336 = vmul.f32 %v1241, %v1312
    %v1337 = vmul.f32 %v1264, %v1313
    %v1338 = vmul.f32 %v1287, %v1314
    %v1339 = vld [vmem:[#allocation2] sm:$0xff]
    %v1340 = vld [vmem:[#allocation2 + $0x8] sm:$0xff]
    %v1342 = vsel %vm305, %v1339, 0
    %v1345 = vsel %vm305, %v1340, 0
    %1347 = vmatpush.msra.mxu0 0.0
    %1348 = vmatpush.msra.mxu0 0.0
    %1349 = vmatpush.msra.mxu0 0.0
    %1350 = vmatpush.msra.mxu0 0.0
    %1351 = vmatpush.msra.mxu0 0.0
    %1352 = vmatpush.msra.mxu0 0.0
    %1353 = vmatpush.msra.mxu0 0.0
    %1354 = vmatpush.msra.mxu0 0.0
    %1355 = vmatpush.msra.mxu0 0.0
    %1356 = vmatpush.msra.mxu0 0.0
    %1357 = vmatpush.msra.mxu0 0.0
    %1358 = vmatpush.msra.mxu0 0.0
    %1359 = vmatpush.msra.mxu0 0.0
    %1360 = vmatpush.msra.mxu0 0.0
    %1361 = vmatpush.msra.mxu0 %v1331
    %1362 = vmatpush.msra.mxu0 %v1323
    %1363 = vmatmul.f32.gmra.mxu0 %v1342
    %v1364 = vpop.f32.mrf.mxu0
    %v1365 = vadd.f32 0.0, %v1364
    %1366 = vmatmul.f32.gmra.mxu0 %v1345
    %v1367 = vpop.f32.mrf.mxu0
    %v1368 = vadd.f32 0.0, %v1367
    %1369 = vdwg.mxu0
    %1370 = vmatpush.msra.mxu0 0.0
    %1371 = vmatpush.msra.mxu0 0.0
    %1372 = vmatpush.msra.mxu0 0.0
    %1373 = vmatpush.msra.mxu0 0.0
    %1374 = vmatpush.msra.mxu0 0.0
    %1375 = vmatpush.msra.mxu0 0.0
    %1376 = vmatpush.msra.mxu0 0.0
    %1377 = vmatpush.msra.mxu0 0.0
    %1378 = vmatpush.msra.mxu0 0.0
    %1379 = vmatpush.msra.mxu0 0.0
    %1380 = vmatpush.msra.mxu0 0.0
    %1381 = vmatpush.msra.mxu0 0.0
    %1382 = vmatpush.msra.mxu0 0.0
    %1383 = vmatpush.msra.mxu0 0.0
    %1384 = vmatpush.msra.mxu0 %v1332
    %1385 = vmatpush.msra.mxu0 %v1324
    %1386 = vmatmul.f32.gmra.mxu0 %v1342
    %v1387 = vpop.f32.mrf.mxu0
    %v1388 = vadd.f32 0.0, %v1387
    %1389 = vmatmul.f32.gmra.mxu0 %v1345
    %v1390 = vpop.f32.mrf.mxu0
    %v1391 = vadd.f32 0.0, %v1390
    %1392 = vdwg.mxu0
    %1393 = vmatpush.msra.mxu0 0.0
    %1394 = vmatpush.msra.mxu0 0.0
    %1395 = vmatpush.msra.mxu0 0.0
    %1396 = vmatpush.msra.mxu0 0.0
    %1397 = vmatpush.msra.mxu0 0.0
    %1398 = vmatpush.msra.mxu0 0.0
    %1399 = vmatpush.msra.mxu0 0.0
    %1400 = vmatpush.msra.mxu0 0.0
    %1401 = vmatpush.msra.mxu0 0.0
    %1402 = vmatpush.msra.mxu0 0.0
    %1403 = vmatpush.msra.mxu0 0.0
    %1404 = vmatpush.msra.mxu0 0.0
    %1405 = vmatpush.msra.mxu0 0.0
    %1406 = vmatpush.msra.mxu0 0.0
    %1407 = vmatpush.msra.mxu0 %v1333
    %1408 = vmatpush.msra.mxu0 %v1325
    %1409 = vmatmul.f32.gmra.mxu0 %v1342
    %v1410 = vpop.f32.mrf.mxu0
    %v1411 = vadd.f32 0.0, %v1410
    %1412 = vmatmul.f32.gmra.mxu0 %v1345
    %v1413 = vpop.f32.mrf.mxu0
    %v1414 = vadd.f32 0.0, %v1413
    %1415 = vdwg.mxu0
    %1416 = vmatpush.msra.mxu0 0.0
    %1417 = vmatpush.msra.mxu0 0.0
    %1418 = vmatpush.msra.mxu0 0.0
    %1419 = vmatpush.msra.mxu0 0.0
    %1420 = vmatpush.msra.mxu0 0.0
    %1421 = vmatpush.msra.mxu0 0.0
    %1422 = vmatpush.msra.mxu0 0.0
    %1423 = vmatpush.msra.mxu0 0.0
    %1424 = vmatpush.msra.mxu0 0.0
    %1425 = vmatpush.msra.mxu0 0.0
    %1426 = vmatpush.msra.mxu0 0.0
    %1427 = vmatpush.msra.mxu0 0.0
    %1428 = vmatpush.msra.mxu0 0.0
    %1429 = vmatpush.msra.mxu0 0.0
    %1430 = vmatpush.msra.mxu0 %v1334
    %1431 = vmatpush.msra.mxu0 %v1326
    %1432 = vmatmul.f32.gmra.mxu0 %v1342
    %v1433 = vpop.f32.mrf.mxu0
    %v1434 = vadd.f32 0.0, %v1433
    %1435 = vmatmul.f32.gmra.mxu0 %v1345
    %v1436 = vpop.f32.mrf.mxu0
    %v1437 = vadd.f32 0.0, %v1436
    %1438 = vdwg.mxu0
    %1439 = vmatpush.msra.mxu0 0.0
    %1440 = vmatpush.msra.mxu0 0.0
    %1441 = vmatpush.msra.mxu0 0.0
    %1442 = vmatpush.msra.mxu0 0.0
    %1443 = vmatpush.msra.mxu0 0.0
    %1444 = vmatpush.msra.mxu0 0.0
    %1445 = vmatpush.msra.mxu0 0.0
    %1446 = vmatpush.msra.mxu0 0.0
    %1447 = vmatpush.msra.mxu0 0.0
    %1448 = vmatpush.msra.mxu0 0.0
    %1449 = vmatpush.msra.mxu0 0.0
    %1450 = vmatpush.msra.mxu0 0.0
    %1451 = vmatpush.msra.mxu0 0.0
    %1452 = vmatpush.msra.mxu0 0.0
    %1453 = vmatpush.msra.mxu0 %v1335
    %1454 = vmatpush.msra.mxu0 %v1327
    %1455 = vmatmul.f32.gmra.mxu0 %v1342
    %v1456 = vpop.f32.mrf.mxu0
    %v1457 = vadd.f32 0.0, %v1456
    %1458 = vmatmul.f32.gmra.mxu0 %v1345
    %v1459 = vpop.f32.mrf.mxu0
    %v1460 = vadd.f32 0.0, %v1459
    %1461 = vdwg.mxu0
    %1462 = vmatpush.msra.mxu0 0.0
    %1463 = vmatpush.msra.mxu0 0.0
    %1464 = vmatpush.msra.mxu0 0.0
    %1465 = vmatpush.msra.mxu0 0.0
    %1466 = vmatpush.msra.mxu0 0.0
    %1467 = vmatpush.msra.mxu0 0.0
    %1468 = vmatpush.msra.mxu0 0.0
    %1469 = vmatpush.msra.mxu0 0.0
    %1470 = vmatpush.msra.mxu0 0.0
    %1471 = vmatpush.msra.mxu0 0.0
    %1472 = vmatpush.msra.mxu0 0.0
    %1473 = vmatpush.msra.mxu0 0.0
    %1474 = vmatpush.msra.mxu0 0.0
    %1475 = vmatpush.msra.mxu0 0.0
    %1476 = vmatpush.msra.mxu0 %v1336
    %1477 = vmatpush.msra.mxu0 %v1328
    %1478 = vmatmul.f32.gmra.mxu0 %v1342
    %v1479 = vpop.f32.mrf.mxu0
    %v1480 = vadd.f32 0.0, %v1479
    %1481 = vmatmul.f32.gmra.mxu0 %v1345
    %v1482 = vpop.f32.mrf.mxu0
    %v1483 = vadd.f32 0.0, %v1482
    %1484 = vdwg.mxu0
    %1485 = vmatpush.msra.mxu0 0.0
    %1486 = vmatpush.msra.mxu0 0.0
    %1487 = vmatpush.msra.mxu0 0.0
    %1488 = vmatpush.msra.mxu0 0.0
    %1489 = vmatpush.msra.mxu0 0.0
    %1490 = vmatpush.msra.mxu0 0.0
    %1491 = vmatpush.msra.mxu0 0.0
    %1492 = vmatpush.msra.mxu0 0.0
    %1493 = vmatpush.msra.mxu0 0.0
    %1494 = vmatpush.msra.mxu0 0.0
    %1495 = vmatpush.msra.mxu0 0.0
    %1496 = vmatpush.msra.mxu0 0.0
    %1497 = vmatpush.msra.mxu0 0.0
    %1498 = vmatpush.msra.mxu0 0.0
    %1499 = vmatpush.msra.mxu0 %v1337
    %1500 = vmatpush.msra.mxu0 %v1329
    %1501 = vmatmul.f32.gmra.mxu0 %v1342
    %v1502 = vpop.f32.mrf.mxu0
    %v1503 = vadd.f32 0.0, %v1502
    %1504 = vmatmul.f32.gmra.mxu0 %v1345
    %v1505 = vpop.f32.mrf.mxu0
    %v1506 = vadd.f32 0.0, %v1505
    %1507 = vdwg.mxu0
    %1508 = vmatpush.msra.mxu0 0.0
    %1509 = vmatpush.msra.mxu0 0.0
    %1510 = vmatpush.msra.mxu0 0.0
    %1511 = vmatpush.msra.mxu0 0.0
    %1512 = vmatpush.msra.mxu0 0.0
    %1513 = vmatpush.msra.mxu0 0.0
    %1514 = vmatpush.msra.mxu0 0.0
    %1515 = vmatpush.msra.mxu0 0.0
    %1516 = vmatpush.msra.mxu0 0.0
    %1517 = vmatpush.msra.mxu0 0.0
    %1518 = vmatpush.msra.mxu0 0.0
    %1519 = vmatpush.msra.mxu0 0.0
    %1520 = vmatpush.msra.mxu0 0.0
    %1521 = vmatpush.msra.mxu0 0.0
    %1522 = vmatpush.msra.mxu0 %v1338
    %1523 = vmatpush.msra.mxu0 %v1330
    %1524 = vmatmul.f32.gmra.mxu0 %v1342
    %v1525 = vpop.f32.mrf.mxu0
    %v1526 = vadd.f32 0.0, %v1525
    %1527 = vmatmul.f32.gmra.mxu0 %v1345
    %v1528 = vpop.f32.mrf.mxu0
    %v1529 = vadd.f32 0.0, %v1528
    %1530 = vdwg.mxu0
    %v1531 = vsub.f32 %v1323, %v1365
    %v1532 = vsub.f32 %v1324, %v1388
    %v1533 = vsub.f32 %v1325, %v1411
    %v1534 = vsub.f32 %v1326, %v1434
    %v1535 = vsub.f32 %v1327, %v1457
    %v1536 = vsub.f32 %v1328, %v1480
    %v1537 = vsub.f32 %v1329, %v1503
    %v1538 = vsub.f32 %v1330, %v1526
    %v1539 = vsub.f32 %v1331, %v1368
    %v1540 = vsub.f32 %v1332, %v1391
    %v1541 = vsub.f32 %v1333, %v1414
    %v1542 = vsub.f32 %v1334, %v1437
    %v1543 = vsub.f32 %v1335, %v1460
    %v1544 = vsub.f32 %v1336, %v1483
    %v1545 = vsub.f32 %v1337, %v1506
    %v1546 = vsub.f32 %v1338, %v1529
    %v1547 = vmin.f32 %v1531, 23.02585
    %v1548 = vmin.f32 %v1532, 23.02585
    %v1549 = vmin.f32 %v1533, 23.02585
    %v1550 = vmin.f32 %v1534, 23.02585
    %v1551 = vmin.f32 %v1535, 23.02585
    %v1552 = vmin.f32 %v1536, 23.02585
    %v1553 = vmin.f32 %v1537, 23.02585
    %v1554 = vmin.f32 %v1538, 23.02585
    %v1555 = vmin.f32 %v1539, 23.02585
    %v1556 = vmin.f32 %v1540, 23.02585
    %v1557 = vmin.f32 %v1541, 23.02585
    %v1558 = vmin.f32 %v1542, 23.02585
    %v1559 = vmin.f32 %v1543, 23.02585
    %v1560 = vmin.f32 %v1544, 23.02585
    %v1561 = vmin.f32 %v1545, 23.02585
    %v1562 = vmin.f32 %v1546, 23.02585
    %v1563 = vmul.f32 %v1547, 1.442695
    %v1564 = vpow.pop %v1563
    %v1565 = vmul.f32 %v1548, 1.442695
    %v1566 = vpow.pop %v1565
    %v1567 = vmul.f32 %v1549, 1.442695
    %v1568 = vpow.pop %v1567
    %v1569 = vmul.f32 %v1550, 1.442695
    %v1570 = vpow.pop %v1569
    %v1571 = vmul.f32 %v1551, 1.442695
    %v1572 = vpow.pop %v1571
    %v1573 = vmul.f32 %v1552, 1.442695
    %v1574 = vpow.pop %v1573
    %v1575 = vmul.f32 %v1553, 1.442695
    %v1576 = vpow.pop %v1575
    %v1577 = vmul.f32 %v1554, 1.442695
    %v1578 = vpow.pop %v1577
    %v1579 = vmul.f32 %v1555, 1.442695
    %v1580 = vpow.pop %v1579
    %v1581 = vmul.f32 %v1556, 1.442695
    %v1582 = vpow.pop %v1581
    %v1583 = vmul.f32 %v1557, 1.442695
    %v1584 = vpow.pop %v1583
    %v1585 = vmul.f32 %v1558, 1.442695
    %v1586 = vpow.pop %v1585
    %v1587 = vmul.f32 %v1559, 1.442695
    %v1588 = vpow.pop %v1587
    %v1589 = vmul.f32 %v1560, 1.442695
    %v1590 = vpow.pop %v1589
    %v1591 = vmul.f32 %v1561, 1.442695
    %v1592 = vpow.pop %v1591
    %v1593 = vmul.f32 %v1562, 1.442695
    %v1594 = vpow.pop %v1593
    %v1595 = vmul.f32 %v1289, %v1564
    %v1596 = vmul.f32 %v1290, %v1566
    %v1597 = vmul.f32 %v1291, %v1568
    %v1598 = vmul.f32 %v1292, %v1570
    %v1599 = vmul.f32 %v1293, %v1572
    %v1600 = vmul.f32 %v1294, %v1574
    %v1601 = vmul.f32 %v1295, %v1576
    %v1602 = vmul.f32 %v1296, %v1578
    %v1603 = vmul.f32 %v1297, %v1580
    %v1604 = vmul.f32 %v1298, %v1582
    %v1605 = vmul.f32 %v1299, %v1584
    %v1606 = vmul.f32 %v1300, %v1586
    %v1607 = vmul.f32 %v1301, %v1588
    %v1608 = vmul.f32 %v1302, %v1590
    %v1609 = vmul.f32 %v1303, %v1592
    %v1610 = vmul.f32 %v1304, %v1594
    %1611 = vmatpush.msra.mxu0 0.0
    %1612 = vmatpush.msra.mxu0 0.0
    %1613 = vmatpush.msra.mxu0 0.0
    %1614 = vmatpush.msra.mxu0 0.0
    %1615 = vmatpush.msra.mxu0 0.0
    %1616 = vmatpush.msra.mxu0 0.0
    %1617 = vmatpush.msra.mxu0 0.0
    %1618 = vmatpush.msra.mxu0 0.0
    %1619 = vmatpush.msra.mxu0 0.0
    %1620 = vmatpush.msra.mxu0 0.0
    %1621 = vmatpush.msra.mxu0 0.0
    %1622 = vmatpush.msra.mxu0 0.0
    %1623 = vmatpush.msra.mxu0 0.0
    %1624 = vmatpush.msra.mxu0 0.0
    %1625 = vmatpush.msra.mxu0 %v1603
    %1626 = vmatpush.msra.mxu0 %v1595
    %1627 = vmatmul.f32.gmra.mxu0 %v1342
    %v1628 = vpop.f32.mrf.mxu0
    %v1629 = vadd.f32 0.0, %v1628
    %1630 = vmatmul.f32.gmra.mxu0 %v1345
    %v1631 = vpop.f32.mrf.mxu0
    %v1632 = vadd.f32 0.0, %v1631
    %1633 = vdwg.mxu0
    %1634 = vmatpush.msra.mxu0 0.0
    %1635 = vmatpush.msra.mxu0 0.0
    %1636 = vmatpush.msra.mxu0 0.0
    %1637 = vmatpush.msra.mxu0 0.0
    %1638 = vmatpush.msra.mxu0 0.0
    %1639 = vmatpush.msra.mxu0 0.0
    %1640 = vmatpush.msra.mxu0 0.0
    %1641 = vmatpush.msra.mxu0 0.0
    %1642 = vmatpush.msra.mxu0 0.0
    %1643 = vmatpush.msra.mxu0 0.0
    %1644 = vmatpush.msra.mxu0 0.0
    %1645 = vmatpush.msra.mxu0 0.0
    %1646 = vmatpush.msra.mxu0 0.0
    %1647 = vmatpush.msra.mxu0 0.0
    %1648 = vmatpush.msra.mxu0 %v1604
    %1649 = vmatpush.msra.mxu0 %v1596
    %1650 = vmatmul.f32.gmra.mxu0 %v1342
    %v1651 = vpop.f32.mrf.mxu0
    %v1652 = vadd.f32 0.0, %v1651
    %1653 = vmatmul.f32.gmra.mxu0 %v1345
    %v1654 = vpop.f32.mrf.mxu0
    %v1655 = vadd.f32 0.0, %v1654
    %1656 = vdwg.mxu0
    %1657 = vmatpush.msra.mxu0 0.0
    %1658 = vmatpush.msra.mxu0 0.0
    %1659 = vmatpush.msra.mxu0 0.0
    %1660 = vmatpush.msra.mxu0 0.0
    %1661 = vmatpush.msra.mxu0 0.0
    %1662 = vmatpush.msra.mxu0 0.0
    %1663 = vmatpush.msra.mxu0 0.0
    %1664 = vmatpush.msra.mxu0 0.0
    %1665 = vmatpush.msra.mxu0 0.0
    %1666 = vmatpush.msra.mxu0 0.0
    %1667 = vmatpush.msra.mxu0 0.0
    %1668 = vmatpush.msra.mxu0 0.0
    %1669 = vmatpush.msra.mxu0 0.0
    %1670 = vmatpush.msra.mxu0 0.0
    %1671 = vmatpush.msra.mxu0 %v1605
    %1672 = vmatpush.msra.mxu0 %v1597
    %1673 = vmatmul.f32.gmra.mxu0 %v1342
    %v1674 = vpop.f32.mrf.mxu0
    %v1675 = vadd.f32 0.0, %v1674
    %1676 = vmatmul.f32.gmra.mxu0 %v1345
    %v1677 = vpop.f32.mrf.mxu0
    %v1678 = vadd.f32 0.0, %v1677
    %1679 = vdwg.mxu0
    %1680 = vmatpush.msra.mxu0 0.0
    %1681 = vmatpush.msra.mxu0 0.0
    %1682 = vmatpush.msra.mxu0 0.0
    %1683 = vmatpush.msra.mxu0 0.0
    %1684 = vmatpush.msra.mxu0 0.0
    %1685 = vmatpush.msra.mxu0 0.0
    %1686 = vmatpush.msra.mxu0 0.0
    %1687 = vmatpush.msra.mxu0 0.0
    %1688 = vmatpush.msra.mxu0 0.0
    %1689 = vmatpush.msra.mxu0 0.0
    %1690 = vmatpush.msra.mxu0 0.0
    %1691 = vmatpush.msra.mxu0 0.0
    %1692 = vmatpush.msra.mxu0 0.0
    %1693 = vmatpush.msra.mxu0 0.0
    %1694 = vmatpush.msra.mxu0 %v1606
    %1695 = vmatpush.msra.mxu0 %v1598
    %1696 = vmatmul.f32.gmra.mxu0 %v1342
    %v1697 = vpop.f32.mrf.mxu0
    %v1698 = vadd.f32 0.0, %v1697
    %1699 = vmatmul.f32.gmra.mxu0 %v1345
    %v1700 = vpop.f32.mrf.mxu0
    %v1701 = vadd.f32 0.0, %v1700
    %1702 = vdwg.mxu0
    %1703 = vmatpush.msra.mxu0 0.0
    %1704 = vmatpush.msra.mxu0 0.0
    %1705 = vmatpush.msra.mxu0 0.0
    %1706 = vmatpush.msra.mxu0 0.0
    %1707 = vmatpush.msra.mxu0 0.0
    %1708 = vmatpush.msra.mxu0 0.0
    %1709 = vmatpush.msra.mxu0 0.0
    %1710 = vmatpush.msra.mxu0 0.0
    %1711 = vmatpush.msra.mxu0 0.0
    %1712 = vmatpush.msra.mxu0 0.0
    %1713 = vmatpush.msra.mxu0 0.0
    %1714 = vmatpush.msra.mxu0 0.0
    %1715 = vmatpush.msra.mxu0 0.0
    %1716 = vmatpush.msra.mxu0 0.0
    %1717 = vmatpush.msra.mxu0 %v1607
    %1718 = vmatpush.msra.mxu0 %v1599
    %1719 = vmatmul.f32.gmra.mxu0 %v1342
    %v1720 = vpop.f32.mrf.mxu0
    %v1721 = vadd.f32 0.0, %v1720
    %1722 = vmatmul.f32.gmra.mxu0 %v1345
    %v1723 = vpop.f32.mrf.mxu0
    %v1724 = vadd.f32 0.0, %v1723
    %1725 = vdwg.mxu0
    %1726 = vmatpush.msra.mxu0 0.0
    %1727 = vmatpush.msra.mxu0 0.0
    %1728 = vmatpush.msra.mxu0 0.0
    %1729 = vmatpush.msra.mxu0 0.0
    %1730 = vmatpush.msra.mxu0 0.0
    %1731 = vmatpush.msra.mxu0 0.0
    %1732 = vmatpush.msra.mxu0 0.0
    %1733 = vmatpush.msra.mxu0 0.0
    %1734 = vmatpush.msra.mxu0 0.0
    %1735 = vmatpush.msra.mxu0 0.0
    %1736 = vmatpush.msra.mxu0 0.0
    %1737 = vmatpush.msra.mxu0 0.0
    %1738 = vmatpush.msra.mxu0 0.0
    %1739 = vmatpush.msra.mxu0 0.0
    %1740 = vmatpush.msra.mxu0 %v1608
    %1741 = vmatpush.msra.mxu0 %v1600
    %1742 = vmatmul.f32.gmra.mxu0 %v1342
    %v1743 = vpop.f32.mrf.mxu0
    %v1744 = vadd.f32 0.0, %v1743
    %1745 = vmatmul.f32.gmra.mxu0 %v1345
    %v1746 = vpop.f32.mrf.mxu0
    %v1747 = vadd.f32 0.0, %v1746
    %1748 = vdwg.mxu0
    %1749 = vmatpush.msra.mxu0 0.0
    %1750 = vmatpush.msra.mxu0 0.0
    %1751 = vmatpush.msra.mxu0 0.0
    %1752 = vmatpush.msra.mxu0 0.0
    %1753 = vmatpush.msra.mxu0 0.0
    %1754 = vmatpush.msra.mxu0 0.0
    %1755 = vmatpush.msra.mxu0 0.0
    %1756 = vmatpush.msra.mxu0 0.0
    %1757 = vmatpush.msra.mxu0 0.0
    %1758 = vmatpush.msra.mxu0 0.0
    %1759 = vmatpush.msra.mxu0 0.0
    %1760 = vmatpush.msra.mxu0 0.0
    %1761 = vmatpush.msra.mxu0 0.0
    %1762 = vmatpush.msra.mxu0 0.0
    %1763 = vmatpush.msra.mxu0 %v1609
    %1764 = vmatpush.msra.mxu0 %v1601
    %1765 = vmatmul.f32.gmra.mxu0 %v1342
    %v1766 = vpop.f32.mrf.mxu0
    %v1767 = vadd.f32 0.0, %v1766
    %1768 = vmatmul.f32.gmra.mxu0 %v1345
    %v1769 = vpop.f32.mrf.mxu0
    %v1770 = vadd.f32 0.0, %v1769
    %1771 = vdwg.mxu0
    %1772 = vmatpush.msra.mxu0 0.0
    %1773 = vmatpush.msra.mxu0 0.0
    %1774 = vmatpush.msra.mxu0 0.0
    %1775 = vmatpush.msra.mxu0 0.0
    %1776 = vmatpush.msra.mxu0 0.0
    %1777 = vmatpush.msra.mxu0 0.0
    %1778 = vmatpush.msra.mxu0 0.0
    %1779 = vmatpush.msra.mxu0 0.0
    %1780 = vmatpush.msra.mxu0 0.0
    %1781 = vmatpush.msra.mxu0 0.0
    %1782 = vmatpush.msra.mxu0 0.0
    %1783 = vmatpush.msra.mxu0 0.0
    %1784 = vmatpush.msra.mxu0 0.0
    %1785 = vmatpush.msra.mxu0 0.0
    %1786 = vmatpush.msra.mxu0 %v1610
    %1787 = vmatpush.msra.mxu0 %v1602
    %1788 = vmatmul.f32.gmra.mxu0 %v1342
    %v1789 = vpop.f32.mrf.mxu0
    %v1790 = vadd.f32 0.0, %v1789
    %1791 = vmatmul.f32.gmra.mxu0 %v1345
    %v1792 = vpop.f32.mrf.mxu0
    %v1793 = vadd.f32 0.0, %v1792
    %1794 = vdwg.mxu0
    %v1795 = vsub.f32 0.0, %v1531
    %v1796 = vsub.f32 0.0, %v1532
    %v1797 = vsub.f32 0.0, %v1533
    %v1798 = vsub.f32 0.0, %v1534
    %v1799 = vsub.f32 0.0, %v1535
    %v1800 = vsub.f32 0.0, %v1536
    %v1801 = vsub.f32 0.0, %v1537
    %v1802 = vsub.f32 0.0, %v1538
    %v1803 = vsub.f32 0.0, %v1539
    %v1804 = vsub.f32 0.0, %v1540
    %v1805 = vsub.f32 0.0, %v1541
    %v1806 = vsub.f32 0.0, %v1542
    %v1807 = vsub.f32 0.0, %v1543
    %v1808 = vsub.f32 0.0, %v1544
    %v1809 = vsub.f32 0.0, %v1545
    %v1810 = vsub.f32 0.0, %v1546
    %v1811 = vmul.f32 %v1795, 1.442695
    %v1812 = vpow.pop %v1811
    %v1813 = vmul.f32 %v1796, 1.442695
    %v1814 = vpow.pop %v1813
    %v1815 = vmul.f32 %v1797, 1.442695
    %v1816 = vpow.pop %v1815
    %v1817 = vmul.f32 %v1798, 1.442695
    %v1818 = vpow.pop %v1817
    %v1819 = vmul.f32 %v1799, 1.442695
    %v1820 = vpow.pop %v1819
    %v1821 = vmul.f32 %v1800, 1.442695
    %v1822 = vpow.pop %v1821
    %v1823 = vmul.f32 %v1801, 1.442695
    %v1824 = vpow.pop %v1823
    %v1825 = vmul.f32 %v1802, 1.442695
    %v1826 = vpow.pop %v1825
    %v1827 = vmul.f32 %v1803, 1.442695
    %v1828 = vpow.pop %v1827
    %v1829 = vmul.f32 %v1804, 1.442695
    %v1830 = vpow.pop %v1829
    %v1831 = vmul.f32 %v1805, 1.442695
    %v1832 = vpow.pop %v1831
    %v1833 = vmul.f32 %v1806, 1.442695
    %v1834 = vpow.pop %v1833
    %v1835 = vmul.f32 %v1807, 1.442695
    %v1836 = vpow.pop %v1835
    %v1837 = vmul.f32 %v1808, 1.442695
    %v1838 = vpow.pop %v1837
    %v1839 = vmul.f32 %v1809, 1.442695
    %v1840 = vpow.pop %v1839
    %v1841 = vmul.f32 %v1810, 1.442695
    %v1842 = vpow.pop %v1841
    %v1843 = vmul.f32 %v1629, %v1812
    %v1844 = vmul.f32 %v1652, %v1814
    %v1845 = vmul.f32 %v1675, %v1816
    %v1846 = vmul.f32 %v1698, %v1818
    %v1847 = vmul.f32 %v1721, %v1820
    %v1848 = vmul.f32 %v1744, %v1822
    %v1849 = vmul.f32 %v1767, %v1824
    %v1850 = vmul.f32 %v1790, %v1826
    %v1851 = vmul.f32 %v1632, %v1828
    %v1852 = vmul.f32 %v1655, %v1830
    %v1853 = vmul.f32 %v1678, %v1832
    %v1854 = vmul.f32 %v1701, %v1834
    %v1855 = vmul.f32 %v1724, %v1836
    %v1856 = vmul.f32 %v1747, %v1838
    %v1857 = vmul.f32 %v1770, %v1840
    %v1858 = vmul.f32 %v1793, %v1842
    %v1859 = vld [vmem:[%s1] sm:$0xff]
    %v1860 = vld [vmem:[%s1 + $0x8] sm:$0xff]
    %v1861 = vld [vmem:[%s1 + $0x10] sm:$0xff]
    %v1862 = vld [vmem:[%s1 + $0x18] sm:$0xff]
    %v1863 = vld [vmem:[%s1 + $0x20] sm:$0xff]
    %v1864 = vld [vmem:[%s1 + $0x28] sm:$0xff]
    %v1865 = vld [vmem:[%s1 + $0x30] sm:$0xff]
    %v1866 = vld [vmem:[%s1 + $0x38] sm:$0xff]
    %v1867 = vld [vmem:[%s1 + $0x40] sm:$0xff]
    %v1868 = vld [vmem:[%s1 + $0x48] sm:$0xff]
    %v1869 = vld [vmem:[%s1 + $0x50] sm:$0xff]
    %v1870 = vld [vmem:[%s1 + $0x58] sm:$0xff]
    %v1871 = vld [vmem:[%s1 + $0x60] sm:$0xff]
    %v1872 = vld [vmem:[%s1 + $0x68] sm:$0xff]
    %v1873 = vld [vmem:[%s1 + $0x70] sm:$0xff]
    %v1874 = vld [vmem:[%s1 + $0x78] sm:$0xff]
    %v1875 = vmul.f32 %v1365, 1.442695
    %v1876 = vpow.pop %v1875
    %v1877 = vmul.f32 %v1388, 1.442695
    %v1878 = vpow.pop %v1877
    %v1879 = vmul.f32 %v1411, 1.442695
    %v1880 = vpow.pop %v1879
    %v1881 = vmul.f32 %v1434, 1.442695
    %v1882 = vpow.pop %v1881
    %v1883 = vmul.f32 %v1457, 1.442695
    %v1884 = vpow.pop %v1883
    %v1885 = vmul.f32 %v1480, 1.442695
    %v1886 = vpow.pop %v1885
    %v1887 = vmul.f32 %v1503, 1.442695
    %v1888 = vpow.pop %v1887
    %v1889 = vmul.f32 %v1526, 1.442695
    %v1890 = vpow.pop %v1889
    %v1891 = vmul.f32 %v1368, 1.442695
    %v1892 = vpow.pop %v1891
    %v1893 = vmul.f32 %v1391, 1.442695
    %v1894 = vpow.pop %v1893
    %v1895 = vmul.f32 %v1414, 1.442695
    %v1896 = vpow.pop %v1895
    %v1897 = vmul.f32 %v1437, 1.442695
    %v1898 = vpow.pop %v1897
    %v1899 = vmul.f32 %v1460, 1.442695
    %v1900 = vpow.pop %v1899
    %v1901 = vmul.f32 %v1483, 1.442695
    %v1902 = vpow.pop %v1901
    %v1903 = vmul.f32 %v1506, 1.442695
    %v1904 = vpow.pop %v1903
    %v1905 = vmul.f32 %v1529, 1.442695
    %v1906 = vpow.pop %v1905
    %v1907 = vmul.f32 %v1859, %v1876
    %v1908 = vmul.f32 %v1860, %v1878
    %v1909 = vmul.f32 %v1861, %v1880
    %v1910 = vmul.f32 %v1862, %v1882
    %v1911 = vmul.f32 %v1863, %v1884
    %v1912 = vmul.f32 %v1864, %v1886
    %v1913 = vmul.f32 %v1865, %v1888
    %v1914 = vmul.f32 %v1866, %v1890
    %v1915 = vmul.f32 %v1867, %v1892
    %v1916 = vmul.f32 %v1868, %v1894
    %v1917 = vmul.f32 %v1869, %v1896
    %v1918 = vmul.f32 %v1870, %v1898
    %v1919 = vmul.f32 %v1871, %v1900
    %v1920 = vmul.f32 %v1872, %v1902
    %v1921 = vmul.f32 %v1873, %v1904
    %v1922 = vmul.f32 %v1874, %v1906
    %v1923 = vadd.f32 %v1843, %v1907
    %v1924 = vadd.f32 %v1844, %v1908
    %v1925 = vadd.f32 %v1845, %v1909
    %v1926 = vadd.f32 %v1846, %v1910
    %v1927 = vadd.f32 %v1847, %v1911
    %v1928 = vadd.f32 %v1848, %v1912
    %v1929 = vadd.f32 %v1849, %v1913
    %v1930 = vadd.f32 %v1850, %v1914
    %v1931 = vadd.f32 %v1851, %v1915
    %v1932 = vadd.f32 %v1852, %v1916
    %v1933 = vadd.f32 %v1853, %v1917
    %v1934 = vadd.f32 %v1854, %v1918
    %v1935 = vadd.f32 %v1855, %v1919
    %v1936 = vadd.f32 %v1856, %v1920
    %v1937 = vadd.f32 %v1857, %v1921
    %v1938 = vadd.f32 %v1858, %v1922
    %v1939 = vld [vmem:[#allocation8] sm:$0x3]
    %v1941 = vsel %vm305, %v1939, 0
    %1943 = vmatpush.msra.mxu0 0.0
    %1944 = vmatpush.msra.mxu0 0.0
    %1945 = vmatpush.msra.mxu0 0.0
    %1946 = vmatpush.msra.mxu0 0.0
    %1947 = vmatpush.msra.mxu0 0.0
    %1948 = vmatpush.msra.mxu0 0.0
    %1949 = vmatpush.msra.mxu0 0.0
    %1950 = vmatpush.msra.mxu0 0.0
    %1951 = vmatpush.msra.mxu0 0.0
    %1952 = vmatpush.msra.mxu0 0.0
    %1953 = vmatpush.msra.mxu0 0.0
    %1954 = vmatpush.msra.mxu0 0.0
    %1955 = vmatpush.msra.mxu0 0.0
    %1956 = vmatpush.msra.mxu0 0.0
    %1957 = vmatpush.msra.mxu0 %v1931
    %1958 = vmatpush.msra.mxu0 %v1923
    %1959 = vmatmul.f32.gmra.mxu0 %v1941
    %v1960 = vpop.f32.mrf.mxu0
    %v1961 = vadd.f32 0.0, %v1960
    %1962 = vdwg.mxu0
    %1963 = vmatpush.msra.mxu0 0.0
    %1964 = vmatpush.msra.mxu0 0.0
    %1965 = vmatpush.msra.mxu0 0.0
    %1966 = vmatpush.msra.mxu0 0.0
    %1967 = vmatpush.msra.mxu0 0.0
    %1968 = vmatpush.msra.mxu0 0.0
    %1969 = vmatpush.msra.mxu0 0.0
    %1970 = vmatpush.msra.mxu0 0.0
    %1971 = vmatpush.msra.mxu0 0.0
    %1972 = vmatpush.msra.mxu0 0.0
    %1973 = vmatpush.msra.mxu0 0.0
    %1974 = vmatpush.msra.mxu0 0.0
    %1975 = vmatpush.msra.mxu0 0.0
    %1976 = vmatpush.msra.mxu0 0.0
    %1977 = vmatpush.msra.mxu0 %v1932
    %1978 = vmatpush.msra.mxu0 %v1924
    %1979 = vmatmul.f32.gmra.mxu0 %v1941
    %v1980 = vpop.f32.mrf.mxu0
    %v1981 = vadd.f32 0.0, %v1980
    %1982 = vdwg.mxu0
    %1983 = vmatpush.msra.mxu0 0.0
    %1984 = vmatpush.msra.mxu0 0.0
    %1985 = vmatpush.msra.mxu0 0.0
    %1986 = vmatpush.msra.mxu0 0.0
    %1987 = vmatpush.msra.mxu0 0.0
    %1988 = vmatpush.msra.mxu0 0.0
    %1989 = vmatpush.msra.mxu0 0.0
    %1990 = vmatpush.msra.mxu0 0.0
    %1991 = vmatpush.msra.mxu0 0.0
    %1992 = vmatpush.msra.mxu0 0.0
    %1993 = vmatpush.msra.mxu0 0.0
    %1994 = vmatpush.msra.mxu0 0.0
    %1995 = vmatpush.msra.mxu0 0.0
    %1996 = vmatpush.msra.mxu0 0.0
    %1997 = vmatpush.msra.mxu0 %v1933
    %1998 = vmatpush.msra.mxu0 %v1925
    %1999 = vmatmul.f32.gmra.mxu0 %v1941
    %v2000 = vpop.f32.mrf.mxu0
    %v2001 = vadd.f32 0.0, %v2000
    %2002 = vdwg.mxu0
    %2003 = vmatpush.msra.mxu0 0.0
    %2004 = vmatpush.msra.mxu0 0.0
    %2005 = vmatpush.msra.mxu0 0.0
    %2006 = vmatpush.msra.mxu0 0.0
    %2007 = vmatpush.msra.mxu0 0.0
    %2008 = vmatpush.msra.mxu0 0.0
    %2009 = vmatpush.msra.mxu0 0.0
    %2010 = vmatpush.msra.mxu0 0.0
    %2011 = vmatpush.msra.mxu0 0.0
    %2012 = vmatpush.msra.mxu0 0.0
    %2013 = vmatpush.msra.mxu0 0.0
    %2014 = vmatpush.msra.mxu0 0.0
    %2015 = vmatpush.msra.mxu0 0.0
    %2016 = vmatpush.msra.mxu0 0.0
    %2017 = vmatpush.msra.mxu0 %v1934
    %2018 = vmatpush.msra.mxu0 %v1926
    %2019 = vmatmul.f32.gmra.mxu0 %v1941
    %v2020 = vpop.f32.mrf.mxu0
    %v2021 = vadd.f32 0.0, %v2020
    %2022 = vdwg.mxu0
    %2023 = vmatpush.msra.mxu0 0.0
    %2024 = vmatpush.msra.mxu0 0.0
    %2025 = vmatpush.msra.mxu0 0.0
    %2026 = vmatpush.msra.mxu0 0.0
    %2027 = vmatpush.msra.mxu0 0.0
    %2028 = vmatpush.msra.mxu0 0.0
    %2029 = vmatpush.msra.mxu0 0.0
    %2030 = vmatpush.msra.mxu0 0.0
    %2031 = vmatpush.msra.mxu0 0.0
    %2032 = vmatpush.msra.mxu0 0.0
    %2033 = vmatpush.msra.mxu0 0.0
    %2034 = vmatpush.msra.mxu0 0.0
    %2035 = vmatpush.msra.mxu0 0.0
    %2036 = vmatpush.msra.mxu0 0.0
    %2037 = vmatpush.msra.mxu0 %v1935
    %2038 = vmatpush.msra.mxu0 %v1927
    %2039 = vmatmul.f32.gmra.mxu0 %v1941
    %v2040 = vpop.f32.mrf.mxu0
    %v2041 = vadd.f32 0.0, %v2040
    %2042 = vdwg.mxu0
    %2043 = vmatpush.msra.mxu0 0.0
    %2044 = vmatpush.msra.mxu0 0.0
    %2045 = vmatpush.msra.mxu0 0.0
    %2046 = vmatpush.msra.mxu0 0.0
    %2047 = vmatpush.msra.mxu0 0.0
    %2048 = vmatpush.msra.mxu0 0.0
    %2049 = vmatpush.msra.mxu0 0.0
    %2050 = vmatpush.msra.mxu0 0.0
    %2051 = vmatpush.msra.mxu0 0.0
    %2052 = vmatpush.msra.mxu0 0.0
    %2053 = vmatpush.msra.mxu0 0.0
    %2054 = vmatpush.msra.mxu0 0.0
    %2055 = vmatpush.msra.mxu0 0.0
    %2056 = vmatpush.msra.mxu0 0.0
    %2057 = vmatpush.msra.mxu0 %v1936
    %2058 = vmatpush.msra.mxu0 %v1928
    %2059 = vmatmul.f32.gmra.mxu0 %v1941
    %v2060 = vpop.f32.mrf.mxu0
    %v2061 = vadd.f32 0.0, %v2060
    %2062 = vdwg.mxu0
    %2063 = vmatpush.msra.mxu0 0.0
    %2064 = vmatpush.msra.mxu0 0.0
    %2065 = vmatpush.msra.mxu0 0.0
    %2066 = vmatpush.msra.mxu0 0.0
    %2067 = vmatpush.msra.mxu0 0.0
    %2068 = vmatpush.msra.mxu0 0.0
    %2069 = vmatpush.msra.mxu0 0.0
    %2070 = vmatpush.msra.mxu0 0.0
    %2071 = vmatpush.msra.mxu0 0.0
    %2072 = vmatpush.msra.mxu0 0.0
    %2073 = vmatpush.msra.mxu0 0.0
    %2074 = vmatpush.msra.mxu0 0.0
    %2075 = vmatpush.msra.mxu0 0.0
    %2076 = vmatpush.msra.mxu0 0.0
    %2077 = vmatpush.msra.mxu0 %v1937
    %2078 = vmatpush.msra.mxu0 %v1929
    %2079 = vmatmul.f32.gmra.mxu0 %v1941
    %v2080 = vpop.f32.mrf.mxu0
    %v2081 = vadd.f32 0.0, %v2080
    %2082 = vdwg.mxu0
    %2083 = vmatpush.msra.mxu0 0.0
    %2084 = vmatpush.msra.mxu0 0.0
    %2085 = vmatpush.msra.mxu0 0.0
    %2086 = vmatpush.msra.mxu0 0.0
    %2087 = vmatpush.msra.mxu0 0.0
    %2088 = vmatpush.msra.mxu0 0.0
    %2089 = vmatpush.msra.mxu0 0.0
    %2090 = vmatpush.msra.mxu0 0.0
    %2091 = vmatpush.msra.mxu0 0.0
    %2092 = vmatpush.msra.mxu0 0.0
    %2093 = vmatpush.msra.mxu0 0.0
    %2094 = vmatpush.msra.mxu0 0.0
    %2095 = vmatpush.msra.mxu0 0.0
    %2096 = vmatpush.msra.mxu0 0.0
    %2097 = vmatpush.msra.mxu0 %v1938
    %2098 = vmatpush.msra.mxu0 %v1930
    %2099 = vmatmul.f32.gmra.mxu0 %v1941
    %v2100 = vpop.f32.mrf.mxu0
    %v2101 = vadd.f32 0.0, %v2100
    %2102 = vdwg.mxu0
    %v2111 = vrot.slane %v1981, 6
    %v2112 = vrot.slane %v2001, 4
    %v2113 = vrot.slane %v2021, 2
    %v2114 = vrot.slane %v2061, 6
    %v2115 = vrot.slane %v2081, 4
    %v2116 = vrot.slane %v2101, 2
    %vm2117 = vcmask 1041408
    %v2118 = vsel %vm2117, %v1961, %v2111
    %vm2119 = vcmask 1045508
    %v2120 = vsel %vm2119, %v2112, %v2113
    %vm2121 = vcmask 1043456
    %v2122 = vsel %vm2121, %v2118, %v2120
    %v2123 = vsel %vm2117, %v2041, %v2114
    %v2124 = vsel %vm2119, %v2115, %v2116
    %v2125 = vsel %vm2121, %v2123, %v2124
    %2128 = vst [vmem:[#allocation18] sm:$0xff] %v2122
    %2129 = vst [vmem:[#allocation18 + $0x8] sm:$0xff] %v2125
    %v2130 = vld [vmem:[#allocation7] sm:$0xff]
    %v2131 = vld [vmem:[#allocation7 + $0x8] sm:$0xff]
    %v2132 = vld [vmem:[#allocation7 + $0x10] sm:$0xff]
    %v2133 = vld [vmem:[#allocation7 + $0x18] sm:$0xff]
    %v2134 = vld [vmem:[#allocation7 + $0x20] sm:$0xff]
    %v2135 = vld [vmem:[#allocation7 + $0x28] sm:$0xff]
    %v2136 = vld [vmem:[#allocation7 + $0x30] sm:$0xff]
    %v2137 = vld [vmem:[#allocation7 + $0x38] sm:$0xff]
    %v2138 = vld [vmem:[#allocation7 + $0x40] sm:$0xff]
    %v2139 = vld [vmem:[#allocation7 + $0x48] sm:$0xff]
    %v2140 = vld [vmem:[#allocation7 + $0x50] sm:$0xff]
    %v2141 = vld [vmem:[#allocation7 + $0x58] sm:$0xff]
    %v2142 = vld [vmem:[#allocation7 + $0x60] sm:$0xff]
    %v2143 = vld [vmem:[#allocation7 + $0x68] sm:$0xff]
    %v2144 = vld [vmem:[#allocation7 + $0x70] sm:$0xff]
    %v2145 = vld [vmem:[#allocation7 + $0x78] sm:$0xff]
    %v2147 = vsel %vm305, %v624, 0
    %v2150 = vsel %vm305, %v627, 0
    %2152 = vmatpush.msra.mxu0 0.0
    %2153 = vmatpush.msra.mxu0 0.0
    %2154 = vmatpush.msra.mxu0 0.0
    %2155 = vmatpush.msra.mxu0 0.0
    %2156 = vmatpush.msra.mxu0 0.0
    %2157 = vmatpush.msra.mxu0 0.0
    %2158 = vmatpush.msra.mxu0 0.0
    %2159 = vmatpush.msra.mxu0 0.0
    %2160 = vmatpush.msra.mxu0 0.0
    %2161 = vmatpush.msra.mxu0 0.0
    %2162 = vmatpush.msra.mxu0 0.0
    %2163 = vmatpush.msra.mxu0 0.0
    %2164 = vmatpush.msra.mxu0 0.0
    %2165 = vmatpush.msra.mxu0 0.0
    %2166 = vmatpush.msra.mxu0 %v2138
    %2167 = vmatpush.msra.mxu0 %v2130
    %2168 = vmatmul.f32.gmra.mxu0 %v2147
    %v2169 = vpop.f32.mrf.mxu0
    %v2170 = vadd.f32 0.0, %v2169
    %2171 = vmatmul.f32.gmra.mxu0 %v2150
    %v2172 = vpop.f32.mrf.mxu0
    %v2173 = vadd.f32 0.0, %v2172
    %2174 = vdwg.mxu0
    %2175 = vmatpush.msra.mxu0 0.0
    %2176 = vmatpush.msra.mxu0 0.0
    %2177 = vmatpush.msra.mxu0 0.0
    %2178 = vmatpush.msra.mxu0 0.0
    %2179 = vmatpush.msra.mxu0 0.0
    %2180 = vmatpush.msra.mxu0 0.0
    %2181 = vmatpush.msra.mxu0 0.0
    %2182 = vmatpush.msra.mxu0 0.0
    %2183 = vmatpush.msra.mxu0 0.0
    %2184 = vmatpush.msra.mxu0 0.0
    %2185 = vmatpush.msra.mxu0 0.0
    %2186 = vmatpush.msra.mxu0 0.0
    %2187 = vmatpush.msra.mxu0 0.0
    %2188 = vmatpush.msra.mxu0 0.0
    %2189 = vmatpush.msra.mxu0 %v2139
    %2190 = vmatpush.msra.mxu0 %v2131
    %2191 = vmatmul.f32.gmra.mxu0 %v2147
    %v2192 = vpop.f32.mrf.mxu0
    %v2193 = vadd.f32 0.0, %v2192
    %2194 = vmatmul.f32.gmra.mxu0 %v2150
    %v2195 = vpop.f32.mrf.mxu0
    %v2196 = vadd.f32 0.0, %v2195
    %2197 = vdwg.mxu0
    %2198 = vmatpush.msra.mxu0 0.0
    %2199 = vmatpush.msra.mxu0 0.0
    %2200 = vmatpush.msra.mxu0 0.0
    %2201 = vmatpush.msra.mxu0 0.0
    %2202 = vmatpush.msra.mxu0 0.0
    %2203 = vmatpush.msra.mxu0 0.0
    %2204 = vmatpush.msra.mxu0 0.0
    %2205 = vmatpush.msra.mxu0 0.0
    %2206 = vmatpush.msra.mxu0 0.0
    %2207 = vmatpush.msra.mxu0 0.0
    %2208 = vmatpush.msra.mxu0 0.0
    %2209 = vmatpush.msra.mxu0 0.0
    %2210 = vmatpush.msra.mxu0 0.0
    %2211 = vmatpush.msra.mxu0 0.0
    %2212 = vmatpush.msra.mxu0 %v2140
    %2213 = vmatpush.msra.mxu0 %v2132
    %2214 = vmatmul.f32.gmra.mxu0 %v2147
    %v2215 = vpop.f32.mrf.mxu0
    %v2216 = vadd.f32 0.0, %v2215
    %2217 = vmatmul.f32.gmra.mxu0 %v2150
    %v2218 = vpop.f32.mrf.mxu0
    %v2219 = vadd.f32 0.0, %v2218
    %2220 = vdwg.mxu0
    %2221 = vmatpush.msra.mxu0 0.0
    %2222 = vmatpush.msra.mxu0 0.0
    %2223 = vmatpush.msra.mxu0 0.0
    %2224 = vmatpush.msra.mxu0 0.0
    %2225 = vmatpush.msra.mxu0 0.0
    %2226 = vmatpush.msra.mxu0 0.0
    %2227 = vmatpush.msra.mxu0 0.0
    %2228 = vmatpush.msra.mxu0 0.0
    %2229 = vmatpush.msra.mxu0 0.0
    %2230 = vmatpush.msra.mxu0 0.0
    %2231 = vmatpush.msra.mxu0 0.0
    %2232 = vmatpush.msra.mxu0 0.0
    %2233 = vmatpush.msra.mxu0 0.0
    %2234 = vmatpush.msra.mxu0 0.0
    %2235 = vmatpush.msra.mxu0 %v2141
    %2236 = vmatpush.msra.mxu0 %v2133
    %2237 = vmatmul.f32.gmra.mxu0 %v2147
    %v2238 = vpop.f32.mrf.mxu0
    %v2239 = vadd.f32 0.0, %v2238
    %2240 = vmatmul.f32.gmra.mxu0 %v2150
    %v2241 = vpop.f32.mrf.mxu0
    %v2242 = vadd.f32 0.0, %v2241
    %2243 = vdwg.mxu0
    %2244 = vmatpush.msra.mxu0 0.0
    %2245 = vmatpush.msra.mxu0 0.0
    %2246 = vmatpush.msra.mxu0 0.0
    %2247 = vmatpush.msra.mxu0 0.0
    %2248 = vmatpush.msra.mxu0 0.0
    %2249 = vmatpush.msra.mxu0 0.0
    %2250 = vmatpush.msra.mxu0 0.0
    %2251 = vmatpush.msra.mxu0 0.0
    %2252 = vmatpush.msra.mxu0 0.0
    %2253 = vmatpush.msra.mxu0 0.0
    %2254 = vmatpush.msra.mxu0 0.0
    %2255 = vmatpush.msra.mxu0 0.0
    %2256 = vmatpush.msra.mxu0 0.0
    %2257 = vmatpush.msra.mxu0 0.0
    %2258 = vmatpush.msra.mxu0 %v2142
    %2259 = vmatpush.msra.mxu0 %v2134
    %2260 = vmatmul.f32.gmra.mxu0 %v2147
    %v2261 = vpop.f32.mrf.mxu0
    %v2262 = vadd.f32 0.0, %v2261
    %2263 = vmatmul.f32.gmra.mxu0 %v2150
    %v2264 = vpop.f32.mrf.mxu0
    %v2265 = vadd.f32 0.0, %v2264
    %2266 = vdwg.mxu0
    %2267 = vmatpush.msra.mxu0 0.0
    %2268 = vmatpush.msra.mxu0 0.0
    %2269 = vmatpush.msra.mxu0 0.0
    %2270 = vmatpush.msra.mxu0 0.0
    %2271 = vmatpush.msra.mxu0 0.0
    %2272 = vmatpush.msra.mxu0 0.0
    %2273 = vmatpush.msra.mxu0 0.0
    %2274 = vmatpush.msra.mxu0 0.0
    %2275 = vmatpush.msra.mxu0 0.0
    %2276 = vmatpush.msra.mxu0 0.0
    %2277 = vmatpush.msra.mxu0 0.0
    %2278 = vmatpush.msra.mxu0 0.0
    %2279 = vmatpush.msra.mxu0 0.0
    %2280 = vmatpush.msra.mxu0 0.0
    %2281 = vmatpush.msra.mxu0 %v2143
    %2282 = vmatpush.msra.mxu0 %v2135
    %2283 = vmatmul.f32.gmra.mxu0 %v2147
    %v2284 = vpop.f32.mrf.mxu0
    %v2285 = vadd.f32 0.0, %v2284
    %2286 = vmatmul.f32.gmra.mxu0 %v2150
    %v2287 = vpop.f32.mrf.mxu0
    %v2288 = vadd.f32 0.0, %v2287
    %2289 = vdwg.mxu0
    %2290 = vmatpush.msra.mxu0 0.0
    %2291 = vmatpush.msra.mxu0 0.0
    %2292 = vmatpush.msra.mxu0 0.0
    %2293 = vmatpush.msra.mxu0 0.0
    %2294 = vmatpush.msra.mxu0 0.0
    %2295 = vmatpush.msra.mxu0 0.0
    %2296 = vmatpush.msra.mxu0 0.0
    %2297 = vmatpush.msra.mxu0 0.0
    %2298 = vmatpush.msra.mxu0 0.0
    %2299 = vmatpush.msra.mxu0 0.0
    %2300 = vmatpush.msra.mxu0 0.0
    %2301 = vmatpush.msra.mxu0 0.0
    %2302 = vmatpush.msra.mxu0 0.0
    %2303 = vmatpush.msra.mxu0 0.0
    %2304 = vmatpush.msra.mxu0 %v2144
    %2305 = vmatpush.msra.mxu0 %v2136
    %2306 = vmatmul.f32.gmra.mxu0 %v2147
    %v2307 = vpop.f32.mrf.mxu0
    %v2308 = vadd.f32 0.0, %v2307
    %2309 = vmatmul.f32.gmra.mxu0 %v2150
    %v2310 = vpop.f32.mrf.mxu0
    %v2311 = vadd.f32 0.0, %v2310
    %2312 = vdwg.mxu0
    %2313 = vmatpush.msra.mxu0 0.0
    %2314 = vmatpush.msra.mxu0 0.0
    %2315 = vmatpush.msra.mxu0 0.0
    %2316 = vmatpush.msra.mxu0 0.0
    %2317 = vmatpush.msra.mxu0 0.0
    %2318 = vmatpush.msra.mxu0 0.0
    %2319 = vmatpush.msra.mxu0 0.0
    %2320 = vmatpush.msra.mxu0 0.0
    %2321 = vmatpush.msra.mxu0 0.0
    %2322 = vmatpush.msra.mxu0 0.0
    %2323 = vmatpush.msra.mxu0 0.0
    %2324 = vmatpush.msra.mxu0 0.0
    %2325 = vmatpush.msra.mxu0 0.0
    %2326 = vmatpush.msra.mxu0 0.0
    %2327 = vmatpush.msra.mxu0 %v2145
    %2328 = vmatpush.msra.mxu0 %v2137
    %2329 = vmatmul.f32.gmra.mxu0 %v2147
    %v2330 = vpop.f32.mrf.mxu0
    %v2331 = vadd.f32 0.0, %v2330
    %2332 = vmatmul.f32.gmra.mxu0 %v2150
    %v2333 = vpop.f32.mrf.mxu0
    %v2334 = vadd.f32 0.0, %v2333
    %2335 = vdwg.mxu0
    %v2336 = vmul.f32 %v1923, %v2170
    %v2337 = vmul.f32 %v1924, %v2193
    %v2338 = vmul.f32 %v1925, %v2216
    %v2339 = vmul.f32 %v1926, %v2239
    %v2340 = vmul.f32 %v1927, %v2262
    %v2341 = vmul.f32 %v1928, %v2285
    %v2342 = vmul.f32 %v1929, %v2308
    %v2343 = vmul.f32 %v1930, %v2331
    %v2344 = vmul.f32 %v1931, %v2173
    %v2345 = vmul.f32 %v1932, %v2196
    %v2346 = vmul.f32 %v1933, %v2219
    %v2347 = vmul.f32 %v1934, %v2242
    %v2348 = vmul.f32 %v1935, %v2265
    %v2349 = vmul.f32 %v1936, %v2288
    %v2350 = vmul.f32 %v1937, %v2311
    %v2351 = vmul.f32 %v1938, %v2334
    %v2352 = vld [vmem:[#allocation5] sm:$0xff]
    %v2353 = vld [vmem:[#allocation5 + $0x8] sm:$0xff]
    %v2354 = vld [vmem:[#allocation5 + $0x10] sm:$0xff]
    %v2355 = vld [vmem:[#allocation5 + $0x18] sm:$0xff]
    %v2356 = vld [vmem:[#allocation5 + $0x20] sm:$0xff]
    %v2357 = vld [vmem:[#allocation5 + $0x28] sm:$0xff]
    %v2358 = vld [vmem:[#allocation5 + $0x30] sm:$0xff]
    %v2359 = vld [vmem:[#allocation5 + $0x38] sm:$0xff]
    %v2360 = vld [vmem:[#allocation5 + $0x40] sm:$0xff]
    %v2361 = vld [vmem:[#allocation5 + $0x48] sm:$0xff]
    %v2362 = vld [vmem:[#allocation5 + $0x50] sm:$0xff]
    %v2363 = vld [vmem:[#allocation5 + $0x58] sm:$0xff]
    %v2364 = vld [vmem:[#allocation5 + $0x60] sm:$0xff]
    %v2365 = vld [vmem:[#allocation5 + $0x68] sm:$0xff]
    %v2366 = vld [vmem:[#allocation5 + $0x70] sm:$0xff]
    %v2367 = vld [vmem:[#allocation5 + $0x78] sm:$0xff]
    %v2368 = vld [vmem:[#allocation5 + $0x80] sm:$0xff]
    %v2369 = vld [vmem:[#allocation5 + $0x88] sm:$0xff]
    %v2370 = vld [vmem:[#allocation5 + $0x90] sm:$0xff]
    %v2371 = vld [vmem:[#allocation5 + $0x98] sm:$0xff]
    %v2372 = vld [vmem:[#allocation5 + $0xa0] sm:$0xff]
    %v2373 = vld [vmem:[#allocation5 + $0xa8] sm:$0xff]
    %v2374 = vld [vmem:[#allocation5 + $0xb0] sm:$0xff]
    %v2375 = vld [vmem:[#allocation5 + $0xb8] sm:$0xff]
    %v2376 = vld [vmem:[#allocation5 + $0xc0] sm:$0xff]
    %v2377 = vld [vmem:[#allocation5 + $0xc8] sm:$0xff]
    %v2378 = vld [vmem:[#allocation5 + $0xd0] sm:$0xff]
    %v2379 = vld [vmem:[#allocation5 + $0xd8] sm:$0xff]
    %v2380 = vld [vmem:[#allocation5 + $0xe0] sm:$0xff]
    %v2381 = vld [vmem:[#allocation5 + $0xe8] sm:$0xff]
    %v2382 = vld [vmem:[#allocation5 + $0xf0] sm:$0xff]
    %v2383 = vld [vmem:[#allocation5 + $0xf8] sm:$0xff]
    %v2384 = vld [vmem:[#allocation5 + $0x100] sm:$0xff]
    %v2385 = vld [vmem:[#allocation5 + $0x108] sm:$0xff]
    %v2386 = vld [vmem:[#allocation5 + $0x110] sm:$0xff]
    %v2387 = vld [vmem:[#allocation5 + $0x118] sm:$0xff]
    %v2388 = vld [vmem:[#allocation5 + $0x120] sm:$0xff]
    %v2389 = vld [vmem:[#allocation5 + $0x128] sm:$0xff]
    %v2390 = vld [vmem:[#allocation5 + $0x130] sm:$0xff]
    %v2391 = vld [vmem:[#allocation5 + $0x138] sm:$0xff]
    %v2392 = vld [vmem:[#allocation5 + $0x140] sm:$0xff]
    %v2393 = vld [vmem:[#allocation5 + $0x148] sm:$0xff]
    %v2394 = vld [vmem:[#allocation5 + $0x150] sm:$0xff]
    %v2395 = vld [vmem:[#allocation5 + $0x158] sm:$0xff]
    %v2396 = vld [vmem:[#allocation5 + $0x160] sm:$0xff]
    %v2397 = vld [vmem:[#allocation5 + $0x168] sm:$0xff]
    %v2398 = vld [vmem:[#allocation5 + $0x170] sm:$0xff]
    %v2399 = vld [vmem:[#allocation5 + $0x178] sm:$0xff]
    %v2400 = vld [vmem:[#allocation5 + $0x180] sm:$0xff]
    %v2401 = vld [vmem:[#allocation5 + $0x188] sm:$0xff]
    %v2402 = vld [vmem:[#allocation5 + $0x190] sm:$0xff]
    %v2403 = vld [vmem:[#allocation5 + $0x198] sm:$0xff]
    %v2404 = vld [vmem:[#allocation5 + $0x1a0] sm:$0xff]
    %v2405 = vld [vmem:[#allocation5 + $0x1a8] sm:$0xff]
    %v2406 = vld [vmem:[#allocation5 + $0x1b0] sm:$0xff]
    %v2407 = vld [vmem:[#allocation5 + $0x1b8] sm:$0xff]
    %v2408 = vld [vmem:[#allocation5 + $0x1c0] sm:$0xff]
    %v2409 = vld [vmem:[#allocation5 + $0x1c8] sm:$0xff]
    %v2410 = vld [vmem:[#allocation5 + $0x1d0] sm:$0xff]
    %v2411 = vld [vmem:[#allocation5 + $0x1d8] sm:$0xff]
    %v2412 = vld [vmem:[#allocation5 + $0x1e0] sm:$0xff]
    %v2413 = vld [vmem:[#allocation5 + $0x1e8] sm:$0xff]
    %v2414 = vld [vmem:[#allocation5 + $0x1f0] sm:$0xff]
    %v2415 = vld [vmem:[#allocation5 + $0x1f8] sm:$0xff]
    %v2416 = vld [vmem:[#allocation16 + $0x6] sm:$0x1]
    %v2418 = vperm.slane %v2416, 0
    %v2420 = vmul.f32 %v499, %v2418
    %v2421 = vmul.f32 %v500, %v2418
    %2422 = vmatpush.xpose.msra.mxu0 0.0
    %2423 = vmatpush.xpose.msra.mxu0 0.0
    %2424 = vmatpush.xpose.msra.mxu0 0.0
    %2425 = vmatpush.xpose.msra.mxu0 0.0
    %2426 = vmatpush.xpose.msra.mxu0 0.0
    %2427 = vmatpush.xpose.msra.mxu0 0.0
    %2428 = vmatpush.xpose.msra.mxu0 0.0
    %2429 = vmatpush.xpose.msra.mxu0 0.0
    %2430 = vmatpush.xpose.msra.mxu0 %v2408
    %2431 = vmatpush.xpose.msra.mxu0 %v2400
    %2432 = vmatpush.xpose.msra.mxu0 %v2392
    %2433 = vmatpush.xpose.msra.mxu0 %v2384
    %2434 = vmatpush.xpose.msra.mxu0 %v2376
    %2435 = vmatpush.xpose.msra.mxu0 %v2368
    %2436 = vmatpush.xpose.msra.mxu0 %v2360
    %2437 = vmatpush.xpose.msra.mxu0 %v2352
    %2438 = vmatmul.f32.gmra.mxu0 %v2336
    %v2439 = vpop.f32.mrf.mxu0
    %v2440 = vadd.f32 %v2420, %v2439
    %2441 = vmatmul.f32.gmra.mxu0 %v2344
    %v2442 = vpop.f32.mrf.mxu0
    %v2443 = vadd.f32 %v2421, %v2442
    %2444 = vdwg.mxu0
    %2445 = vmatpush.xpose.msra.mxu0 0.0
    %2446 = vmatpush.xpose.msra.mxu0 0.0
    %2447 = vmatpush.xpose.msra.mxu0 0.0
    %2448 = vmatpush.xpose.msra.mxu0 0.0
    %2449 = vmatpush.xpose.msra.mxu0 0.0
    %2450 = vmatpush.xpose.msra.mxu0 0.0
    %2451 = vmatpush.xpose.msra.mxu0 0.0
    %2452 = vmatpush.xpose.msra.mxu0 0.0
    %2453 = vmatpush.xpose.msra.mxu0 %v2409
    %2454 = vmatpush.xpose.msra.mxu0 %v2401
    %2455 = vmatpush.xpose.msra.mxu0 %v2393
    %2456 = vmatpush.xpose.msra.mxu0 %v2385
    %2457 = vmatpush.xpose.msra.mxu0 %v2377
    %2458 = vmatpush.xpose.msra.mxu0 %v2369
    %2459 = vmatpush.xpose.msra.mxu0 %v2361
    %2460 = vmatpush.xpose.msra.mxu0 %v2353
    %2461 = vmatmul.f32.gmra.mxu0 %v2337
    %v2462 = vpop.f32.mrf.mxu0
    %v2463 = vadd.f32 %v2440, %v2462
    %2464 = vmatmul.f32.gmra.mxu0 %v2345
    %v2465 = vpop.f32.mrf.mxu0
    %v2466 = vadd.f32 %v2443, %v2465
    %2467 = vdwg.mxu0
    %2468 = vmatpush.xpose.msra.mxu0 0.0
    %2469 = vmatpush.xpose.msra.mxu0 0.0
    %2470 = vmatpush.xpose.msra.mxu0 0.0
    %2471 = vmatpush.xpose.msra.mxu0 0.0
    %2472 = vmatpush.xpose.msra.mxu0 0.0
    %2473 = vmatpush.xpose.msra.mxu0 0.0
    %2474 = vmatpush.xpose.msra.mxu0 0.0
    %2475 = vmatpush.xpose.msra.mxu0 0.0
    %2476 = vmatpush.xpose.msra.mxu0 %v2410
    %2477 = vmatpush.xpose.msra.mxu0 %v2402
    %2478 = vmatpush.xpose.msra.mxu0 %v2394
    %2479 = vmatpush.xpose.msra.mxu0 %v2386
    %2480 = vmatpush.xpose.msra.mxu0 %v2378
    %2481 = vmatpush.xpose.msra.mxu0 %v2370
    %2482 = vmatpush.xpose.msra.mxu0 %v2362
    %2483 = vmatpush.xpose.msra.mxu0 %v2354
    %2484 = vmatmul.f32.gmra.mxu0 %v2338
    %v2485 = vpop.f32.mrf.mxu0
    %v2486 = vadd.f32 %v2463, %v2485
    %2487 = vmatmul.f32.gmra.mxu0 %v2346
    %v2488 = vpop.f32.mrf.mxu0
    %v2489 = vadd.f32 %v2466, %v2488
    %2490 = vdwg.mxu0
    %2491 = vmatpush.xpose.msra.mxu0 0.0
    %2492 = vmatpush.xpose.msra.mxu0 0.0
    %2493 = vmatpush.xpose.msra.mxu0 0.0
    %2494 = vmatpush.xpose.msra.mxu0 0.0
    %2495 = vmatpush.xpose.msra.mxu0 0.0
    %2496 = vmatpush.xpose.msra.mxu0 0.0
    %2497 = vmatpush.xpose.msra.mxu0 0.0
    %2498 = vmatpush.xpose.msra.mxu0 0.0
    %2499 = vmatpush.xpose.msra.mxu0 %v2411
    %2500 = vmatpush.xpose.msra.mxu0 %v2403
    %2501 = vmatpush.xpose.msra.mxu0 %v2395
    %2502 = vmatpush.xpose.msra.mxu0 %v2387
    %2503 = vmatpush.xpose.msra.mxu0 %v2379
    %2504 = vmatpush.xpose.msra.mxu0 %v2371
    %2505 = vmatpush.xpose.msra.mxu0 %v2363
    %2506 = vmatpush.xpose.msra.mxu0 %v2355
    %2507 = vmatmul.f32.gmra.mxu0 %v2339
    %v2508 = vpop.f32.mrf.mxu0
    %v2509 = vadd.f32 %v2486, %v2508
    %2510 = vmatmul.f32.gmra.mxu0 %v2347
    %v2511 = vpop.f32.mrf.mxu0
    %v2512 = vadd.f32 %v2489, %v2511
    %2513 = vdwg.mxu0
    %2514 = vmatpush.xpose.msra.mxu0 0.0
    %2515 = vmatpush.xpose.msra.mxu0 0.0
    %2516 = vmatpush.xpose.msra.mxu0 0.0
    %2517 = vmatpush.xpose.msra.mxu0 0.0
    %2518 = vmatpush.xpose.msra.mxu0 0.0
    %2519 = vmatpush.xpose.msra.mxu0 0.0
    %2520 = vmatpush.xpose.msra.mxu0 0.0
    %2521 = vmatpush.xpose.msra.mxu0 0.0
    %2522 = vmatpush.xpose.msra.mxu0 %v2412
    %2523 = vmatpush.xpose.msra.mxu0 %v2404
    %2524 = vmatpush.xpose.msra.mxu0 %v2396
    %2525 = vmatpush.xpose.msra.mxu0 %v2388
    %2526 = vmatpush.xpose.msra.mxu0 %v2380
    %2527 = vmatpush.xpose.msra.mxu0 %v2372
    %2528 = vmatpush.xpose.msra.mxu0 %v2364
    %2529 = vmatpush.xpose.msra.mxu0 %v2356
    %2530 = vmatmul.f32.gmra.mxu0 %v2340
    %v2531 = vpop.f32.mrf.mxu0
    %v2532 = vadd.f32 %v2509, %v2531
    %2533 = vmatmul.f32.gmra.mxu0 %v2348
    %v2534 = vpop.f32.mrf.mxu0
    %v2535 = vadd.f32 %v2512, %v2534
    %2536 = vdwg.mxu0
    %2537 = vmatpush.xpose.msra.mxu0 0.0
    %2538 = vmatpush.xpose.msra.mxu0 0.0
    %2539 = vmatpush.xpose.msra.mxu0 0.0
    %2540 = vmatpush.xpose.msra.mxu0 0.0
    %2541 = vmatpush.xpose.msra.mxu0 0.0
    %2542 = vmatpush.xpose.msra.mxu0 0.0
    %2543 = vmatpush.xpose.msra.mxu0 0.0
    %2544 = vmatpush.xpose.msra.mxu0 0.0
    %2545 = vmatpush.xpose.msra.mxu0 %v2413
    %2546 = vmatpush.xpose.msra.mxu0 %v2405
    %2547 = vmatpush.xpose.msra.mxu0 %v2397
    %2548 = vmatpush.xpose.msra.mxu0 %v2389
    %2549 = vmatpush.xpose.msra.mxu0 %v2381
    %2550 = vmatpush.xpose.msra.mxu0 %v2373
    %2551 = vmatpush.xpose.msra.mxu0 %v2365
    %2552 = vmatpush.xpose.msra.mxu0 %v2357
    %2553 = vmatmul.f32.gmra.mxu0 %v2341
    %v2554 = vpop.f32.mrf.mxu0
    %v2555 = vadd.f32 %v2532, %v2554
    %2556 = vmatmul.f32.gmra.mxu0 %v2349
    %v2557 = vpop.f32.mrf.mxu0
    %v2558 = vadd.f32 %v2535, %v2557
    %2559 = vdwg.mxu0
    %2560 = vmatpush.xpose.msra.mxu0 0.0
    %2561 = vmatpush.xpose.msra.mxu0 0.0
    %2562 = vmatpush.xpose.msra.mxu0 0.0
    %2563 = vmatpush.xpose.msra.mxu0 0.0
    %2564 = vmatpush.xpose.msra.mxu0 0.0
    %2565 = vmatpush.xpose.msra.mxu0 0.0
    %2566 = vmatpush.xpose.msra.mxu0 0.0
    %2567 = vmatpush.xpose.msra.mxu0 0.0
    %2568 = vmatpush.xpose.msra.mxu0 %v2414
    %2569 = vmatpush.xpose.msra.mxu0 %v2406
    %2570 = vmatpush.xpose.msra.mxu0 %v2398
    %2571 = vmatpush.xpose.msra.mxu0 %v2390
    %2572 = vmatpush.xpose.msra.mxu0 %v2382
    %2573 = vmatpush.xpose.msra.mxu0 %v2374
    %2574 = vmatpush.xpose.msra.mxu0 %v2366
    %2575 = vmatpush.xpose.msra.mxu0 %v2358
    %2576 = vmatmul.f32.gmra.mxu0 %v2342
    %v2577 = vpop.f32.mrf.mxu0
    %v2578 = vadd.f32 %v2555, %v2577
    %2579 = vmatmul.f32.gmra.mxu0 %v2350
    %v2580 = vpop.f32.mrf.mxu0
    %v2581 = vadd.f32 %v2558, %v2580
    %2582 = vdwg.mxu0
    %2583 = vmatpush.xpose.msra.mxu0 0.0
    %2584 = vmatpush.xpose.msra.mxu0 0.0
    %2585 = vmatpush.xpose.msra.mxu0 0.0
    %2586 = vmatpush.xpose.msra.mxu0 0.0
    %2587 = vmatpush.xpose.msra.mxu0 0.0
    %2588 = vmatpush.xpose.msra.mxu0 0.0
    %2589 = vmatpush.xpose.msra.mxu0 0.0
    %2590 = vmatpush.xpose.msra.mxu0 0.0
    %2591 = vmatpush.xpose.msra.mxu0 %v2415
    %2592 = vmatpush.xpose.msra.mxu0 %v2407
    %2593 = vmatpush.xpose.msra.mxu0 %v2399
    %2594 = vmatpush.xpose.msra.mxu0 %v2391
    %2595 = vmatpush.xpose.msra.mxu0 %v2383
    %2596 = vmatpush.xpose.msra.mxu0 %v2375
    %2597 = vmatpush.xpose.msra.mxu0 %v2367
    %2598 = vmatpush.xpose.msra.mxu0 %v2359
    %2599 = vmatmul.f32.gmra.mxu0 %v2343
    %v2600 = vpop.f32.mrf.mxu0
    %v2601 = vadd.f32 %v2578, %v2600
    %2602 = vmatmul.f32.gmra.mxu0 %v2351
    %v2603 = vpop.f32.mrf.mxu0
    %v2604 = vadd.f32 %v2581, %v2603
    %2605 = vdwg.mxu0
    %v2606 = vsub.f32 0.0, %v298
    %v2607 = vsub.f32 0.0, %v301
    %v2608 = vmul.f32 %v2606, 1.442695
    %v2609 = vpow.pop %v2608
    %v2610 = vmul.f32 %v2607, 1.442695
    %v2611 = vpow.pop %v2610
    %v2612 = vadd.f32 %v2609, 1.0
    %v2613 = vadd.f32 %v2611, 1.0
    %v2614 = vrcp.pop %v2612
    %v2615 = vmul.f32 %v2612, %v2614
    %v2616 = vsub.f32 1.0, %v2615
    %v2617 = vmul.f32 %v2614, %v2616
    %v2618 = vadd.f32 %v2614, %v2617
    %vm2619 = vweird.f32 %v2612
    %vm2620 = vweird.f32 %v2614
    %vm2621 = vmor %vm2619, %vm2620
    %v2622 = vsel %vm2621, %v2614, %v2618
    %v2623 = vand.u32 2147483647, %v2612
    %vm2624 = vcmp.eq.f32.partialorder %v2623, 8.507059e+37
    %v2625 = vand.u32 %v2612, 2147483648
    %v2626 = vor.u32 1.1754944e-38, %v2625
    %v2627 = vsel %vm2624, %v2626, %v2622
    %v2628 = vmul.f32 1.0, %v2627
    %v2629 = vrcp.pop %v2613
    %v2630 = vmul.f32 %v2613, %v2629
    %v2631 = vsub.f32 1.0, %v2630
    %v2632 = vmul.f32 %v2629, %v2631
    %v2633 = vadd.f32 %v2629, %v2632
    %vm2634 = vweird.f32 %v2613
    %vm2635 = vweird.f32 %v2629
    %vm2636 = vmor %vm2634, %vm2635
    %v2637 = vsel %vm2636, %v2629, %v2633
    %v2638 = vand.u32 2147483647, %v2613
    %vm2639 = vcmp.eq.f32.partialorder %v2638, 8.507059e+37
    %v2640 = vand.u32 %v2613, 2147483648
    %v2641 = vor.u32 1.1754944e-38, %v2640
    %v2642 = vsel %vm2639, %v2641, %v2637
    %v2643 = vmul.f32 1.0, %v2642
    %v2644 = vmul.f32 %v298, %v2628
    %v2645 = vmul.f32 %v301, %v2643
    %v2646 = vmul.f32 %v2601, %v2644
    %v2647 = vmul.f32 %v2604, %v2645
    %v2648 = vld [vmem:[%s14] sm:$0xff]
    %v2649 = vld [vmem:[%s14 + $0x8] sm:$0xff]
    %v2650 = vld [vmem:[%s14 + $0x10] sm:$0xff]
    %v2651 = vld [vmem:[%s14 + $0x18] sm:$0xff]
    %v2652 = vld [vmem:[%s14 + $0x20] sm:$0xff]
    %v2653 = vld [vmem:[%s14 + $0x28] sm:$0xff]
    %v2654 = vld [vmem:[%s14 + $0x30] sm:$0xff]
    %v2655 = vld [vmem:[%s14 + $0x38] sm:$0xff]
    %v2657 = vsel %vm513, %v2646, 0
    %v2660 = vsel %vm513, %v2647, 0
    %2662 = vmatpush.msra.mxu0 0.0
    %2663 = vmatpush.msra.mxu0 0.0
    %2664 = vmatpush.msra.mxu0 0.0
    %2665 = vmatpush.msra.mxu0 0.0
    %2666 = vmatpush.msra.mxu0 0.0
    %2667 = vmatpush.msra.mxu0 0.0
    %2668 = vmatpush.msra.mxu0 0.0
    %2669 = vmatpush.msra.mxu0 0.0
    %2670 = vmatpush.msra.mxu0 %v2655
    %2671 = vmatpush.msra.mxu0 %v2654
    %2672 = vmatpush.msra.mxu0 %v2653
    %2673 = vmatpush.msra.mxu0 %v2652
    %2674 = vmatpush.msra.mxu0 %v2651
    %2675 = vmatpush.msra.mxu0 %v2650
    %2676 = vmatpush.msra.mxu0 %v2649
    %2677 = vmatpush.msra.mxu0 %v2648
    %2678 = vmatmul.f32.gmra.mxu0 %v2657
    %v2679 = vpop.f32.mrf.mxu0
    %v2680 = vadd.f32 0.0, %v2679
    %2681 = vmatmul.f32.gmra.mxu0 %v2660
    %v2682 = vpop.f32.mrf.mxu0
    %v2683 = vadd.f32 0.0, %v2682
    %2684 = vdwg.mxu0
    %v2685 = vadd.f32 %v191, %v2680
    %v2686 = vadd.f32 %v192, %v2683
    %v2687 = vld [vmem:[#allocation16 + $0x7] sm:$0x1]
    %v2689 = vperm.slane %v2687, 0
    %v2691 = vadd.f32 %v2685, %v2689
    %v2692 = vadd.f32 %v2686, %v2689
    %2693 = vst.msk [vmem:[#allocation17] sm:$0xff] %vm195, %v2691
    %2694 = vst.msk [vmem:[#allocation17 + $0x8] sm:$0xff] %vm195, %v2692
    // Predicated region
    $region102: #{tpu_custom_call.1} parent=1 // pred_check
      _
    $region103: #{tpu_custom_call.1} parent=1 // pred_check_branch
      %2696 = sbr.rel (0) target = $region105
    $region104: #{tpu_custom_call.1} parent=1 // pred_region
      %2698 = vsyncadd [#allocation4], 0
      %s2699 = sshll.u32 [#allocation17], 4
      %s2700 = int_to_ptr.vmem [resolvable:$true] %s2699
      %s2701 = sshll.u32 %s16, 4
      %s2702 = int_to_ptr.hbm [resolvable:$true] %s2701
      %2707 = dma.vmem_to_hbm [thread:$0]  %s2700, 256, %s2702, [#allocation4], 128, 128, 8
    $region105: #{tpu_custom_call.1} parent=1 // pred_fallthru
      _
    // Predicated region
    $region106: #{tpu_custom_call.1} parent=1 // pred_check
      _
    $region107: #{tpu_custom_call.1} parent=1 // pred_check_branch
      %2709 = sbr.rel (0) target = $region109
    $region108: #{tpu_custom_call.1} parent=1 // pred_region
      %2711 = vsyncadd [#allocation19], 0
      %s2713 = sshll.u32 [#allocation18], 4
      %s2714 = int_to_ptr.vmem [resolvable:$true] %s2713
      %s2715 = sshll.u32 %s17, 4
      %s2716 = int_to_ptr.hbm [resolvable:$true] %s2715
      %2718 = dma.vmem_to_hbm [thread:$0]  %s2714, 256, %s2716, [#allocation19]
    $region109: #{tpu_custom_call.1} parent=1 // pred_fallthru
      _
    // Predicated region
    $region110: #{tpu_custom_call.1} parent=1 // pred_check
      _
    $region111: #{tpu_custom_call.1} parent=1 // pred_check_branch
      %2720 = sbr.rel (0) target = $region113
    $region112: #{tpu_custom_call.1} parent=1 // pred_region
      %2722 = dma.done [#allocation4], 256
    $region113: #{tpu_custom_call.1} parent=1 // pred_fallthru
      _
    // Predicated region
    $region114: #{tpu_custom_call.1} parent=1 // pred_check
      _
    $region115: #{tpu_custom_call.1} parent=1 // pred_check_branch
      %2724 = sbr.rel (0) target = $region117
    $region116: #{tpu_custom_call.1} parent=1 // pred_region
      %2726 = dma.done [#allocation19], 256
    $region117: #{tpu_custom_call.1} parent=1 // pred_fallthru
      _
    %2727 = vsyncpa [#allocation3], 1
    %2728 = vsyncpa [#allocation6], 1
    %2729 = vsyncpa [#allocation9], 1
    %2730 = vsyncpa [#allocation12], 1
    %2731 = vsyncpa [#allocation15], 1
    %2732 = vsyncpa [#allocation4], 1
    %2733 = vsyncpa [#allocation19], 1

</llo_original>
